<compile_context>
chip_gen: v5e
topology: v5e:2x2
jax: 0.10.0
libtpu: 0.0.40
codegen_flags: <defaults>
</compile_context>

<pallas_src>
import functools

import jax
import jax.numpy as jnp
from jax.experimental import pallas as pl
from jax.experimental.pallas import tpu as pltpu


def _istc_kernel(lam_ref, x_ref, dt_ref, a_ref, o_ref, wtx_ref, zs_ref, *,
                 n_iterations):
    """One (batch, spatial-tile) block, features-on-sublane layout.

    lam_ref : SMEM (n_iterations,) f32   per-iteration soft thresholds
    x_ref   : VMEM (C, tile_hw)          input pixels (pixels on lanes)
    dt_ref  : VMEM (M, C)                D^T
    a_ref   : VMEM (M, M)                A = I - D^T D
    o_ref   : VMEM (M, tile_hw)          output code z (also a ping-pong buf)
    wtx_ref : VMEM (M, tile_hw)          scratch: D^T x
    zs_ref  : VMEM (M, tile_hw)          scratch: ping-pong partner of o_ref
    """
    n = n_iterations

    # D^T x : lane-dense (M, tile_hw); computed once per tile.
    wtx_ref[...] = jnp.dot(dt_ref[...], x_ref[...],
                           preferred_element_type=jnp.float32)

    def dst_for(i):
        # Alternate o_ref <-> zs_ref, phased so iteration n-1 writes o_ref.
        return o_ref if (n - 1 - i) % 2 == 0 else zs_ref

    # Iteration 0 with z = 0 reduces to z = relu(D^T x - lambda_0).
    prev = dst_for(0)
    prev[...] = jnp.maximum(wtx_ref[...] - lam_ref[0], 0.0)

    # Fully-unrolled static loop (n is a Python int); each iteration is one
    # full-depth MXU pass A @ z plus a VPU epilogue, reading `prev` and
    # writing the other buffer (never in-place on the dot operand).
    for i in range(1, n):
        dst = dst_for(i)
        az = jnp.dot(a_ref[...], prev[...], preferred_element_type=jnp.float32)
        dst[...] = jnp.maximum(az + wtx_ref[...] - lam_ref[i], 0.0)
        prev = dst
    # By construction, the final iteration (or iteration 0 if n == 1) wrote
    # its result directly into o_ref.


def _pick_tile_hw(hw, cap=8192):
    """Largest multiple of 128 that divides hw (hw itself a multiple of 128)."""
    best = 128
    t = 128
    while t <= min(hw, cap):
        if hw % t == 0:
            best = t
        t += 128
    return best


def istc_forward(x_nchw, dictionary, lambdas, *, tile_hw=None):
    """ISTC forward (use_W=False, output_rec=False).

    x_nchw     : (B, C, H, W) f32
    dictionary : (C, M) f32, columns unit-norm over C
    lambdas    : (n_iterations,) f32 soft-threshold schedule
    returns    : (B, M, H, W) f32  (the sparse code z)
    """
    B, C, H, W = x_nchw.shape
    Cd, M = dictionary.shape
    assert C == Cd
    HW = H * W
    HW_pad = ((HW + 127) // 128) * 128   # lane-dense stores for any image size

    n_iter = int(lambdas.shape[0])
    assert n_iter >= 1

    # Pure views (plus zero-padding of the flattened spatial axis if needed).
    x3 = x_nchw.reshape(B, C, HW)
    if HW_pad != HW:
        x3 = jnp.pad(x3, ((0, 0), (0, 0), (0, HW_pad - HW)))

    if tile_hw is None:
        tile_hw = _pick_tile_hw(HW_pad)
    assert HW_pad % tile_hw == 0 and tile_hw % 128 == 0

    d_t = dictionary.T.astype(jnp.float32)                      # (M, C)
    a_mat = (jnp.eye(M, dtype=jnp.float32)
             - d_t @ dictionary.astype(jnp.float32))            # I - D^T D

    # VMEM budget: double-buffered x & out blocks + wtx + zs scratch + A + D^T.
    est_bytes = 4 * (2 * C * tile_hw + 2 * M * tile_hw + 2 * M * tile_hw
                     + M * M + M * C)
    vmem_limit = min(max(est_bytes + (4 << 20), 32 << 20), 60 << 20)

    kernel = functools.partial(_istc_kernel, n_iterations=n_iter)
    out3 = pl.pallas_call(
        kernel,
        out_shape=jax.ShapeDtypeStruct((B, M, HW_pad), jnp.float32),
        grid_spec=pl.GridSpec(
            grid=(B, HW_pad // tile_hw),
            in_specs=[
                pl.BlockSpec(memory_space=pltpu.SMEM),                     # lambdas
                pl.BlockSpec((None, C, tile_hw), lambda b, j: (b, 0, j)),  # x
                pl.BlockSpec((M, C), lambda b, j: (0, 0)),                 # D^T
                pl.BlockSpec((M, M), lambda b, j: (0, 0)),                 # A
            ],
            out_specs=pl.BlockSpec((None, M, tile_hw),
                                   lambda b, j: (b, 0, j)),
            scratch_shapes=[pltpu.VMEM((M, tile_hw), jnp.float32),   # D^T x
                            pltpu.VMEM((M, tile_hw), jnp.float32)],  # z ping-pong
        ),
        compiler_params=pltpu.CompilerParams(
            dimension_semantics=("parallel", "parallel"),
            vmem_limit_bytes=int(vmem_limit)),
    )(lambdas, x3, d_t, a_mat)

    if HW_pad != HW:
        out3 = out3[:, :, :HW]
    return out3.reshape(B, M, H, W)


def istc_ref(x_nchw, dictionary, lambdas):
    """Pure-JAX reference matching the PyTorch forward (default flags)."""
    B, C, H, W = x_nchw.shape
    M = dictionary.shape[1]
    x_flat = jnp.transpose(x_nchw, (0, 2, 3, 1)).reshape(-1, C)
    wt_x = x_flat @ dictionary
    z = jnp.zeros_like(wt_x)
    for i in range(lambdas.shape[0]):
        d_z = z @ dictionary.T
        wt_d_z = d_z @ dictionary
        z = jnp.maximum(z - wt_d_z + wt_x - lambdas[i], 0.0)
    return jnp.transpose(z.reshape(B, H, W, M), (0, 3, 1, 2))


def make_lambdas(n_iterations, lambda_0, lambda_star):
    # Matches the forward-pass schedule when grad_lambda_star or
    # epsilon_lambda_0 > 0 (default): geometric interpolation in log space,
    # with the final iteration using exp(log_lambda_star) exactly.
    frac = jnp.arange(1, n_iterations + 1, dtype=jnp.float32) / n_iterations
    log_lams = (1.0 - frac) * jnp.log(lambda_0) + frac * jnp.log(lambda_star)
    return jnp.exp(log_lams).astype(jnp.float32)


if __name__ == "__main__":
    # Module config (small synthetic sizes)
    nb_channels_in = 4
    dictionary_size = 128
    n_iterations = 12
    lambda_0, lambda_star = 0.3, 0.05

    B, H, W = 2, 16, 16

    key = jax.random.PRNGKey(0)
    k_x, k_d, k_x2 = jax.random.split(key, 3)

    # Deterministic parameter init: normal dictionary, unit L2 norm over the
    # channel axis (PyTorch normalizes over dim 0 of the (C, M, 1, 1) weight).
    dictionary = jax.random.normal(
        k_d, (nb_channels_in, dictionary_size), dtype=jnp.float32)
    dictionary = dictionary / jnp.linalg.norm(dictionary, axis=0, keepdims=True)

    lambdas = make_lambdas(n_iterations, lambda_0, lambda_star)

    x = jax.random.normal(k_x, (B, nb_channels_in, H, W), dtype=jnp.float32)

    out = istc_forward(x, dictionary, lambdas)
    out = jax.block_until_ready(out)

    assert out.shape == (B, dictionary_size, H, W), out.shape

    ref = istc_ref(x, dictionary, lambdas)
    if not bool(jnp.allclose(out, ref, atol=1e-2, rtol=1e-2)):
        max_err = float(jnp.max(jnp.abs(out - ref)))
        raise AssertionError(f"mismatch vs reference, max_err={max_err}")

    # Exercise the lane-padding path (H*W not a multiple of 128): compare with
    # a global relative-error metric (robust to relu support flips at the
    # numerical-noise scale intrinsic to the Gram refactor).
    H2 = W2 = 15
    x2 = jax.random.normal(k_x2, (B, nb_channels_in, H2, W2), dtype=jnp.float32)
    out2 = jax.block_until_ready(istc_forward(x2, dictionary, lambdas))
    assert out2.shape == (B, dictionary_size, H2, W2), out2.shape
    ref2 = istc_ref(x2, dictionary, lambdas)
    rel = float(jnp.linalg.norm(out2 - ref2) /
                jnp.maximum(jnp.linalg.norm(ref2), 1e-30))
    if not rel < 1e-2:
        raise AssertionError(f"padded-path mismatch, rel_fro_err={rel}")

    print("KERNEL_OK")
</pallas_src>

<mosaic_0001>
module attributes {stable_mosaic.version = 11 : i64} {
  func.func @_istc_kernel(%arg0: i32, %arg1: i32, %arg2: memref<12xf32, #tpu.memory_space<smem>>, %arg3: memref<1x4x256xf32, #tpu.memory_space<vmem>>, %arg4: memref<128x4xf32, #tpu.memory_space<vmem>>, %arg5: memref<128x128xf32, #tpu.memory_space<vmem>>, %arg6: memref<1x128x256xf32, #tpu.memory_space<vmem>>, %arg7: memref<128x256xf32, #tpu.memory_space<vmem>>, %arg8: memref<128x256xf32, #tpu.memory_space<vmem>>) attributes {dimension_semantics = [#tpu.dimension_semantics<parallel>, #tpu.dimension_semantics<parallel>], iteration_bounds = array<i64: 2, 1>, scalar_prefetch = 0 : i64, scratch_operands = 2 : i64, tpu.core_type = #tpu.core_type<tc>, window_params = [{transform_indices = @transform_0, window_bounds = array<i64: 12>}, {transform_indices = @transform_1, window_bounds = array<i64: 1, 4, 256>}, {pipeline_mode = #tpu.pipeline_mode<synchronous>, transform_indices = @transform_2, window_bounds = array<i64: 128, 4>}, {pipeline_mode = #tpu.pipeline_mode<synchronous>, transform_indices = @transform_3, window_bounds = array<i64: 128, 128>}, {transform_indices = @transform_4, window_bounds = array<i64: 1, 128, 256>}]} {
    %c0 = arith.constant 0 : index
    %c0_0 = arith.constant 0 : index
    %0 = vector.load %arg4[%c0, %c0_0] : memref<128x4xf32, #tpu.memory_space<vmem>>, vector<128x4xf32>
    %c0_1 = arith.constant 0 : index
    %c0_2 = arith.constant 0 : index
    %c0_3 = arith.constant 0 : index
    %1 = vector.load %arg3[%c0_1, %c0_2, %c0_3] : memref<1x4x256xf32, #tpu.memory_space<vmem>>, vector<1x4x256xf32>
    %2 = vector.shape_cast %1 : vector<1x4x256xf32> to vector<4x256xf32>
    %cst = arith.constant dense<0.000000e+00> : vector<128x256xf32>
    %3 = tpu.matmul %0, %2, %cst {dimension_numbers = #tpu.dot_dimension_numbers<[1], [0], [0], [1], [0, 0, 1, 1], [], []>} : vector<128x4xf32>, vector<4x256xf32>, vector<128x256xf32> -> vector<128x256xf32>
    %c0_4 = arith.constant 0 : index
    %c0_5 = arith.constant 0 : index
    %4 = vector.load %arg7[%c0_4, %c0_5] : memref<128x256xf32, #tpu.memory_space<vmem>>, vector<128x256xf32>
    tpu.vector_store %arg7[%c0_4, %c0_5], %3 {strides = array<i32>} : memref<128x256xf32, #tpu.memory_space<vmem>>, vector<128x256xf32>,
    %c0_6 = arith.constant 0 : index
    %c0_7 = arith.constant 0 : index
    %5 = vector.load %arg7[%c0_6, %c0_7] : memref<128x256xf32, #tpu.memory_space<vmem>>, vector<128x256xf32>
    %c0_8 = arith.constant 0 : index
    %6 = memref.load %arg2[%c0_8] : memref<12xf32, #tpu.memory_space<smem>>
    %7 = vector.broadcast %6 : f32 to vector<128x256xf32>
    %8 = arith.subf %5, %7 : vector<128x256xf32>
    %cst_9 = arith.constant 0.000000e+00 : f32
    %9 = vector.broadcast %cst_9 : f32 to vector<128x256xf32>
    %10 = arith.maximumf %8, %9 : vector<128x256xf32>
    %c0_10 = arith.constant 0 : index
    %c0_11 = arith.constant 0 : index
    %11 = vector.load %arg8[%c0_10, %c0_11] : memref<128x256xf32, #tpu.memory_space<vmem>>, vector<128x256xf32>
    tpu.vector_store %arg8[%c0_10, %c0_11], %10 {strides = array<i32>} : memref<128x256xf32, #tpu.memory_space<vmem>>, vector<128x256xf32>,
    %c0_12 = arith.constant 0 : index
    %c0_13 = arith.constant 0 : index
    %12 = vector.load %arg5[%c0_12, %c0_13] : memref<128x128xf32, #tpu.memory_space<vmem>>, vector<128x128xf32>
    %c0_14 = arith.constant 0 : index
    %c0_15 = arith.constant 0 : index
    %13 = vector.load %arg8[%c0_14, %c0_15] : memref<128x256xf32, #tpu.memory_space<vmem>>, vector<128x256xf32>
    %cst_16 = arith.constant dense<0.000000e+00> : vector<128x256xf32>
    %14 = tpu.matmul %12, %13, %cst_16 {dimension_numbers = #tpu.dot_dimension_numbers<[1], [0], [0], [1], [0, 0, 1, 1], [], []>} : vector<128x128xf32>, vector<128x256xf32>, vector<128x256xf32> -> vector<128x256xf32>
    %c0_17 = arith.constant 0 : index
    %c0_18 = arith.constant 0 : index
    %15 = vector.load %arg7[%c0_17, %c0_18] : memref<128x256xf32, #tpu.memory_space<vmem>>, vector<128x256xf32>
    %16 = arith.addf %14, %15 : vector<128x256xf32>
    %c1 = arith.constant 1 : index
    %17 = memref.load %arg2[%c1] : memref<12xf32, #tpu.memory_space<smem>>
    %18 = vector.broadcast %17 : f32 to vector<128x256xf32>
    %19 = arith.subf %16, %18 : vector<128x256xf32>
    %cst_19 = arith.constant 0.000000e+00 : f32
    %20 = vector.broadcast %cst_19 : f32 to vector<128x256xf32>
    %21 = arith.maximumf %19, %20 : vector<128x256xf32>
    %c0_20 = arith.constant 0 : index
    %c0_21 = arith.constant 0 : index
    %c0_22 = arith.constant 0 : index
    %22 = vector.load %arg6[%c0_20, %c0_21, %c0_22] : memref<1x128x256xf32, #tpu.memory_space<vmem>>, vector<1x128x256xf32>
    %23 = vector.shape_cast %22 : vector<1x128x256xf32> to vector<128x256xf32>
    %24 = vector.shape_cast %21 : vector<128x256xf32> to vector<1x128x256xf32>
    tpu.vector_store %arg6[%c0_20, %c0_21, %c0_22], %24 {strides = array<i32>} : memref<1x128x256xf32, #tpu.memory_space<vmem>>, vector<1x128x256xf32>,
    %c0_23 = arith.constant 0 : index
    %c0_24 = arith.constant 0 : index
    %25 = vector.load %arg5[%c0_23, %c0_24] : memref<128x128xf32, #tpu.memory_space<vmem>>, vector<128x128xf32>
    %c0_25 = arith.constant 0 : index
    %c0_26 = arith.constant 0 : index
    %c0_27 = arith.constant 0 : index
    %26 = vector.load %arg6[%c0_25, %c0_26, %c0_27] : memref<1x128x256xf32, #tpu.memory_space<vmem>>, vector<1x128x256xf32>
    %27 = vector.shape_cast %26 : vector<1x128x256xf32> to vector<128x256xf32>
    %cst_28 = arith.constant dense<0.000000e+00> : vector<128x256xf32>
    %28 = tpu.matmul %25, %27, %cst_28 {dimension_numbers = #tpu.dot_dimension_numbers<[1], [0], [0], [1], [0, 0, 1, 1], [], []>} : vector<128x128xf32>, vector<128x256xf32>, vector<128x256xf32> -> vector<128x256xf32>
    %c0_29 = arith.constant 0 : index
    %c0_30 = arith.constant 0 : index
    %29 = vector.load %arg7[%c0_29, %c0_30] : memref<128x256xf32, #tpu.memory_space<vmem>>, vector<128x256xf32>
    %30 = arith.addf %28, %29 : vector<128x256xf32>
    %c2 = arith.constant 2 : index
    %31 = memref.load %arg2[%c2] : memref<12xf32, #tpu.memory_space<smem>>
    %32 = vector.broadcast %31 : f32 to vector<128x256xf32>
    %33 = arith.subf %30, %32 : vector<128x256xf32>
    %cst_31 = arith.constant 0.000000e+00 : f32
    %34 = vector.broadcast %cst_31 : f32 to vector<128x256xf32>
    %35 = arith.maximumf %33, %34 : vector<128x256xf32>
    %c0_32 = arith.constant 0 : index
    %c0_33 = arith.constant 0 : index
    %36 = vector.load %arg8[%c0_32, %c0_33] : memref<128x256xf32, #tpu.memory_space<vmem>>, vector<128x256xf32>
    tpu.vector_store %arg8[%c0_32, %c0_33], %35 {strides = array<i32>} : memref<128x256xf32, #tpu.memory_space<vmem>>, vector<128x256xf32>,
    %c0_34 = arith.constant 0 : index
    %c0_35 = arith.constant 0 : index
    %37 = vector.load %arg5[%c0_34, %c0_35] : memref<128x128xf32, #tpu.memory_space<vmem>>, vector<128x128xf32>
    %c0_36 = arith.constant 0 : index
    %c0_37 = arith.constant 0 : index
    %38 = vector.load %arg8[%c0_36, %c0_37] : memref<128x256xf32, #tpu.memory_space<vmem>>, vector<128x256xf32>
    %cst_38 = arith.constant dense<0.000000e+00> : vector<128x256xf32>
    %39 = tpu.matmul %37, %38, %cst_38 {dimension_numbers = #tpu.dot_dimension_numbers<[1], [0], [0], [1], [0, 0, 1, 1], [], []>} : vector<128x128xf32>, vector<128x256xf32>, vector<128x256xf32> -> vector<128x256xf32>
    %c0_39 = arith.constant 0 : index
    %c0_40 = arith.constant 0 : index
    %40 = vector.load %arg7[%c0_39, %c0_40] : memref<128x256xf32, #tpu.memory_space<vmem>>, vector<128x256xf32>
    %41 = arith.addf %39, %40 : vector<128x256xf32>
    %c3 = arith.constant 3 : index
    %42 = memref.load %arg2[%c3] : memref<12xf32, #tpu.memory_space<smem>>
    %43 = vector.broadcast %42 : f32 to vector<128x256xf32>
    %44 = arith.subf %41, %43 : vector<128x256xf32>
    %cst_41 = arith.constant 0.000000e+00 : f32
    %45 = vector.broadcast %cst_41 : f32 to vector<128x256xf32>
    %46 = arith.maximumf %44, %45 : vector<128x256xf32>
    %c0_42 = arith.constant 0 : index
    %c0_43 = arith.constant 0 : index
    %c0_44 = arith.constant 0 : index
    %47 = vector.load %arg6[%c0_42, %c0_43, %c0_44] : memref<1x128x256xf32, #tpu.memory_space<vmem>>, vector<1x128x256xf32>
    %48 = vector.shape_cast %47 : vector<1x128x256xf32> to vector<128x256xf32>
    %49 = vector.shape_cast %46 : vector<128x256xf32> to vector<1x128x256xf32>
    tpu.vector_store %arg6[%c0_42, %c0_43, %c0_44], %49 {strides = array<i32>} : memref<1x128x256xf32, #tpu.memory_space<vmem>>, vector<1x128x256xf32>,
    %c0_45 = arith.constant 0 : index
    %c0_46 = arith.constant 0 : index
    %50 = vector.load %arg5[%c0_45, %c0_46] : memref<128x128xf32, #tpu.memory_space<vmem>>, vector<128x128xf32>
    %c0_47 = arith.constant 0 : index
    %c0_48 = arith.constant 0 : index
    %c0_49 = arith.constant 0 : index
    %51 = vector.load %arg6[%c0_47, %c0_48, %c0_49] : memref<1x128x256xf32, #tpu.memory_space<vmem>>, vector<1x128x256xf32>
    %52 = vector.shape_cast %51 : vector<1x128x256xf32> to vector<128x256xf32>
    %cst_50 = arith.constant dense<0.000000e+00> : vector<128x256xf32>
    %53 = tpu.matmul %50, %52, %cst_50 {dimension_numbers = #tpu.dot_dimension_numbers<[1], [0], [0], [1], [0, 0, 1, 1], [], []>} : vector<128x128xf32>, vector<128x256xf32>, vector<128x256xf32> -> vector<128x256xf32>
    %c0_51 = arith.constant 0 : index
    %c0_52 = arith.constant 0 : index
    %54 = vector.load %arg7[%c0_51, %c0_52] : memref<128x256xf32, #tpu.memory_space<vmem>>, vector<128x256xf32>
    %55 = arith.addf %53, %54 : vector<128x256xf32>
    %c4 = arith.constant 4 : index
    %56 = memref.load %arg2[%c4] : memref<12xf32, #tpu.memory_space<smem>>
    %57 = vector.broadcast %56 : f32 to vector<128x256xf32>
    %58 = arith.subf %55, %57 : vector<128x256xf32>
    %cst_53 = arith.constant 0.000000e+00 : f32
    %59 = vector.broadcast %cst_53 : f32 to vector<128x256xf32>
    %60 = arith.maximumf %58, %59 : vector<128x256xf32>
    %c0_54 = arith.constant 0 : index
    %c0_55 = arith.constant 0 : index
    %61 = vector.load %arg8[%c0_54, %c0_55] : memref<128x256xf32, #tpu.memory_space<vmem>>, vector<128x256xf32>
    tpu.vector_store %arg8[%c0_54, %c0_55], %60 {strides = array<i32>} : memref<128x256xf32, #tpu.memory_space<vmem>>, vector<128x256xf32>,
    %c0_56 = arith.constant 0 : index
    %c0_57 = arith.constant 0 : index
    %62 = vector.load %arg5[%c0_56, %c0_57] : memref<128x128xf32, #tpu.memory_space<vmem>>, vector<128x128xf32>
    %c0_58 = arith.constant 0 : index
    %c0_59 = arith.constant 0 : index
    %63 = vector.load %arg8[%c0_58, %c0_59] : memref<128x256xf32, #tpu.memory_space<vmem>>, vector<128x256xf32>
    %cst_60 = arith.constant dense<0.000000e+00> : vector<128x256xf32>
    %64 = tpu.matmul %62, %63, %cst_60 {dimension_numbers = #tpu.dot_dimension_numbers<[1], [0], [0], [1], [0, 0, 1, 1], [], []>} : vector<128x128xf32>, vector<128x256xf32>, vector<128x256xf32> -> vector<128x256xf32>
    %c0_61 = arith.constant 0 : index
    %c0_62 = arith.constant 0 : index
    %65 = vector.load %arg7[%c0_61, %c0_62] : memref<128x256xf32, #tpu.memory_space<vmem>>, vector<128x256xf32>
    %66 = arith.addf %64, %65 : vector<128x256xf32>
    %c5 = arith.constant 5 : index
    %67 = memref.load %arg2[%c5] : memref<12xf32, #tpu.memory_space<smem>>
    %68 = vector.broadcast %67 : f32 to vector<128x256xf32>
    %69 = arith.subf %66, %68 : vector<128x256xf32>
    %cst_63 = arith.constant 0.000000e+00 : f32
    %70 = vector.broadcast %cst_63 : f32 to vector<128x256xf32>
    %71 = arith.maximumf %69, %70 : vector<128x256xf32>
    %c0_64 = arith.constant 0 : index
    %c0_65 = arith.constant 0 : index
    %c0_66 = arith.constant 0 : index
    %72 = vector.load %arg6[%c0_64, %c0_65, %c0_66] : memref<1x128x256xf32, #tpu.memory_space<vmem>>, vector<1x128x256xf32>
    %73 = vector.shape_cast %72 : vector<1x128x256xf32> to vector<128x256xf32>
    %74 = vector.shape_cast %71 : vector<128x256xf32> to vector<1x128x256xf32>
    tpu.vector_store %arg6[%c0_64, %c0_65, %c0_66], %74 {strides = array<i32>} : memref<1x128x256xf32, #tpu.memory_space<vmem>>, vector<1x128x256xf32>,
    %c0_67 = arith.constant 0 : index
    %c0_68 = arith.constant 0 : index
    %75 = vector.load %arg5[%c0_67, %c0_68] : memref<128x128xf32, #tpu.memory_space<vmem>>, vector<128x128xf32>
    %c0_69 = arith.constant 0 : index
    %c0_70 = arith.constant 0 : index
    %c0_71 = arith.constant 0 : index
    %76 = vector.load %arg6[%c0_69, %c0_70, %c0_71] : memref<1x128x256xf32, #tpu.memory_space<vmem>>, vector<1x128x256xf32>
    %77 = vector.shape_cast %76 : vector<1x128x256xf32> to vector<128x256xf32>
    %cst_72 = arith.constant dense<0.000000e+00> : vector<128x256xf32>
    %78 = tpu.matmul %75, %77, %cst_72 {dimension_numbers = #tpu.dot_dimension_numbers<[1], [0], [0], [1], [0, 0, 1, 1], [], []>} : vector<128x128xf32>, vector<128x256xf32>, vector<128x256xf32> -> vector<128x256xf32>
    %c0_73 = arith.constant 0 : index
    %c0_74 = arith.constant 0 : index
    %79 = vector.load %arg7[%c0_73, %c0_74] : memref<128x256xf32, #tpu.memory_space<vmem>>, vector<128x256xf32>
    %80 = arith.addf %78, %79 : vector<128x256xf32>
    %c6 = arith.constant 6 : index
    %81 = memref.load %arg2[%c6] : memref<12xf32, #tpu.memory_space<smem>>
    %82 = vector.broadcast %81 : f32 to vector<128x256xf32>
    %83 = arith.subf %80, %82 : vector<128x256xf32>
    %cst_75 = arith.constant 0.000000e+00 : f32
    %84 = vector.broadcast %cst_75 : f32 to vector<128x256xf32>
    %85 = arith.maximumf %83, %84 : vector<128x256xf32>
    %c0_76 = arith.constant 0 : index
    %c0_77 = arith.constant 0 : index
    %86 = vector.load %arg8[%c0_76, %c0_77] : memref<128x256xf32, #tpu.memory_space<vmem>>, vector<128x256xf32>
    tpu.vector_store %arg8[%c0_76, %c0_77], %85 {strides = array<i32>} : memref<128x256xf32, #tpu.memory_space<vmem>>, vector<128x256xf32>,
    %c0_78 = arith.constant 0 : index
    %c0_79 = arith.constant 0 : index
    %87 = vector.load %arg5[%c0_78, %c0_79] : memref<128x128xf32, #tpu.memory_space<vmem>>, vector<128x128xf32>
    %c0_80 = arith.constant 0 : index
    %c0_81 = arith.constant 0 : index
    %88 = vector.load %arg8[%c0_80, %c0_81] : memref<128x256xf32, #tpu.memory_space<vmem>>, vector<128x256xf32>
    %cst_82 = arith.constant dense<0.000000e+00> : vector<128x256xf32>
    %89 = tpu.matmul %87, %88, %cst_82 {dimension_numbers = #tpu.dot_dimension_numbers<[1], [0], [0], [1], [0, 0, 1, 1], [], []>} : vector<128x128xf32>, vector<128x256xf32>, vector<128x256xf32> -> vector<128x256xf32>
    %c0_83 = arith.constant 0 : index
    %c0_84 = arith.constant 0 : index
    %90 = vector.load %arg7[%c0_83, %c0_84] : memref<128x256xf32, #tpu.memory_space<vmem>>, vector<128x256xf32>
    %91 = arith.addf %89, %90 : vector<128x256xf32>
    %c7 = arith.constant 7 : index
    %92 = memref.load %arg2[%c7] : memref<12xf32, #tpu.memory_space<smem>>
    %93 = vector.broadcast %92 : f32 to vector<128x256xf32>
    %94 = arith.subf %91, %93 : vector<128x256xf32>
    %cst_85 = arith.constant 0.000000e+00 : f32
    %95 = vector.broadcast %cst_85 : f32 to vector<128x256xf32>
    %96 = arith.maximumf %94, %95 : vector<128x256xf32>
    %c0_86 = arith.constant 0 : index
    %c0_87 = arith.constant 0 : index
    %c0_88 = arith.constant 0 : index
    %97 = vector.load %arg6[%c0_86, %c0_87, %c0_88] : memref<1x128x256xf32, #tpu.memory_space<vmem>>, vector<1x128x256xf32>
    %98 = vector.shape_cast %97 : vector<1x128x256xf32> to vector<128x256xf32>
    %99 = vector.shape_cast %96 : vector<128x256xf32> to vector<1x128x256xf32>
    tpu.vector_store %arg6[%c0_86, %c0_87, %c0_88], %99 {strides = array<i32>} : memref<1x128x256xf32, #tpu.memory_space<vmem>>, vector<1x128x256xf32>,
    %c0_89 = arith.constant 0 : index
    %c0_90 = arith.constant 0 : index
    %100 = vector.load %arg5[%c0_89, %c0_90] : memref<128x128xf32, #tpu.memory_space<vmem>>, vector<128x128xf32>
    %c0_91 = arith.constant 0 : index
    %c0_92 = arith.constant 0 : index
    %c0_93 = arith.constant 0 : index
    %101 = vector.load %arg6[%c0_91, %c0_92, %c0_93] : memref<1x128x256xf32, #tpu.memory_space<vmem>>, vector<1x128x256xf32>
    %102 = vector.shape_cast %101 : vector<1x128x256xf32> to vector<128x256xf32>
    %cst_94 = arith.constant dense<0.000000e+00> : vector<128x256xf32>
    %103 = tpu.matmul %100, %102, %cst_94 {dimension_numbers = #tpu.dot_dimension_numbers<[1], [0], [0], [1], [0, 0, 1, 1], [], []>} : vector<128x128xf32>, vector<128x256xf32>, vector<128x256xf32> -> vector<128x256xf32>
    %c0_95 = arith.constant 0 : index
    %c0_96 = arith.constant 0 : index
    %104 = vector.load %arg7[%c0_95, %c0_96] : memref<128x256xf32, #tpu.memory_space<vmem>>, vector<128x256xf32>
    %105 = arith.addf %103, %104 : vector<128x256xf32>
    %c8 = arith.constant 8 : index
    %106 = memref.load %arg2[%c8] : memref<12xf32, #tpu.memory_space<smem>>
    %107 = vector.broadcast %106 : f32 to vector<128x256xf32>
    %108 = arith.subf %105, %107 : vector<128x256xf32>
    %cst_97 = arith.constant 0.000000e+00 : f32
    %109 = vector.broadcast %cst_97 : f32 to vector<128x256xf32>
    %110 = arith.maximumf %108, %109 : vector<128x256xf32>
    %c0_98 = arith.constant 0 : index
    %c0_99 = arith.constant 0 : index
    %111 = vector.load %arg8[%c0_98, %c0_99] : memref<128x256xf32, #tpu.memory_space<vmem>>, vector<128x256xf32>
    tpu.vector_store %arg8[%c0_98, %c0_99], %110 {strides = array<i32>} : memref<128x256xf32, #tpu.memory_space<vmem>>, vector<128x256xf32>,
    %c0_100 = arith.constant 0 : index
    %c0_101 = arith.constant 0 : index
    %112 = vector.load %arg5[%c0_100, %c0_101] : memref<128x128xf32, #tpu.memory_space<vmem>>, vector<128x128xf32>
    %c0_102 = arith.constant 0 : index
    %c0_103 = arith.constant 0 : index
    %113 = vector.load %arg8[%c0_102, %c0_103] : memref<128x256xf32, #tpu.memory_space<vmem>>, vector<128x256xf32>
    %cst_104 = arith.constant dense<0.000000e+00> : vector<128x256xf32>
    %114 = tpu.matmul %112, %113, %cst_104 {dimension_numbers = #tpu.dot_dimension_numbers<[1], [0], [0], [1], [0, 0, 1, 1], [], []>} : vector<128x128xf32>, vector<128x256xf32>, vector<128x256xf32> -> vector<128x256xf32>
    %c0_105 = arith.constant 0 : index
    %c0_106 = arith.constant 0 : index
    %115 = vector.load %arg7[%c0_105, %c0_106] : memref<128x256xf32, #tpu.memory_space<vmem>>, vector<128x256xf32>
    %116 = arith.addf %114, %115 : vector<128x256xf32>
    %c9 = arith.constant 9 : index
    %117 = memref.load %arg2[%c9] : memref<12xf32, #tpu.memory_space<smem>>
    %118 = vector.broadcast %117 : f32 to vector<128x256xf32>
    %119 = arith.subf %116, %118 : vector<128x256xf32>
    %cst_107 = arith.constant 0.000000e+00 : f32
    %120 = vector.broadcast %cst_107 : f32 to vector<128x256xf32>
    %121 = arith.maximumf %119, %120 : vector<128x256xf32>
    %c0_108 = arith.constant 0 : index
    %c0_109 = arith.constant 0 : index
    %c0_110 = arith.constant 0 : index
    %122 = vector.load %arg6[%c0_108, %c0_109, %c0_110] : memref<1x128x256xf32, #tpu.memory_space<vmem>>, vector<1x128x256xf32>
    %123 = vector.shape_cast %122 : vector<1x128x256xf32> to vector<128x256xf32>
    %124 = vector.shape_cast %121 : vector<128x256xf32> to vector<1x128x256xf32>
    tpu.vector_store %arg6[%c0_108, %c0_109, %c0_110], %124 {strides = array<i32>} : memref<1x128x256xf32, #tpu.memory_space<vmem>>, vector<1x128x256xf32>,
    %c0_111 = arith.constant 0 : index
    %c0_112 = arith.constant 0 : index
    %125 = vector.load %arg5[%c0_111, %c0_112] : memref<128x128xf32, #tpu.memory_space<vmem>>, vector<128x128xf32>
    %c0_113 = arith.constant 0 : index
    %c0_114 = arith.constant 0 : index
    %c0_115 = arith.constant 0 : index
    %126 = vector.load %arg6[%c0_113, %c0_114, %c0_115] : memref<1x128x256xf32, #tpu.memory_space<vmem>>, vector<1x128x256xf32>
    %127 = vector.shape_cast %126 : vector<1x128x256xf32> to vector<128x256xf32>
    %cst_116 = arith.constant dense<0.000000e+00> : vector<128x256xf32>
    %128 = tpu.matmul %125, %127, %cst_116 {dimension_numbers = #tpu.dot_dimension_numbers<[1], [0], [0], [1], [0, 0, 1, 1], [], []>} : vector<128x128xf32>, vector<128x256xf32>, vector<128x256xf32> -> vector<128x256xf32>
    %c0_117 = arith.constant 0 : index
    %c0_118 = arith.constant 0 : index
    %129 = vector.load %arg7[%c0_117, %c0_118] : memref<128x256xf32, #tpu.memory_space<vmem>>, vector<128x256xf32>
    %130 = arith.addf %128, %129 : vector<128x256xf32>
    %c10 = arith.constant 10 : index
    %131 = memref.load %arg2[%c10] : memref<12xf32, #tpu.memory_space<smem>>
    %132 = vector.broadcast %131 : f32 to vector<128x256xf32>
    %133 = arith.subf %130, %132 : vector<128x256xf32>
    %cst_119 = arith.constant 0.000000e+00 : f32
    %134 = vector.broadcast %cst_119 : f32 to vector<128x256xf32>
    %135 = arith.maximumf %133, %134 : vector<128x256xf32>
    %c0_120 = arith.constant 0 : index
    %c0_121 = arith.constant 0 : index
    %136 = vector.load %arg8[%c0_120, %c0_121] : memref<128x256xf32, #tpu.memory_space<vmem>>, vector<128x256xf32>
    tpu.vector_store %arg8[%c0_120, %c0_121], %135 {strides = array<i32>} : memref<128x256xf32, #tpu.memory_space<vmem>>, vector<128x256xf32>,
    %c0_122 = arith.constant 0 : index
    %c0_123 = arith.constant 0 : index
    %137 = vector.load %arg5[%c0_122, %c0_123] : memref<128x128xf32, #tpu.memory_space<vmem>>, vector<128x128xf32>
    %c0_124 = arith.constant 0 : index
    %c0_125 = arith.constant 0 : index
    %138 = vector.load %arg8[%c0_124, %c0_125] : memref<128x256xf32, #tpu.memory_space<vmem>>, vector<128x256xf32>
    %cst_126 = arith.constant dense<0.000000e+00> : vector<128x256xf32>
    %139 = tpu.matmul %137, %138, %cst_126 {dimension_numbers = #tpu.dot_dimension_numbers<[1], [0], [0], [1], [0, 0, 1, 1], [], []>} : vector<128x128xf32>, vector<128x256xf32>, vector<128x256xf32> -> vector<128x256xf32>
    %c0_127 = arith.constant 0 : index
    %c0_128 = arith.constant 0 : index
    %140 = vector.load %arg7[%c0_127, %c0_128] : memref<128x256xf32, #tpu.memory_space<vmem>>, vector<128x256xf32>
    %141 = arith.addf %139, %140 : vector<128x256xf32>
    %c11 = arith.constant 11 : index
    %142 = memref.load %arg2[%c11] : memref<12xf32, #tpu.memory_space<smem>>
    %143 = vector.broadcast %142 : f32 to vector<128x256xf32>
    %144 = arith.subf %141, %143 : vector<128x256xf32>
    %cst_129 = arith.constant 0.000000e+00 : f32
    %145 = vector.broadcast %cst_129 : f32 to vector<128x256xf32>
    %146 = arith.maximumf %144, %145 : vector<128x256xf32>
    %c0_130 = arith.constant 0 : index
    %c0_131 = arith.constant 0 : index
    %c0_132 = arith.constant 0 : index
    %147 = vector.load %arg6[%c0_130, %c0_131, %c0_132] : memref<1x128x256xf32, #tpu.memory_space<vmem>>, vector<1x128x256xf32>
    %148 = vector.shape_cast %147 : vector<1x128x256xf32> to vector<128x256xf32>
    %149 = vector.shape_cast %146 : vector<128x256xf32> to vector<1x128x256xf32>
    tpu.vector_store %arg6[%c0_130, %c0_131, %c0_132], %149 {strides = array<i32>} : memref<1x128x256xf32, #tpu.memory_space<vmem>>, vector<1x128x256xf32>,
    return
  }
  func.func @transform_0(%arg0: i32, %arg1: i32) -> i32 {
    %c0_i32 = arith.constant 0 : i32
    %c0_i32_0 = arith.constant 0 : i32
    return %c0_i32 : i32
  }
  func.func @transform_1(%arg0: i32, %arg1: i32) -> (i32, i32, i32) {
    %c0_i32 = arith.constant 0 : i32
    %c0_i32_0 = arith.constant 0 : i32
    return %arg0, %c0_i32, %arg1 : i32, i32, i32
  }
  func.func @transform_2(%arg0: i32, %arg1: i32) -> (i32, i32) {
    %c0_i32 = arith.constant 0 : i32
    %c0_i32_0 = arith.constant 0 : i32
    %c0_i32_1 = arith.constant 0 : i32
    return %c0_i32, %c0_i32_0 : i32, i32
  }
  func.func @transform_3(%arg0: i32, %arg1: i32) -> (i32, i32) {
    %c0_i32 = arith.constant 0 : i32
    %c0_i32_0 = arith.constant 0 : i32
    %c0_i32_1 = arith.constant 0 : i32
    return %c0_i32, %c0_i32_0 : i32, i32
  }
  func.func @transform_4(%arg0: i32, %arg1: i32) -> (i32, i32, i32) {
    %c0_i32 = arith.constant 0 : i32
    %c0_i32_0 = arith.constant 0 : i32
    return %arg0, %c0_i32, %arg1 : i32, i32, i32
  }
}

</mosaic_0001>

<llo_original>
// kernel: tpu_custom_call.1
$region0: #{tpu_custom_call.1}
  #allocation0 [shape = 'u32[]', space=smem, size = 0x4, offset = 0x4, fixed_abs, tag = 'smem constant byte address 0x4 - core index']
  #allocation1 [shape = 'u32[72,128]{1,0:T(1,128)}', space=vmem, size = 0x9000, scoped, tag = 'internal scratch']
  #allocation2 [shape = 'f32[128,256]{1,0:T(8,128)}', space=vmem, size = 0x20000, scoped, tag = 'scratch operand']
  #allocation3 [shape = 'f32[128,256]{1,0:T(8,128)}', space=vmem, size = 0x20000, scoped, tag = 'scratch operand']
  %s0 = inlined_call_operand.vmem [shape: f32[12], index: 0, kind: input, shape index: {}]
  %s1 = inlined_call_operand.hbm [shape: f32[2,4,256], index: 1, kind: input, shape index: {}]
  %s2 = inlined_call_operand.vmem [shape: f32[128,4], index: 2, kind: input, shape index: {}]
  %s3 = inlined_call_operand.vmem [shape: f32[128,128], index: 3, kind: input, shape index: {}]
  %s4 = inlined_call_operand.hbm [shape: f32[2,128,256], index: 4, kind: output, shape index: {}]
  %s5 = sld [smem:[#allocation0]]
  $region57: #{tpu_custom_call.1} parent=0
    _
  %s7 = ssub.s32 1, %s5
  %s8 = scalar_select 0, %s7, %s5
  $region1: #{tpu_custom_call.1} parent=0
    #allocation4 [shape = 'u8[512]{0}', space=smem, size = 0x200, scoped, tag = 'input window, operand 0, single buffered']
    #allocation5 [shape = 's32[2]{0}', space=sflag, size = 0x8, scoped, tag = 'scoped memory for tpu_custom_call.1']
    #allocation6 [shape = 's32[2]{0}', space=sflag, size = 0x8, scoped, tag = 'scoped memory for tpu_custom_call.1']
    #allocation7 [shape = 's32[2]{0}', space=sflag, size = 0x8, scoped, tag = 'scoped memory for tpu_custom_call.1']
    #allocation8 [shape = 'u8[8192]{0}', space=vmem, size = 0x2000, scoped, tag = 'input window, operand 1']
    #allocation9 [shape = 'u8[262144]{0}', space=vmem, size = 0x40000, scoped, tag = 'output window, operand 0']
    %9 = vsyncpa [#allocation7], 0
    %10 = vsyncpa [#allocation5], 0
    %s11 = scalar_lea.sflag [#allocation5], 1
    %12 = vsyncpa %s11, 0
    %13 = vsyncpa [#allocation6], 0
    %s14 = scalar_lea.sflag [#allocation6], 1
    %15 = vsyncpa %s14, 0
    loop: start=0, step=1, limit=4
    $region2: #{tpu_custom_call.1} parent=1 // loop_pre_header
      _
    $region3: #{tpu_custom_call.1} parent=1 // loop_header
      %s17 = sphi 0, %s21
      %p18 = scmp.ge.s32.totalorder %s17, 4
      %s24 = sphi 0, %s36
      %s25 = sphi 0, %s32
      %s26 = sphi 0, %s24
      %s27 = sphi 0, %s25
      %s28 = sphi 0, %s26
      %s29 = sphi 0, %s27
      %s37 = sphi 0, %s37
      %s39 = sphi 0, %s37
      %s40 = sphi 0, %s39
      %s54 = sphi 0, %s40
      %s62 = sphi 0, %s64
      %s65 = sphi 0, %s62
      %s66 = sphi 0, %s65
      %s82 = sphi 0, %s66
      %s86 = sphi 0, %s86
      %s88 = sphi 0, %s86
      %s89 = sphi 0, %s88
      %s103 = sphi 0, %s89
      %s107 = sphi 0, %s107
      %s109 = sphi 0, %s107
      %s110 = sphi 0, %s109
      %s124 = sphi 0, %s110
      %s132 = sphi 0, %s134
      %s135 = sphi 0, %s132
      %s136 = sphi 0, %s135
      %s152 = sphi 0, %s136
    $region4: #{tpu_custom_call.1} parent=1 // loop_header_branch
      %20 = sbr.rel (%p18) target = $region8
    $region5: #{tpu_custom_call.1} parent=1 // loop_body
      %s22 = ssub.s32 %s17, 1
      %s23 = ssub.s32 %s17, 2
      %s30 = sadd.s32 1, %s25
      %p31 = scmp.ge.s32.totalorder %s30, 1
      %s32 = scalar_select %p31, 0, %s30
      %s33 = sadd.s32 1, %s24
      %s34 = scalar_select %p31, %s33, %s24
      %p35 = scmp.ge.s32.totalorder %s34, 2
      %s36 = scalar_select %p35, 0, %s34
      %s38 = sadd.s32 %s37, 1
      %p41 = scmp.eq.s32.totalorder %s17, 1
      %p42 = scmp.ne.s32.totalorder %s37, %s39
      %p43 = scmp.eq.s32.totalorder %s17, 0
      %p44 = por %p42, %p43
      %p45 = scmp.ne.s32.totalorder %s37, %s39
      %p46 = scmp.eq.s32.totalorder %s22, 1
      %p47 = por %p45, %p46
      %p48 = scmp.ne.s32.totalorder %s39, %s40
      %p49 = scmp.eq.s32.totalorder %s22, 0
      %p50 = por %p48, %p49
      %p51 = scmp.ne.s32.totalorder %s39, %s40
      %p52 = scmp.eq.s32.totalorder %s23, 1
      %p53 = por %p51, %p52
      %p55 = scmp.ne.s32.totalorder %s40, %s54
      %p56 = scmp.eq.s32.totalorder %s23, 0
      %p57 = por %p55, %p56
      %s58 = ssub.s32 %s24, %s36
      %s59 = ssub.s32 %s25, %s32
      %s60 = sor.u32 %s58, %s59
      %p61 = scmp.eq.s32.totalorder %s60, 0
      %s63 = sadd.s32 %s62, 1
      %s64 = scalar_select %p61, %s62, %s63
      %p67 = pneg %p61
      %p68 = scmp.eq.s32.totalorder %s17, 1
      %p69 = por %p67, %p68
      %p70 = scmp.ne.s32.totalorder %s62, %s65
      %p71 = scmp.eq.s32.totalorder %s17, 0
      %p72 = por %p70, %p71
      %p73 = scmp.ne.s32.totalorder %s62, %s65
      %p74 = scmp.eq.s32.totalorder %s22, 1
      %p75 = por %p73, %p74
      %p76 = scmp.ne.s32.totalorder %s65, %s66
      %p77 = scmp.eq.s32.totalorder %s22, 0
      %p78 = por %p76, %p77
      %p79 = scmp.ne.s32.totalorder %s65, %s66
      %p80 = scmp.eq.s32.totalorder %s23, 1
      %p81 = por %p79, %p80
      %p83 = scmp.ne.s32.totalorder %s66, %s82
      %p84 = scmp.eq.s32.totalorder %s23, 0
      %p85 = por %p83, %p84
      %s87 = sadd.s32 %s86, 1
      %p90 = scmp.eq.s32.totalorder %s17, 1
      %p91 = scmp.ne.s32.totalorder %s86, %s88
      %p92 = scmp.eq.s32.totalorder %s17, 0
      %p93 = por %p91, %p92
      %p94 = scmp.ne.s32.totalorder %s86, %s88
      %p95 = scmp.eq.s32.totalorder %s22, 1
      %p96 = por %p94, %p95
      %p97 = scmp.ne.s32.totalorder %s88, %s89
      %p98 = scmp.eq.s32.totalorder %s22, 0
      %p99 = por %p97, %p98
      %p100 = scmp.ne.s32.totalorder %s88, %s89
      %p101 = scmp.eq.s32.totalorder %s23, 1
      %p102 = por %p100, %p101
      %p104 = scmp.ne.s32.totalorder %s89, %s103
      %p105 = scmp.eq.s32.totalorder %s23, 0
      %p106 = por %p104, %p105
      %s108 = sadd.s32 %s107, 1
      %p111 = scmp.eq.s32.totalorder %s17, 1
      %p112 = scmp.ne.s32.totalorder %s107, %s109
      %p113 = scmp.eq.s32.totalorder %s17, 0
      %p114 = por %p112, %p113
      %p115 = scmp.ne.s32.totalorder %s107, %s109
      %p116 = scmp.eq.s32.totalorder %s22, 1
      %p117 = por %p115, %p116
      %p118 = scmp.ne.s32.totalorder %s109, %s110
      %p119 = scmp.eq.s32.totalorder %s22, 0
      %p120 = por %p118, %p119
      %p121 = scmp.ne.s32.totalorder %s109, %s110
      %p122 = scmp.eq.s32.totalorder %s23, 1
      %p123 = por %p121, %p122
      %p125 = scmp.ne.s32.totalorder %s110, %s124
      %p126 = scmp.eq.s32.totalorder %s23, 0
      %p127 = por %p125, %p126
      %s128 = ssub.s32 %s24, %s36
      %s129 = ssub.s32 %s25, %s32
      %s130 = sor.u32 %s128, %s129
      %p131 = scmp.eq.s32.totalorder %s130, 0
      %s133 = sadd.s32 %s132, 1
      %s134 = scalar_select %p131, %s132, %s133
      %p137 = pneg %p131
      %p138 = scmp.eq.s32.totalorder %s17, 1
      %p139 = por %p137, %p138
      %p140 = scmp.ne.s32.totalorder %s132, %s135
      %p141 = scmp.eq.s32.totalorder %s17, 0
      %p142 = por %p140, %p141
      %p143 = scmp.ne.s32.totalorder %s132, %s135
      %p144 = scmp.eq.s32.totalorder %s22, 1
      %p145 = por %p143, %p144
      %p146 = scmp.ne.s32.totalorder %s135, %s136
      %p147 = scmp.eq.s32.totalorder %s22, 0
      %p148 = por %p146, %p147
      %p149 = scmp.ne.s32.totalorder %s135, %s136
      %p150 = scmp.eq.s32.totalorder %s23, 1
      %p151 = por %p149, %p150
      %p153 = scmp.ne.s32.totalorder %s136, %s152
      %p154 = scmp.eq.s32.totalorder %s23, 0
      %p155 = por %p153, %p154
      %p156 = scmp.le.s32.totalorder 1, %s17
      %p157 = scmp.lt.s32.totalorder %s17, 3
      %p158 = pnand %p156, %p157
      %p159 = pneg %p158
      // Predicated region
      $region9: #{tpu_custom_call.1} parent=5 // pred_check
        _
      $region10: #{tpu_custom_call.1} parent=5 // pred_check_branch
        %161 = sbr.rel (%p158) target = $region12
      $region11: #{tpu_custom_call.1} parent=5 // pred_region
        %s162 = ssub.s32 %s17, 1
        // Predicated region
        $region13: #{tpu_custom_call.1} parent=11 // pred_check
          %p163 = pneg %p50
        $region14: #{tpu_custom_call.1} parent=11 // pred_check_branch
          %165 = sbr.rel (%p163) target = $region16
        $region15: #{tpu_custom_call.1} parent=11 // pred_region
          %167 = vsyncadd [#allocation7], 0
          %s169 = sshll.u32 %s0, 4
          %s170 = int_to_ptr.vmem [resolvable:$true] %s169
          %172 = dma.vmem_to_smem %s170, 16, [#allocation4], [#allocation7]
        $region16: #{tpu_custom_call.1} parent=11 // pred_fallthru
          _
        // Predicated region
        $region17: #{tpu_custom_call.1} parent=11 // pred_check
          %p173 = pneg %p99
        $region18: #{tpu_custom_call.1} parent=11 // pred_check_branch
          %175 = sbr.rel (%p173) target = $region20
        $region19: #{tpu_custom_call.1} parent=11 // pred_region
          _
        $region20: #{tpu_custom_call.1} parent=11 // pred_fallthru
          _
        // Predicated region
        $region21: #{tpu_custom_call.1} parent=11 // pred_check
          %p176 = pneg %p120
        $region22: #{tpu_custom_call.1} parent=11 // pred_check_branch
          %178 = sbr.rel (%p176) target = $region24
        $region23: #{tpu_custom_call.1} parent=11 // pred_region
          _
        $region24: #{tpu_custom_call.1} parent=11 // pred_fallthru
          _
      $region12: #{tpu_custom_call.1} parent=5 // pred_fallthru
        _
      %p179 = scmp.lt.s32.totalorder %s17, 2
      // Predicated region
      $region25: #{tpu_custom_call.1} parent=5 // pred_check
        %p180 = pneg %p179
      $region26: #{tpu_custom_call.1} parent=5 // pred_check_branch
        %182 = sbr.rel (%p180) target = $region28
      $region27: #{tpu_custom_call.1} parent=5 // pred_region
        // Predicated region
        $region29: #{tpu_custom_call.1} parent=27 // pred_check
          %p183 = pneg %p72
        $region30: #{tpu_custom_call.1} parent=27 // pred_check_branch
          %185 = sbr.rel (%p183) target = $region32
        $region31: #{tpu_custom_call.1} parent=27 // pred_region
          %s186 = sand.u32 %s62, 1
          %s187 = scalar_lea.sflag [#allocation5], %s186
          %s188 = sand.u32 %s62, 1
          %s189 = smul.addr %s188, 8
          %s190 = scalar_lea.vmem [#allocation8], %s189
          %s191 = smul.u32 2, %s25
          %193 = vsyncadd %s187, 0
          %s194 = smul.addr %s24, 2
          %s195 = sadd.s32 %s191, %s194
          %s196 = smul.addr %s195, 4
          %s197 = scalar_lea.hbm %s1, %s196
          %s199 = sshll.u32 %s197, 4
          %s200 = int_to_ptr.hbm [resolvable:$true] %s199
          %s201 = sshll.u32 %s190, 4
          %s202 = int_to_ptr.vmem [resolvable:$true] %s201
          %204 = dma.hbm_to_vmem [thread:$0]  %s200, 128, %s202, %s187
        $region32: #{tpu_custom_call.1} parent=27 // pred_fallthru
          _
      $region28: #{tpu_custom_call.1} parent=5 // pred_fallthru
        _
      %p205 = scmp.le.s32.totalorder 1, %s17
      %p206 = scmp.lt.s32.totalorder %s17, 3
      %p207 = pnand %p205, %p206
      %p208 = pneg %p207
      // Predicated region
      $region33: #{tpu_custom_call.1} parent=5 // pred_check
        _
      $region34: #{tpu_custom_call.1} parent=5 // pred_check_branch
        %210 = sbr.rel (%p207) target = $region36
      $region35: #{tpu_custom_call.1} parent=5 // pred_region
        %s211 = ssub.s32 %s17, 1
        // Predicated region
        $region37: #{tpu_custom_call.1} parent=35 // pred_check
          %p212 = pneg %p50
        $region38: #{tpu_custom_call.1} parent=35 // pred_check_branch
          %214 = sbr.rel (%p212) target = $region40
        $region39: #{tpu_custom_call.1} parent=35 // pred_region
          %216 = dma.done [#allocation7], 16
        $region40: #{tpu_custom_call.1} parent=35 // pred_fallthru
          _
        %s217 = sand.u32 %s65, 1
        %s218 = scalar_lea.sflag [#allocation5], %s217
        %s219 = sand.u32 %s65, 1
        %s220 = smul.addr %s219, 8
        %s221 = scalar_lea.vmem [#allocation8], %s220
        // Predicated region
        $region41: #{tpu_custom_call.1} parent=35 // pred_check
          %p222 = pneg %p78
        $region42: #{tpu_custom_call.1} parent=35 // pred_check_branch
          %224 = sbr.rel (%p222) target = $region44
        $region43: #{tpu_custom_call.1} parent=35 // pred_region
          %226 = dma.done %s218, 128
        $region44: #{tpu_custom_call.1} parent=35 // pred_fallthru
          _
        %227 = sfence
        %p228 = pneg %p50
        %p229 = pneg %p47
        %s230 = sand.u32 %s65, 1
        %s231 = scalar_lea.sflag [#allocation5], %s230
        %s232 = sand.u32 %s65, 1
        %s233 = smul.addr %s232, 8
        %s234 = scalar_lea.vmem [#allocation8], %s233
        %p235 = pneg %p78
        %p236 = pneg %p75
        %p237 = pneg %p99
        %p238 = pneg %p96
        %p239 = pneg %p120
        %p240 = pneg %p117
        %p241 = pneg %p148
        %p242 = pneg %p145
        %s243 = sand.u32 %s135, 1
        %s244 = scalar_lea.sflag [#allocation6], %s243
        %s245 = sand.u32 %s135, 1
        %s246 = smul.addr %s245, 256
        %s247 = scalar_lea.vmem [#allocation9], %s246
        %s248 = smul.u32 2, %s27
        %s249 = smul.u32 2, %s27
        %v250 = vld [vmem:[%s2] sm:$0xff]
        %v251 = vld [vmem:[%s2 + $0x8] sm:$0xff]
        %v252 = vld [vmem:[%s2 + $0x10] sm:$0xff]
        %v253 = vld [vmem:[%s2 + $0x18] sm:$0xff]
        %v254 = vld [vmem:[%s2 + $0x20] sm:$0xff]
        %v255 = vld [vmem:[%s2 + $0x28] sm:$0xff]
        %v256 = vld [vmem:[%s2 + $0x30] sm:$0xff]
        %v257 = vld [vmem:[%s2 + $0x38] sm:$0xff]
        %v258 = vld [vmem:[%s2 + $0x40] sm:$0xff]
        %v259 = vld [vmem:[%s2 + $0x48] sm:$0xff]
        %v260 = vld [vmem:[%s2 + $0x50] sm:$0xff]
        %v261 = vld [vmem:[%s2 + $0x58] sm:$0xff]
        %v262 = vld [vmem:[%s2 + $0x60] sm:$0xff]
        %v263 = vld [vmem:[%s2 + $0x68] sm:$0xff]
        %v264 = vld [vmem:[%s2 + $0x70] sm:$0xff]
        %v265 = vld [vmem:[%s2 + $0x78] sm:$0xff]
        %v266 = vld [vmem:[%s221] sm:$0xff]
        %268 = vst [vmem:[#allocation1] ss:$2 sm:$0xff] %v266
        %v269 = vld.sshfl [vmem:[#allocation1] sm:$0xff pattern:$0x75316420]
        %v270 = vld.sshfl [vmem:[#allocation1 + $0x8] sm:$0xff pattern:$0x75316420]
        %vm271 = vcmask 31744
        %v273 = vsel %vm271, %v250, 0
        %v276 = vsel %vm271, %v251, 0
        %v279 = vsel %vm271, %v252, 0
        %v282 = vsel %vm271, %v253, 0
        %v285 = vsel %vm271, %v254, 0
        %v288 = vsel %vm271, %v255, 0
        %v291 = vsel %vm271, %v256, 0
        %v294 = vsel %vm271, %v257, 0
        %v297 = vsel %vm271, %v258, 0
        %v300 = vsel %vm271, %v259, 0
        %v303 = vsel %vm271, %v260, 0
        %v306 = vsel %vm271, %v261, 0
        %v309 = vsel %vm271, %v262, 0
        %v312 = vsel %vm271, %v263, 0
        %v315 = vsel %vm271, %v264, 0
        %v318 = vsel %vm271, %v265, 0
        %vm320 = vcmask 1043456
        %v321 = vsel %vm320, %v269, 0
        %v323 = vsel %vm320, %v270, 0
        %325 = vmatpush.msra.mxu0 0.0
        %326 = vmatpush.msra.mxu0 0.0
        %327 = vmatpush.msra.mxu0 0.0
        %328 = vmatpush.msra.mxu0 0.0
        %329 = vmatpush.msra.mxu0 0.0
        %330 = vmatpush.msra.mxu0 0.0
        %331 = vmatpush.msra.mxu0 0.0
        %332 = vmatpush.msra.mxu0 0.0
        %333 = vmatpush.msra.mxu0 0.0
        %334 = vmatpush.msra.mxu0 0.0
        %335 = vmatpush.msra.mxu0 0.0
        %336 = vmatpush.msra.mxu0 0.0
        %337 = vmatpush.msra.mxu0 0.0
        %338 = vmatpush.msra.mxu0 0.0
        %339 = vmatpush.msra.mxu0 0.0
        %340 = vmatpush.msra.mxu0 %v321
        %341 = vmatmul.f32.gmra.mxu0 %v273
        %v342 = vpop.f32.mrf.mxu0
        %v343 = vadd.f32 0.0, %v342
        %344 = vmatmul.f32.gmra.mxu0 %v276
        %v345 = vpop.f32.mrf.mxu0
        %v346 = vadd.f32 0.0, %v345
        %347 = vmatmul.f32.gmra.mxu0 %v279
        %v348 = vpop.f32.mrf.mxu0
        %v349 = vadd.f32 0.0, %v348
        %350 = vmatmul.f32.gmra.mxu0 %v282
        %v351 = vpop.f32.mrf.mxu0
        %v352 = vadd.f32 0.0, %v351
        %353 = vmatmul.f32.gmra.mxu0 %v285
        %v354 = vpop.f32.mrf.mxu0
        %v355 = vadd.f32 0.0, %v354
        %356 = vmatmul.f32.gmra.mxu0 %v288
        %v357 = vpop.f32.mrf.mxu0
        %v358 = vadd.f32 0.0, %v357
        %359 = vmatmul.f32.gmra.mxu0 %v291
        %v360 = vpop.f32.mrf.mxu0
        %v361 = vadd.f32 0.0, %v360
        %362 = vmatmul.f32.gmra.mxu0 %v294
        %v363 = vpop.f32.mrf.mxu0
        %v364 = vadd.f32 0.0, %v363
        %365 = vmatmul.f32.gmra.mxu0 %v297
        %v366 = vpop.f32.mrf.mxu0
        %v367 = vadd.f32 0.0, %v366
        %368 = vmatmul.f32.gmra.mxu0 %v300
        %v369 = vpop.f32.mrf.mxu0
        %v370 = vadd.f32 0.0, %v369
        %371 = vmatmul.f32.gmra.mxu0 %v303
        %v372 = vpop.f32.mrf.mxu0
        %v373 = vadd.f32 0.0, %v372
        %374 = vmatmul.f32.gmra.mxu0 %v306
        %v375 = vpop.f32.mrf.mxu0
        %v376 = vadd.f32 0.0, %v375
        %377 = vmatmul.f32.gmra.mxu0 %v309
        %v378 = vpop.f32.mrf.mxu0
        %v379 = vadd.f32 0.0, %v378
        %380 = vmatmul.f32.gmra.mxu0 %v312
        %v381 = vpop.f32.mrf.mxu0
        %v382 = vadd.f32 0.0, %v381
        %383 = vmatmul.f32.gmra.mxu0 %v315
        %v384 = vpop.f32.mrf.mxu0
        %v385 = vadd.f32 0.0, %v384
        %386 = vmatmul.f32.gmra.mxu0 %v318
        %v387 = vpop.f32.mrf.mxu0
        %v388 = vadd.f32 0.0, %v387
        %389 = vdwg.mxu0
        %390 = vmatpush.msra.mxu0 0.0
        %391 = vmatpush.msra.mxu0 0.0
        %392 = vmatpush.msra.mxu0 0.0
        %393 = vmatpush.msra.mxu0 0.0
        %394 = vmatpush.msra.mxu0 0.0
        %395 = vmatpush.msra.mxu0 0.0
        %396 = vmatpush.msra.mxu0 0.0
        %397 = vmatpush.msra.mxu0 0.0
        %398 = vmatpush.msra.mxu0 0.0
        %399 = vmatpush.msra.mxu0 0.0
        %400 = vmatpush.msra.mxu0 0.0
        %401 = vmatpush.msra.mxu0 0.0
        %402 = vmatpush.msra.mxu0 0.0
        %403 = vmatpush.msra.mxu0 0.0
        %404 = vmatpush.msra.mxu0 0.0
        %405 = vmatpush.msra.mxu0 %v323
        %406 = vmatmul.f32.gmra.mxu0 %v273
        %v407 = vpop.f32.mrf.mxu0
        %v408 = vadd.f32 0.0, %v407
        %409 = vmatmul.f32.gmra.mxu0 %v276
        %v410 = vpop.f32.mrf.mxu0
        %v411 = vadd.f32 0.0, %v410
        %412 = vmatmul.f32.gmra.mxu0 %v279
        %v413 = vpop.f32.mrf.mxu0
        %v414 = vadd.f32 0.0, %v413
        %415 = vmatmul.f32.gmra.mxu0 %v282
        %v416 = vpop.f32.mrf.mxu0
        %v417 = vadd.f32 0.0, %v416
        %418 = vmatmul.f32.gmra.mxu0 %v285
        %v419 = vpop.f32.mrf.mxu0
        %v420 = vadd.f32 0.0, %v419
        %421 = vmatmul.f32.gmra.mxu0 %v288
        %v422 = vpop.f32.mrf.mxu0
        %v423 = vadd.f32 0.0, %v422
        %424 = vmatmul.f32.gmra.mxu0 %v291
        %v425 = vpop.f32.mrf.mxu0
        %v426 = vadd.f32 0.0, %v425
        %427 = vmatmul.f32.gmra.mxu0 %v294
        %v428 = vpop.f32.mrf.mxu0
        %v429 = vadd.f32 0.0, %v428
        %430 = vmatmul.f32.gmra.mxu0 %v297
        %v431 = vpop.f32.mrf.mxu0
        %v432 = vadd.f32 0.0, %v431
        %433 = vmatmul.f32.gmra.mxu0 %v300
        %v434 = vpop.f32.mrf.mxu0
        %v435 = vadd.f32 0.0, %v434
        %436 = vmatmul.f32.gmra.mxu0 %v303
        %v437 = vpop.f32.mrf.mxu0
        %v438 = vadd.f32 0.0, %v437
        %439 = vmatmul.f32.gmra.mxu0 %v306
        %v440 = vpop.f32.mrf.mxu0
        %v441 = vadd.f32 0.0, %v440
        %442 = vmatmul.f32.gmra.mxu0 %v309
        %v443 = vpop.f32.mrf.mxu0
        %v444 = vadd.f32 0.0, %v443
        %445 = vmatmul.f32.gmra.mxu0 %v312
        %v446 = vpop.f32.mrf.mxu0
        %v447 = vadd.f32 0.0, %v446
        %448 = vmatmul.f32.gmra.mxu0 %v315
        %v449 = vpop.f32.mrf.mxu0
        %v450 = vadd.f32 0.0, %v449
        %451 = vmatmul.f32.gmra.mxu0 %v318
        %v452 = vpop.f32.mrf.mxu0
        %v453 = vadd.f32 0.0, %v452
        %454 = vdwg.mxu0
        %455 = vst [vmem:[#allocation2] sm:$0xff] %v343
        %456 = vst [vmem:[#allocation2 + $0x8] sm:$0xff] %v408
        %457 = vst [vmem:[#allocation2 + $0x10] sm:$0xff] %v346
        %458 = vst [vmem:[#allocation2 + $0x18] sm:$0xff] %v411
        %459 = vst [vmem:[#allocation2 + $0x20] sm:$0xff] %v349
        %460 = vst [vmem:[#allocation2 + $0x28] sm:$0xff] %v414
        %461 = vst [vmem:[#allocation2 + $0x30] sm:$0xff] %v352
        %462 = vst [vmem:[#allocation2 + $0x38] sm:$0xff] %v417
        %463 = vst [vmem:[#allocation2 + $0x40] sm:$0xff] %v355
        %464 = vst [vmem:[#allocation2 + $0x48] sm:$0xff] %v420
        %465 = vst [vmem:[#allocation2 + $0x50] sm:$0xff] %v358
        %466 = vst [vmem:[#allocation2 + $0x58] sm:$0xff] %v423
        %467 = vst [vmem:[#allocation2 + $0x60] sm:$0xff] %v361
        %468 = vst [vmem:[#allocation2 + $0x68] sm:$0xff] %v426
        %469 = vst [vmem:[#allocation2 + $0x70] sm:$0xff] %v364
        %470 = vst [vmem:[#allocation2 + $0x78] sm:$0xff] %v429
        %471 = vst [vmem:[#allocation2 + $0x80] sm:$0xff] %v367
        %472 = vst [vmem:[#allocation2 + $0x88] sm:$0xff] %v432
        %473 = vst [vmem:[#allocation2 + $0x90] sm:$0xff] %v370
        %474 = vst [vmem:[#allocation2 + $0x98] sm:$0xff] %v435
        %475 = vst [vmem:[#allocation2 + $0xa0] sm:$0xff] %v373
        %476 = vst [vmem:[#allocation2 + $0xa8] sm:$0xff] %v438
        %477 = vst [vmem:[#allocation2 + $0xb0] sm:$0xff] %v376
        %478 = vst [vmem:[#allocation2 + $0xb8] sm:$0xff] %v441
        %479 = vst [vmem:[#allocation2 + $0xc0] sm:$0xff] %v379
        %480 = vst [vmem:[#allocation2 + $0xc8] sm:$0xff] %v444
        %481 = vst [vmem:[#allocation2 + $0xd0] sm:$0xff] %v382
        %482 = vst [vmem:[#allocation2 + $0xd8] sm:$0xff] %v447
        %483 = vst [vmem:[#allocation2 + $0xe0] sm:$0xff] %v385
        %484 = vst [vmem:[#allocation2 + $0xe8] sm:$0xff] %v450
        %485 = vst [vmem:[#allocation2 + $0xf0] sm:$0xff] %v388
        %486 = vst [vmem:[#allocation2 + $0xf8] sm:$0xff] %v453
        %v487 = vld [vmem:[#allocation2] sm:$0xff]
        %v488 = vld [vmem:[#allocation2 + $0x8] sm:$0xff]
        %v489 = vld [vmem:[#allocation2 + $0x10] sm:$0xff]
        %v490 = vld [vmem:[#allocation2 + $0x18] sm:$0xff]
        %v491 = vld [vmem:[#allocation2 + $0x20] sm:$0xff]
        %v492 = vld [vmem:[#allocation2 + $0x28] sm:$0xff]
        %v493 = vld [vmem:[#allocation2 + $0x30] sm:$0xff]
        %v494 = vld [vmem:[#allocation2 + $0x38] sm:$0xff]
        %v495 = vld [vmem:[#allocation2 + $0x40] sm:$0xff]
        %v496 = vld [vmem:[#allocation2 + $0x48] sm:$0xff]
        %v497 = vld [vmem:[#allocation2 + $0x50] sm:$0xff]
        %v498 = vld [vmem:[#allocation2 + $0x58] sm:$0xff]
        %v499 = vld [vmem:[#allocation2 + $0x60] sm:$0xff]
        %v500 = vld [vmem:[#allocation2 + $0x68] sm:$0xff]
        %v501 = vld [vmem:[#allocation2 + $0x70] sm:$0xff]
        %v502 = vld [vmem:[#allocation2 + $0x78] sm:$0xff]
        %v503 = vld [vmem:[#allocation2 + $0x80] sm:$0xff]
        %v504 = vld [vmem:[#allocation2 + $0x88] sm:$0xff]
        %v505 = vld [vmem:[#allocation2 + $0x90] sm:$0xff]
        %v506 = vld [vmem:[#allocation2 + $0x98] sm:$0xff]
        %v507 = vld [vmem:[#allocation2 + $0xa0] sm:$0xff]
        %v508 = vld [vmem:[#allocation2 + $0xa8] sm:$0xff]
        %v509 = vld [vmem:[#allocation2 + $0xb0] sm:$0xff]
        %v510 = vld [vmem:[#allocation2 + $0xb8] sm:$0xff]
        %v511 = vld [vmem:[#allocation2 + $0xc0] sm:$0xff]
        %v512 = vld [vmem:[#allocation2 + $0xc8] sm:$0xff]
        %v513 = vld [vmem:[#allocation2 + $0xd0] sm:$0xff]
        %v514 = vld [vmem:[#allocation2 + $0xd8] sm:$0xff]
        %v515 = vld [vmem:[#allocation2 + $0xe0] sm:$0xff]
        %v516 = vld [vmem:[#allocation2 + $0xe8] sm:$0xff]
        %v517 = vld [vmem:[#allocation2 + $0xf0] sm:$0xff]
        %v518 = vld [vmem:[#allocation2 + $0xf8] sm:$0xff]
        %s519 = sld [smem:[#allocation4]]
        %v520 = vstv %s519
        %v521 = vsub.f32 %v487, %v520
        %v522 = vsub.f32 %v488, %v520
        %v523 = vsub.f32 %v489, %v520
        %v524 = vsub.f32 %v490, %v520
        %v525 = vsub.f32 %v491, %v520
        %v526 = vsub.f32 %v492, %v520
        %v527 = vsub.f32 %v493, %v520
        %v528 = vsub.f32 %v494, %v520
        %v529 = vsub.f32 %v495, %v520
        %v530 = vsub.f32 %v496, %v520
        %v531 = vsub.f32 %v497, %v520
        %v532 = vsub.f32 %v498, %v520
        %v533 = vsub.f32 %v499, %v520
        %v534 = vsub.f32 %v500, %v520
        %v535 = vsub.f32 %v501, %v520
        %v536 = vsub.f32 %v502, %v520
        %v537 = vsub.f32 %v503, %v520
        %v538 = vsub.f32 %v504, %v520
        %v539 = vsub.f32 %v505, %v520
        %v540 = vsub.f32 %v506, %v520
        %v541 = vsub.f32 %v507, %v520
        %v542 = vsub.f32 %v508, %v520
        %v543 = vsub.f32 %v509, %v520
        %v544 = vsub.f32 %v510, %v520
        %v545 = vsub.f32 %v511, %v520
        %v546 = vsub.f32 %v512, %v520
        %v547 = vsub.f32 %v513, %v520
        %v548 = vsub.f32 %v514, %v520
        %v549 = vsub.f32 %v515, %v520
        %v550 = vsub.f32 %v516, %v520
        %v551 = vsub.f32 %v517, %v520
        %v552 = vsub.f32 %v518, %v520
        %v553 = vmax.f32 %v521, 0.0
        %v554 = vmax.f32 %v522, 0.0
        %v555 = vmax.f32 %v523, 0.0
        %v556 = vmax.f32 %v524, 0.0
        %v557 = vmax.f32 %v525, 0.0
        %v558 = vmax.f32 %v526, 0.0
        %v559 = vmax.f32 %v527, 0.0
        %v560 = vmax.f32 %v528, 0.0
        %v561 = vmax.f32 %v529, 0.0
        %v562 = vmax.f32 %v530, 0.0
        %v563 = vmax.f32 %v531, 0.0
        %v564 = vmax.f32 %v532, 0.0
        %v565 = vmax.f32 %v533, 0.0
        %v566 = vmax.f32 %v534, 0.0
        %v567 = vmax.f32 %v535, 0.0
        %v568 = vmax.f32 %v536, 0.0
        %v569 = vmax.f32 %v537, 0.0
        %v570 = vmax.f32 %v538, 0.0
        %v571 = vmax.f32 %v539, 0.0
        %v572 = vmax.f32 %v540, 0.0
        %v573 = vmax.f32 %v541, 0.0
        %v574 = vmax.f32 %v542, 0.0
        %v575 = vmax.f32 %v543, 0.0
        %v576 = vmax.f32 %v544, 0.0
        %v577 = vmax.f32 %v545, 0.0
        %v578 = vmax.f32 %v546, 0.0
        %v579 = vmax.f32 %v547, 0.0
        %v580 = vmax.f32 %v548, 0.0
        %v581 = vmax.f32 %v549, 0.0
        %v582 = vmax.f32 %v550, 0.0
        %v583 = vmax.f32 %v551, 0.0
        %v584 = vmax.f32 %v552, 0.0
        %585 = vst [vmem:[#allocation3] sm:$0xff] %v553
        %586 = vst [vmem:[#allocation3 + $0x8] sm:$0xff] %v554
        %587 = vst [vmem:[#allocation3 + $0x10] sm:$0xff] %v555
        %588 = vst [vmem:[#allocation3 + $0x18] sm:$0xff] %v556
        %589 = vst [vmem:[#allocation3 + $0x20] sm:$0xff] %v557
        %590 = vst [vmem:[#allocation3 + $0x28] sm:$0xff] %v558
        %591 = vst [vmem:[#allocation3 + $0x30] sm:$0xff] %v559
        %592 = vst [vmem:[#allocation3 + $0x38] sm:$0xff] %v560
        %593 = vst [vmem:[#allocation3 + $0x40] sm:$0xff] %v561
        %594 = vst [vmem:[#allocation3 + $0x48] sm:$0xff] %v562
        %595 = vst [vmem:[#allocation3 + $0x50] sm:$0xff] %v563
        %596 = vst [vmem:[#allocation3 + $0x58] sm:$0xff] %v564
        %597 = vst [vmem:[#allocation3 + $0x60] sm:$0xff] %v565
        %598 = vst [vmem:[#allocation3 + $0x68] sm:$0xff] %v566
        %599 = vst [vmem:[#allocation3 + $0x70] sm:$0xff] %v567
        %600 = vst [vmem:[#allocation3 + $0x78] sm:$0xff] %v568
        %601 = vst [vmem:[#allocation3 + $0x80] sm:$0xff] %v569
        %602 = vst [vmem:[#allocation3 + $0x88] sm:$0xff] %v570
        %603 = vst [vmem:[#allocation3 + $0x90] sm:$0xff] %v571
        %604 = vst [vmem:[#allocation3 + $0x98] sm:$0xff] %v572
        %605 = vst [vmem:[#allocation3 + $0xa0] sm:$0xff] %v573
        %606 = vst [vmem:[#allocation3 + $0xa8] sm:$0xff] %v574
        %607 = vst [vmem:[#allocation3 + $0xb0] sm:$0xff] %v575
        %608 = vst [vmem:[#allocation3 + $0xb8] sm:$0xff] %v576
        %609 = vst [vmem:[#allocation3 + $0xc0] sm:$0xff] %v577
        %610 = vst [vmem:[#allocation3 + $0xc8] sm:$0xff] %v578
        %611 = vst [vmem:[#allocation3 + $0xd0] sm:$0xff] %v579
        %612 = vst [vmem:[#allocation3 + $0xd8] sm:$0xff] %v580
        %613 = vst [vmem:[#allocation3 + $0xe0] sm:$0xff] %v581
        %614 = vst [vmem:[#allocation3 + $0xe8] sm:$0xff] %v582
        %615 = vst [vmem:[#allocation3 + $0xf0] sm:$0xff] %v583
        %616 = vst [vmem:[#allocation3 + $0xf8] sm:$0xff] %v584
        %v617 = vld [vmem:[%s3] sm:$0xff]
        %v618 = vld [vmem:[%s3 + $0x8] sm:$0xff]
        %v619 = vld [vmem:[%s3 + $0x10] sm:$0xff]
        %v620 = vld [vmem:[%s3 + $0x18] sm:$0xff]
        %v621 = vld [vmem:[%s3 + $0x20] sm:$0xff]
        %v622 = vld [vmem:[%s3 + $0x28] sm:$0xff]
        %v623 = vld [vmem:[%s3 + $0x30] sm:$0xff]
        %v624 = vld [vmem:[%s3 + $0x38] sm:$0xff]
        %v625 = vld [vmem:[%s3 + $0x40] sm:$0xff]
        %v626 = vld [vmem:[%s3 + $0x48] sm:$0xff]
        %v627 = vld [vmem:[%s3 + $0x50] sm:$0xff]
        %v628 = vld [vmem:[%s3 + $0x58] sm:$0xff]
        %v629 = vld [vmem:[%s3 + $0x60] sm:$0xff]
        %v630 = vld [vmem:[%s3 + $0x68] sm:$0xff]
        %v631 = vld [vmem:[%s3 + $0x70] sm:$0xff]
        %v632 = vld [vmem:[%s3 + $0x78] sm:$0xff]
        %v633 = vld [vmem:[#allocation3] sm:$0xff]
        %v634 = vld [vmem:[#allocation3 + $0x8] sm:$0xff]
        %v635 = vld [vmem:[#allocation3 + $0x10] sm:$0xff]
        %v636 = vld [vmem:[#allocation3 + $0x18] sm:$0xff]
        %v637 = vld [vmem:[#allocation3 + $0x20] sm:$0xff]
        %v638 = vld [vmem:[#allocation3 + $0x28] sm:$0xff]
        %v639 = vld [vmem:[#allocation3 + $0x30] sm:$0xff]
        %v640 = vld [vmem:[#allocation3 + $0x38] sm:$0xff]
        %v641 = vld [vmem:[#allocation3 + $0x40] sm:$0xff]
        %v642 = vld [vmem:[#allocation3 + $0x48] sm:$0xff]
        %v643 = vld [vmem:[#allocation3 + $0x50] sm:$0xff]
        %v644 = vld [vmem:[#allocation3 + $0x58] sm:$0xff]
        %v645 = vld [vmem:[#allocation3 + $0x60] sm:$0xff]
        %v646 = vld [vmem:[#allocation3 + $0x68] sm:$0xff]
        %v647 = vld [vmem:[#allocation3 + $0x70] sm:$0xff]
        %v648 = vld [vmem:[#allocation3 + $0x78] sm:$0xff]
        %v649 = vld [vmem:[#allocation3 + $0x80] sm:$0xff]
        %v650 = vld [vmem:[#allocation3 + $0x88] sm:$0xff]
        %v651 = vld [vmem:[#allocation3 + $0x90] sm:$0xff]
        %v652 = vld [vmem:[#allocation3 + $0x98] sm:$0xff]
        %v653 = vld [vmem:[#allocation3 + $0xa0] sm:$0xff]
        %v654 = vld [vmem:[#allocation3 + $0xa8] sm:$0xff]
        %v655 = vld [vmem:[#allocation3 + $0xb0] sm:$0xff]
        %v656 = vld [vmem:[#allocation3 + $0xb8] sm:$0xff]
        %v657 = vld [vmem:[#allocation3 + $0xc0] sm:$0xff]
        %v658 = vld [vmem:[#allocation3 + $0xc8] sm:$0xff]
        %v659 = vld [vmem:[#allocation3 + $0xd0] sm:$0xff]
        %v660 = vld [vmem:[#allocation3 + $0xd8] sm:$0xff]
        %v661 = vld [vmem:[#allocation3 + $0xe0] sm:$0xff]
        %v662 = vld [vmem:[#allocation3 + $0xe8] sm:$0xff]
        %v663 = vld [vmem:[#allocation3 + $0xf0] sm:$0xff]
        %v664 = vld [vmem:[#allocation3 + $0xf8] sm:$0xff]
        %v665 = vld [vmem:[#allocation2] sm:$0xff]
        %v666 = vld [vmem:[#allocation2 + $0x8] sm:$0xff]
        %v667 = vld [vmem:[#allocation2 + $0x10] sm:$0xff]
        %v668 = vld [vmem:[#allocation2 + $0x18] sm:$0xff]
        %v669 = vld [vmem:[#allocation2 + $0x20] sm:$0xff]
        %v670 = vld [vmem:[#allocation2 + $0x28] sm:$0xff]
        %v671 = vld [vmem:[#allocation2 + $0x30] sm:$0xff]
        %v672 = vld [vmem:[#allocation2 + $0x38] sm:$0xff]
        %v673 = vld [vmem:[#allocation2 + $0x40] sm:$0xff]
        %v674 = vld [vmem:[#allocation2 + $0x48] sm:$0xff]
        %v675 = vld [vmem:[#allocation2 + $0x50] sm:$0xff]
        %v676 = vld [vmem:[#allocation2 + $0x58] sm:$0xff]
        %v677 = vld [vmem:[#allocation2 + $0x60] sm:$0xff]
        %v678 = vld [vmem:[#allocation2 + $0x68] sm:$0xff]
        %v679 = vld [vmem:[#allocation2 + $0x70] sm:$0xff]
        %v680 = vld [vmem:[#allocation2 + $0x78] sm:$0xff]
        %v681 = vld [vmem:[#allocation2 + $0x80] sm:$0xff]
        %v682 = vld [vmem:[#allocation2 + $0x88] sm:$0xff]
        %v683 = vld [vmem:[#allocation2 + $0x90] sm:$0xff]
        %v684 = vld [vmem:[#allocation2 + $0x98] sm:$0xff]
        %v685 = vld [vmem:[#allocation2 + $0xa0] sm:$0xff]
        %v686 = vld [vmem:[#allocation2 + $0xa8] sm:$0xff]
        %v687 = vld [vmem:[#allocation2 + $0xb0] sm:$0xff]
        %v688 = vld [vmem:[#allocation2 + $0xb8] sm:$0xff]
        %v689 = vld [vmem:[#allocation2 + $0xc0] sm:$0xff]
        %v690 = vld [vmem:[#allocation2 + $0xc8] sm:$0xff]
        %v691 = vld [vmem:[#allocation2 + $0xd0] sm:$0xff]
        %v692 = vld [vmem:[#allocation2 + $0xd8] sm:$0xff]
        %v693 = vld [vmem:[#allocation2 + $0xe0] sm:$0xff]
        %v694 = vld [vmem:[#allocation2 + $0xe8] sm:$0xff]
        %v695 = vld [vmem:[#allocation2 + $0xf0] sm:$0xff]
        %v696 = vld [vmem:[#allocation2 + $0xf8] sm:$0xff]
        %697 = vmatpush.msra.mxu0 %v663
        %698 = vmatpush.msra.mxu0 %v661
        %699 = vmatpush.msra.mxu0 %v659
        %700 = vmatpush.msra.mxu0 %v657
        %701 = vmatpush.msra.mxu0 %v655
        %702 = vmatpush.msra.mxu0 %v653
        %703 = vmatpush.msra.mxu0 %v651
        %704 = vmatpush.msra.mxu0 %v649
        %705 = vmatpush.msra.mxu0 %v647
        %706 = vmatpush.msra.mxu0 %v645
        %707 = vmatpush.msra.mxu0 %v643
        %708 = vmatpush.msra.mxu0 %v641
        %709 = vmatpush.msra.mxu0 %v639
        %710 = vmatpush.msra.mxu0 %v637
        %711 = vmatpush.msra.mxu0 %v635
        %712 = vmatpush.msra.mxu0 %v633
        %713 = vmatmul.f32.gmra.mxu0 %v617
        %v714 = vpop.f32.mrf.mxu0
        %v715 = vadd.f32 %v665, %v714
        %716 = vmatmul.f32.gmra.mxu0 %v618
        %v717 = vpop.f32.mrf.mxu0
        %v718 = vadd.f32 %v667, %v717
        %719 = vmatmul.f32.gmra.mxu0 %v619
        %v720 = vpop.f32.mrf.mxu0
        %v721 = vadd.f32 %v669, %v720
        %722 = vmatmul.f32.gmra.mxu0 %v620
        %v723 = vpop.f32.mrf.mxu0
        %v724 = vadd.f32 %v671, %v723
        %725 = vmatmul.f32.gmra.mxu0 %v621
        %v726 = vpop.f32.mrf.mxu0
        %v727 = vadd.f32 %v673, %v726
        %728 = vmatmul.f32.gmra.mxu0 %v622
        %v729 = vpop.f32.mrf.mxu0
        %v730 = vadd.f32 %v675, %v729
        %731 = vmatmul.f32.gmra.mxu0 %v623
        %v732 = vpop.f32.mrf.mxu0
        %v733 = vadd.f32 %v677, %v732
        %734 = vmatmul.f32.gmra.mxu0 %v624
        %v735 = vpop.f32.mrf.mxu0
        %v736 = vadd.f32 %v679, %v735
        %737 = vmatmul.f32.gmra.mxu0 %v625
        %v738 = vpop.f32.mrf.mxu0
        %v739 = vadd.f32 %v681, %v738
        %740 = vmatmul.f32.gmra.mxu0 %v626
        %v741 = vpop.f32.mrf.mxu0
        %v742 = vadd.f32 %v683, %v741
        %743 = vmatmul.f32.gmra.mxu0 %v627
        %v744 = vpop.f32.mrf.mxu0
        %v745 = vadd.f32 %v685, %v744
        %746 = vmatmul.f32.gmra.mxu0 %v628
        %v747 = vpop.f32.mrf.mxu0
        %v748 = vadd.f32 %v687, %v747
        %749 = vmatmul.f32.gmra.mxu0 %v629
        %v750 = vpop.f32.mrf.mxu0
        %v751 = vadd.f32 %v689, %v750
        %752 = vmatmul.f32.gmra.mxu0 %v630
        %v753 = vpop.f32.mrf.mxu0
        %v754 = vadd.f32 %v691, %v753
        %755 = vmatmul.f32.gmra.mxu0 %v631
        %v756 = vpop.f32.mrf.mxu0
        %v757 = vadd.f32 %v693, %v756
        %758 = vmatmul.f32.gmra.mxu0 %v632
        %v759 = vpop.f32.mrf.mxu0
        %v760 = vadd.f32 %v695, %v759
        %761 = vdwg.mxu0
        %762 = vmatpush.msra.mxu0 %v664
        %763 = vmatpush.msra.mxu0 %v662
        %764 = vmatpush.msra.mxu0 %v660
        %765 = vmatpush.msra.mxu0 %v658
        %766 = vmatpush.msra.mxu0 %v656
        %767 = vmatpush.msra.mxu0 %v654
        %768 = vmatpush.msra.mxu0 %v652
        %769 = vmatpush.msra.mxu0 %v650
        %770 = vmatpush.msra.mxu0 %v648
        %771 = vmatpush.msra.mxu0 %v646
        %772 = vmatpush.msra.mxu0 %v644
        %773 = vmatpush.msra.mxu0 %v642
        %774 = vmatpush.msra.mxu0 %v640
        %775 = vmatpush.msra.mxu0 %v638
        %776 = vmatpush.msra.mxu0 %v636
        %777 = vmatpush.msra.mxu0 %v634
        %778 = vmatmul.f32.gmra.mxu0 %v617
        %v779 = vpop.f32.mrf.mxu0
        %v780 = vadd.f32 %v666, %v779
        %781 = vmatmul.f32.gmra.mxu0 %v618
        %v782 = vpop.f32.mrf.mxu0
        %v783 = vadd.f32 %v668, %v782
        %784 = vmatmul.f32.gmra.mxu0 %v619
        %v785 = vpop.f32.mrf.mxu0
        %v786 = vadd.f32 %v670, %v785
        %787 = vmatmul.f32.gmra.mxu0 %v620
        %v788 = vpop.f32.mrf.mxu0
        %v789 = vadd.f32 %v672, %v788
        %790 = vmatmul.f32.gmra.mxu0 %v621
        %v791 = vpop.f32.mrf.mxu0
        %v792 = vadd.f32 %v674, %v791
        %793 = vmatmul.f32.gmra.mxu0 %v622
        %v794 = vpop.f32.mrf.mxu0
        %v795 = vadd.f32 %v676, %v794
        %796 = vmatmul.f32.gmra.mxu0 %v623
        %v797 = vpop.f32.mrf.mxu0
        %v798 = vadd.f32 %v678, %v797
        %799 = vmatmul.f32.gmra.mxu0 %v624
        %v800 = vpop.f32.mrf.mxu0
        %v801 = vadd.f32 %v680, %v800
        %802 = vmatmul.f32.gmra.mxu0 %v625
        %v803 = vpop.f32.mrf.mxu0
        %v804 = vadd.f32 %v682, %v803
        %805 = vmatmul.f32.gmra.mxu0 %v626
        %v806 = vpop.f32.mrf.mxu0
        %v807 = vadd.f32 %v684, %v806
        %808 = vmatmul.f32.gmra.mxu0 %v627
        %v809 = vpop.f32.mrf.mxu0
        %v810 = vadd.f32 %v686, %v809
        %811 = vmatmul.f32.gmra.mxu0 %v628
        %v812 = vpop.f32.mrf.mxu0
        %v813 = vadd.f32 %v688, %v812
        %814 = vmatmul.f32.gmra.mxu0 %v629
        %v815 = vpop.f32.mrf.mxu0
        %v816 = vadd.f32 %v690, %v815
        %817 = vmatmul.f32.gmra.mxu0 %v630
        %v818 = vpop.f32.mrf.mxu0
        %v819 = vadd.f32 %v692, %v818
        %820 = vmatmul.f32.gmra.mxu0 %v631
        %v821 = vpop.f32.mrf.mxu0
        %v822 = vadd.f32 %v694, %v821
        %823 = vmatmul.f32.gmra.mxu0 %v632
        %v824 = vpop.f32.mrf.mxu0
        %v825 = vadd.f32 %v696, %v824
        %826 = vdwg.mxu0
        %s827 = sld [smem:[#allocation4 + $0x1]]
        %v828 = vstv %s827
        %v829 = vsub.f32 %v715, %v828
        %v830 = vsub.f32 %v780, %v828
        %v831 = vsub.f32 %v718, %v828
        %v832 = vsub.f32 %v783, %v828
        %v833 = vsub.f32 %v721, %v828
        %v834 = vsub.f32 %v786, %v828
        %v835 = vsub.f32 %v724, %v828
        %v836 = vsub.f32 %v789, %v828
        %v837 = vsub.f32 %v727, %v828
        %v838 = vsub.f32 %v792, %v828
        %v839 = vsub.f32 %v730, %v828
        %v840 = vsub.f32 %v795, %v828
        %v841 = vsub.f32 %v733, %v828
        %v842 = vsub.f32 %v798, %v828
        %v843 = vsub.f32 %v736, %v828
        %v844 = vsub.f32 %v801, %v828
        %v845 = vsub.f32 %v739, %v828
        %v846 = vsub.f32 %v804, %v828
        %v847 = vsub.f32 %v742, %v828
        %v848 = vsub.f32 %v807, %v828
        %v849 = vsub.f32 %v745, %v828
        %v850 = vsub.f32 %v810, %v828
        %v851 = vsub.f32 %v748, %v828
        %v852 = vsub.f32 %v813, %v828
        %v853 = vsub.f32 %v751, %v828
        %v854 = vsub.f32 %v816, %v828
        %v855 = vsub.f32 %v754, %v828
        %v856 = vsub.f32 %v819, %v828
        %v857 = vsub.f32 %v757, %v828
        %v858 = vsub.f32 %v822, %v828
        %v859 = vsub.f32 %v760, %v828
        %v860 = vsub.f32 %v825, %v828
        %v861 = vmax.f32 %v829, 0.0
        %v862 = vmax.f32 %v830, 0.0
        %v863 = vmax.f32 %v831, 0.0
        %v864 = vmax.f32 %v832, 0.0
        %v865 = vmax.f32 %v833, 0.0
        %v866 = vmax.f32 %v834, 0.0
        %v867 = vmax.f32 %v835, 0.0
        %v868 = vmax.f32 %v836, 0.0
        %v869 = vmax.f32 %v837, 0.0
        %v870 = vmax.f32 %v838, 0.0
        %v871 = vmax.f32 %v839, 0.0
        %v872 = vmax.f32 %v840, 0.0
        %v873 = vmax.f32 %v841, 0.0
        %v874 = vmax.f32 %v842, 0.0
        %v875 = vmax.f32 %v843, 0.0
        %v876 = vmax.f32 %v844, 0.0
        %v877 = vmax.f32 %v845, 0.0
        %v878 = vmax.f32 %v846, 0.0
        %v879 = vmax.f32 %v847, 0.0
        %v880 = vmax.f32 %v848, 0.0
        %v881 = vmax.f32 %v849, 0.0
        %v882 = vmax.f32 %v850, 0.0
        %v883 = vmax.f32 %v851, 0.0
        %v884 = vmax.f32 %v852, 0.0
        %v885 = vmax.f32 %v853, 0.0
        %v886 = vmax.f32 %v854, 0.0
        %v887 = vmax.f32 %v855, 0.0
        %v888 = vmax.f32 %v856, 0.0
        %v889 = vmax.f32 %v857, 0.0
        %v890 = vmax.f32 %v858, 0.0
        %v891 = vmax.f32 %v859, 0.0
        %v892 = vmax.f32 %v860, 0.0
        %893 = vst [vmem:[%s247] sm:$0xff] %v861
        %894 = vst [vmem:[%s247 + $0x8] sm:$0xff] %v862
        %895 = vst [vmem:[%s247 + $0x10] sm:$0xff] %v863
        %896 = vst [vmem:[%s247 + $0x18] sm:$0xff] %v864
        %897 = vst [vmem:[%s247 + $0x20] sm:$0xff] %v865
        %898 = vst [vmem:[%s247 + $0x28] sm:$0xff] %v866
        %899 = vst [vmem:[%s247 + $0x30] sm:$0xff] %v867
        %900 = vst [vmem:[%s247 + $0x38] sm:$0xff] %v868
        %901 = vst [vmem:[%s247 + $0x40] sm:$0xff] %v869
        %902 = vst [vmem:[%s247 + $0x48] sm:$0xff] %v870
        %903 = vst [vmem:[%s247 + $0x50] sm:$0xff] %v871
        %904 = vst [vmem:[%s247 + $0x58] sm:$0xff] %v872
        %905 = vst [vmem:[%s247 + $0x60] sm:$0xff] %v873
        %906 = vst [vmem:[%s247 + $0x68] sm:$0xff] %v874
        %907 = vst [vmem:[%s247 + $0x70] sm:$0xff] %v875
        %908 = vst [vmem:[%s247 + $0x78] sm:$0xff] %v876
        %909 = vst [vmem:[%s247 + $0x80] sm:$0xff] %v877
        %910 = vst [vmem:[%s247 + $0x88] sm:$0xff] %v878
        %911 = vst [vmem:[%s247 + $0x90] sm:$0xff] %v879
        %912 = vst [vmem:[%s247 + $0x98] sm:$0xff] %v880
        %913 = vst [vmem:[%s247 + $0xa0] sm:$0xff] %v881
        %914 = vst [vmem:[%s247 + $0xa8] sm:$0xff] %v882
        %915 = vst [vmem:[%s247 + $0xb0] sm:$0xff] %v883
        %916 = vst [vmem:[%s247 + $0xb8] sm:$0xff] %v884
        %917 = vst [vmem:[%s247 + $0xc0] sm:$0xff] %v885
        %918 = vst [vmem:[%s247 + $0xc8] sm:$0xff] %v886
        %919 = vst [vmem:[%s247 + $0xd0] sm:$0xff] %v887
        %920 = vst [vmem:[%s247 + $0xd8] sm:$0xff] %v888
        %921 = vst [vmem:[%s247 + $0xe0] sm:$0xff] %v889
        %922 = vst [vmem:[%s247 + $0xe8] sm:$0xff] %v890
        %923 = vst [vmem:[%s247 + $0xf0] sm:$0xff] %v891
        %924 = vst [vmem:[%s247 + $0xf8] sm:$0xff] %v892
        %v925 = vld [vmem:[%s3] sm:$0xff]
        %v926 = vld [vmem:[%s3 + $0x8] sm:$0xff]
        %v927 = vld [vmem:[%s3 + $0x10] sm:$0xff]
        %v928 = vld [vmem:[%s3 + $0x18] sm:$0xff]
        %v929 = vld [vmem:[%s3 + $0x20] sm:$0xff]
        %v930 = vld [vmem:[%s3 + $0x28] sm:$0xff]
        %v931 = vld [vmem:[%s3 + $0x30] sm:$0xff]
        %v932 = vld [vmem:[%s3 + $0x38] sm:$0xff]
        %v933 = vld [vmem:[%s3 + $0x40] sm:$0xff]
        %v934 = vld [vmem:[%s3 + $0x48] sm:$0xff]
        %v935 = vld [vmem:[%s3 + $0x50] sm:$0xff]
        %v936 = vld [vmem:[%s3 + $0x58] sm:$0xff]
        %v937 = vld [vmem:[%s3 + $0x60] sm:$0xff]
        %v938 = vld [vmem:[%s3 + $0x68] sm:$0xff]
        %v939 = vld [vmem:[%s3 + $0x70] sm:$0xff]
        %v940 = vld [vmem:[%s3 + $0x78] sm:$0xff]
        %v941 = vld [vmem:[%s247] sm:$0xff]
        %v942 = vld [vmem:[%s247 + $0x8] sm:$0xff]
        %v943 = vld [vmem:[%s247 + $0x10] sm:$0xff]
        %v944 = vld [vmem:[%s247 + $0x18] sm:$0xff]
        %v945 = vld [vmem:[%s247 + $0x20] sm:$0xff]
        %v946 = vld [vmem:[%s247 + $0x28] sm:$0xff]
        %v947 = vld [vmem:[%s247 + $0x30] sm:$0xff]
        %v948 = vld [vmem:[%s247 + $0x38] sm:$0xff]
        %v949 = vld [vmem:[%s247 + $0x40] sm:$0xff]
        %v950 = vld [vmem:[%s247 + $0x48] sm:$0xff]
        %v951 = vld [vmem:[%s247 + $0x50] sm:$0xff]
        %v952 = vld [vmem:[%s247 + $0x58] sm:$0xff]
        %v953 = vld [vmem:[%s247 + $0x60] sm:$0xff]
        %v954 = vld [vmem:[%s247 + $0x68] sm:$0xff]
        %v955 = vld [vmem:[%s247 + $0x70] sm:$0xff]
        %v956 = vld [vmem:[%s247 + $0x78] sm:$0xff]
        %v957 = vld [vmem:[%s247 + $0x80] sm:$0xff]
        %v958 = vld [vmem:[%s247 + $0x88] sm:$0xff]
        %v959 = vld [vmem:[%s247 + $0x90] sm:$0xff]
        %v960 = vld [vmem:[%s247 + $0x98] sm:$0xff]
        %v961 = vld [vmem:[%s247 + $0xa0] sm:$0xff]
        %v962 = vld [vmem:[%s247 + $0xa8] sm:$0xff]
        %v963 = vld [vmem:[%s247 + $0xb0] sm:$0xff]
        %v964 = vld [vmem:[%s247 + $0xb8] sm:$0xff]
        %v965 = vld [vmem:[%s247 + $0xc0] sm:$0xff]
        %v966 = vld [vmem:[%s247 + $0xc8] sm:$0xff]
        %v967 = vld [vmem:[%s247 + $0xd0] sm:$0xff]
        %v968 = vld [vmem:[%s247 + $0xd8] sm:$0xff]
        %v969 = vld [vmem:[%s247 + $0xe0] sm:$0xff]
        %v970 = vld [vmem:[%s247 + $0xe8] sm:$0xff]
        %v971 = vld [vmem:[%s247 + $0xf0] sm:$0xff]
        %v972 = vld [vmem:[%s247 + $0xf8] sm:$0xff]
        %v973 = vld [vmem:[#allocation2] sm:$0xff]
        %v974 = vld [vmem:[#allocation2 + $0x8] sm:$0xff]
        %v975 = vld [vmem:[#allocation2 + $0x10] sm:$0xff]
        %v976 = vld [vmem:[#allocation2 + $0x18] sm:$0xff]
        %v977 = vld [vmem:[#allocation2 + $0x20] sm:$0xff]
        %v978 = vld [vmem:[#allocation2 + $0x28] sm:$0xff]
        %v979 = vld [vmem:[#allocation2 + $0x30] sm:$0xff]
        %v980 = vld [vmem:[#allocation2 + $0x38] sm:$0xff]
        %v981 = vld [vmem:[#allocation2 + $0x40] sm:$0xff]
        %v982 = vld [vmem:[#allocation2 + $0x48] sm:$0xff]
        %v983 = vld [vmem:[#allocation2 + $0x50] sm:$0xff]
        %v984 = vld [vmem:[#allocation2 + $0x58] sm:$0xff]
        %v985 = vld [vmem:[#allocation2 + $0x60] sm:$0xff]
        %v986 = vld [vmem:[#allocation2 + $0x68] sm:$0xff]
        %v987 = vld [vmem:[#allocation2 + $0x70] sm:$0xff]
        %v988 = vld [vmem:[#allocation2 + $0x78] sm:$0xff]
        %v989 = vld [vmem:[#allocation2 + $0x80] sm:$0xff]
        %v990 = vld [vmem:[#allocation2 + $0x88] sm:$0xff]
        %v991 = vld [vmem:[#allocation2 + $0x90] sm:$0xff]
        %v992 = vld [vmem:[#allocation2 + $0x98] sm:$0xff]
        %v993 = vld [vmem:[#allocation2 + $0xa0] sm:$0xff]
        %v994 = vld [vmem:[#allocation2 + $0xa8] sm:$0xff]
        %v995 = vld [vmem:[#allocation2 + $0xb0] sm:$0xff]
        %v996 = vld [vmem:[#allocation2 + $0xb8] sm:$0xff]
        %v997 = vld [vmem:[#allocation2 + $0xc0] sm:$0xff]
        %v998 = vld [vmem:[#allocation2 + $0xc8] sm:$0xff]
        %v999 = vld [vmem:[#allocation2 + $0xd0] sm:$0xff]
        %v1000 = vld [vmem:[#allocation2 + $0xd8] sm:$0xff]
        %v1001 = vld [vmem:[#allocation2 + $0xe0] sm:$0xff]
        %v1002 = vld [vmem:[#allocation2 + $0xe8] sm:$0xff]
        %v1003 = vld [vmem:[#allocation2 + $0xf0] sm:$0xff]
        %v1004 = vld [vmem:[#allocation2 + $0xf8] sm:$0xff]
        %1005 = vmatpush.msra.mxu0 %v971
        %1006 = vmatpush.msra.mxu0 %v969
        %1007 = vmatpush.msra.mxu0 %v967
        %1008 = vmatpush.msra.mxu0 %v965
        %1009 = vmatpush.msra.mxu0 %v963
        %1010 = vmatpush.msra.mxu0 %v961
        %1011 = vmatpush.msra.mxu0 %v959
        %1012 = vmatpush.msra.mxu0 %v957
        %1013 = vmatpush.msra.mxu0 %v955
        %1014 = vmatpush.msra.mxu0 %v953
        %1015 = vmatpush.msra.mxu0 %v951
        %1016 = vmatpush.msra.mxu0 %v949
        %1017 = vmatpush.msra.mxu0 %v947
        %1018 = vmatpush.msra.mxu0 %v945
        %1019 = vmatpush.msra.mxu0 %v943
        %1020 = vmatpush.msra.mxu0 %v941
        %1021 = vmatmul.f32.gmra.mxu0 %v925
        %v1022 = vpop.f32.mrf.mxu0
        %v1023 = vadd.f32 %v973, %v1022
        %1024 = vmatmul.f32.gmra.mxu0 %v926
        %v1025 = vpop.f32.mrf.mxu0
        %v1026 = vadd.f32 %v975, %v1025
        %1027 = vmatmul.f32.gmra.mxu0 %v927
        %v1028 = vpop.f32.mrf.mxu0
        %v1029 = vadd.f32 %v977, %v1028
        %1030 = vmatmul.f32.gmra.mxu0 %v928
        %v1031 = vpop.f32.mrf.mxu0
        %v1032 = vadd.f32 %v979, %v1031
        %1033 = vmatmul.f32.gmra.mxu0 %v929
        %v1034 = vpop.f32.mrf.mxu0
        %v1035 = vadd.f32 %v981, %v1034
        %1036 = vmatmul.f32.gmra.mxu0 %v930
        %v1037 = vpop.f32.mrf.mxu0
        %v1038 = vadd.f32 %v983, %v1037
        %1039 = vmatmul.f32.gmra.mxu0 %v931
        %v1040 = vpop.f32.mrf.mxu0
        %v1041 = vadd.f32 %v985, %v1040
        %1042 = vmatmul.f32.gmra.mxu0 %v932
        %v1043 = vpop.f32.mrf.mxu0
        %v1044 = vadd.f32 %v987, %v1043
        %1045 = vmatmul.f32.gmra.mxu0 %v933
        %v1046 = vpop.f32.mrf.mxu0
        %v1047 = vadd.f32 %v989, %v1046
        %1048 = vmatmul.f32.gmra.mxu0 %v934
        %v1049 = vpop.f32.mrf.mxu0
        %v1050 = vadd.f32 %v991, %v1049
        %1051 = vmatmul.f32.gmra.mxu0 %v935
        %v1052 = vpop.f32.mrf.mxu0
        %v1053 = vadd.f32 %v993, %v1052
        %1054 = vmatmul.f32.gmra.mxu0 %v936
        %v1055 = vpop.f32.mrf.mxu0
        %v1056 = vadd.f32 %v995, %v1055
        %1057 = vmatmul.f32.gmra.mxu0 %v937
        %v1058 = vpop.f32.mrf.mxu0
        %v1059 = vadd.f32 %v997, %v1058
        %1060 = vmatmul.f32.gmra.mxu0 %v938
        %v1061 = vpop.f32.mrf.mxu0
        %v1062 = vadd.f32 %v999, %v1061
        %1063 = vmatmul.f32.gmra.mxu0 %v939
        %v1064 = vpop.f32.mrf.mxu0
        %v1065 = vadd.f32 %v1001, %v1064
        %1066 = vmatmul.f32.gmra.mxu0 %v940
        %v1067 = vpop.f32.mrf.mxu0
        %v1068 = vadd.f32 %v1003, %v1067
        %1069 = vdwg.mxu0
        %1070 = vmatpush.msra.mxu0 %v972
        %1071 = vmatpush.msra.mxu0 %v970
        %1072 = vmatpush.msra.mxu0 %v968
        %1073 = vmatpush.msra.mxu0 %v966
        %1074 = vmatpush.msra.mxu0 %v964
        %1075 = vmatpush.msra.mxu0 %v962
        %1076 = vmatpush.msra.mxu0 %v960
        %1077 = vmatpush.msra.mxu0 %v958
        %1078 = vmatpush.msra.mxu0 %v956
        %1079 = vmatpush.msra.mxu0 %v954
        %1080 = vmatpush.msra.mxu0 %v952
        %1081 = vmatpush.msra.mxu0 %v950
        %1082 = vmatpush.msra.mxu0 %v948
        %1083 = vmatpush.msra.mxu0 %v946
        %1084 = vmatpush.msra.mxu0 %v944
        %1085 = vmatpush.msra.mxu0 %v942
        %1086 = vmatmul.f32.gmra.mxu0 %v925
        %v1087 = vpop.f32.mrf.mxu0
        %v1088 = vadd.f32 %v974, %v1087
        %1089 = vmatmul.f32.gmra.mxu0 %v926
        %v1090 = vpop.f32.mrf.mxu0
        %v1091 = vadd.f32 %v976, %v1090
        %1092 = vmatmul.f32.gmra.mxu0 %v927
        %v1093 = vpop.f32.mrf.mxu0
        %v1094 = vadd.f32 %v978, %v1093
        %1095 = vmatmul.f32.gmra.mxu0 %v928
        %v1096 = vpop.f32.mrf.mxu0
        %v1097 = vadd.f32 %v980, %v1096
        %1098 = vmatmul.f32.gmra.mxu0 %v929
        %v1099 = vpop.f32.mrf.mxu0
        %v1100 = vadd.f32 %v982, %v1099
        %1101 = vmatmul.f32.gmra.mxu0 %v930
        %v1102 = vpop.f32.mrf.mxu0
        %v1103 = vadd.f32 %v984, %v1102
        %1104 = vmatmul.f32.gmra.mxu0 %v931
        %v1105 = vpop.f32.mrf.mxu0
        %v1106 = vadd.f32 %v986, %v1105
        %1107 = vmatmul.f32.gmra.mxu0 %v932
        %v1108 = vpop.f32.mrf.mxu0
        %v1109 = vadd.f32 %v988, %v1108
        %1110 = vmatmul.f32.gmra.mxu0 %v933
        %v1111 = vpop.f32.mrf.mxu0
        %v1112 = vadd.f32 %v990, %v1111
        %1113 = vmatmul.f32.gmra.mxu0 %v934
        %v1114 = vpop.f32.mrf.mxu0
        %v1115 = vadd.f32 %v992, %v1114
        %1116 = vmatmul.f32.gmra.mxu0 %v935
        %v1117 = vpop.f32.mrf.mxu0
        %v1118 = vadd.f32 %v994, %v1117
        %1119 = vmatmul.f32.gmra.mxu0 %v936
        %v1120 = vpop.f32.mrf.mxu0
        %v1121 = vadd.f32 %v996, %v1120
        %1122 = vmatmul.f32.gmra.mxu0 %v937
        %v1123 = vpop.f32.mrf.mxu0
        %v1124 = vadd.f32 %v998, %v1123
        %1125 = vmatmul.f32.gmra.mxu0 %v938
        %v1126 = vpop.f32.mrf.mxu0
        %v1127 = vadd.f32 %v1000, %v1126
        %1128 = vmatmul.f32.gmra.mxu0 %v939
        %v1129 = vpop.f32.mrf.mxu0
        %v1130 = vadd.f32 %v1002, %v1129
        %1131 = vmatmul.f32.gmra.mxu0 %v940
        %v1132 = vpop.f32.mrf.mxu0
        %v1133 = vadd.f32 %v1004, %v1132
        %1134 = vdwg.mxu0
        %s1135 = sld [smem:[#allocation4 + $0x2]]
        %v1136 = vstv %s1135
        %v1137 = vsub.f32 %v1023, %v1136
        %v1138 = vsub.f32 %v1088, %v1136
        %v1139 = vsub.f32 %v1026, %v1136
        %v1140 = vsub.f32 %v1091, %v1136
        %v1141 = vsub.f32 %v1029, %v1136
        %v1142 = vsub.f32 %v1094, %v1136
        %v1143 = vsub.f32 %v1032, %v1136
        %v1144 = vsub.f32 %v1097, %v1136
        %v1145 = vsub.f32 %v1035, %v1136
        %v1146 = vsub.f32 %v1100, %v1136
        %v1147 = vsub.f32 %v1038, %v1136
        %v1148 = vsub.f32 %v1103, %v1136
        %v1149 = vsub.f32 %v1041, %v1136
        %v1150 = vsub.f32 %v1106, %v1136
        %v1151 = vsub.f32 %v1044, %v1136
        %v1152 = vsub.f32 %v1109, %v1136
        %v1153 = vsub.f32 %v1047, %v1136
        %v1154 = vsub.f32 %v1112, %v1136
        %v1155 = vsub.f32 %v1050, %v1136
        %v1156 = vsub.f32 %v1115, %v1136
        %v1157 = vsub.f32 %v1053, %v1136
        %v1158 = vsub.f32 %v1118, %v1136
        %v1159 = vsub.f32 %v1056, %v1136
        %v1160 = vsub.f32 %v1121, %v1136
        %v1161 = vsub.f32 %v1059, %v1136
        %v1162 = vsub.f32 %v1124, %v1136
        %v1163 = vsub.f32 %v1062, %v1136
        %v1164 = vsub.f32 %v1127, %v1136
        %v1165 = vsub.f32 %v1065, %v1136
        %v1166 = vsub.f32 %v1130, %v1136
        %v1167 = vsub.f32 %v1068, %v1136
        %v1168 = vsub.f32 %v1133, %v1136
        %v1169 = vmax.f32 %v1137, 0.0
        %v1170 = vmax.f32 %v1138, 0.0
        %v1171 = vmax.f32 %v1139, 0.0
        %v1172 = vmax.f32 %v1140, 0.0
        %v1173 = vmax.f32 %v1141, 0.0
        %v1174 = vmax.f32 %v1142, 0.0
        %v1175 = vmax.f32 %v1143, 0.0
        %v1176 = vmax.f32 %v1144, 0.0
        %v1177 = vmax.f32 %v1145, 0.0
        %v1178 = vmax.f32 %v1146, 0.0
        %v1179 = vmax.f32 %v1147, 0.0
        %v1180 = vmax.f32 %v1148, 0.0
        %v1181 = vmax.f32 %v1149, 0.0
        %v1182 = vmax.f32 %v1150, 0.0
        %v1183 = vmax.f32 %v1151, 0.0
        %v1184 = vmax.f32 %v1152, 0.0
        %v1185 = vmax.f32 %v1153, 0.0
        %v1186 = vmax.f32 %v1154, 0.0
        %v1187 = vmax.f32 %v1155, 0.0
        %v1188 = vmax.f32 %v1156, 0.0
        %v1189 = vmax.f32 %v1157, 0.0
        %v1190 = vmax.f32 %v1158, 0.0
        %v1191 = vmax.f32 %v1159, 0.0
        %v1192 = vmax.f32 %v1160, 0.0
        %v1193 = vmax.f32 %v1161, 0.0
        %v1194 = vmax.f32 %v1162, 0.0
        %v1195 = vmax.f32 %v1163, 0.0
        %v1196 = vmax.f32 %v1164, 0.0
        %v1197 = vmax.f32 %v1165, 0.0
        %v1198 = vmax.f32 %v1166, 0.0
        %v1199 = vmax.f32 %v1167, 0.0
        %v1200 = vmax.f32 %v1168, 0.0
        %1201 = vst [vmem:[#allocation3] sm:$0xff] %v1169
        %1202 = vst [vmem:[#allocation3 + $0x8] sm:$0xff] %v1170
        %1203 = vst [vmem:[#allocation3 + $0x10] sm:$0xff] %v1171
        %1204 = vst [vmem:[#allocation3 + $0x18] sm:$0xff] %v1172
        %1205 = vst [vmem:[#allocation3 + $0x20] sm:$0xff] %v1173
        %1206 = vst [vmem:[#allocation3 + $0x28] sm:$0xff] %v1174
        %1207 = vst [vmem:[#allocation3 + $0x30] sm:$0xff] %v1175
        %1208 = vst [vmem:[#allocation3 + $0x38] sm:$0xff] %v1176
        %1209 = vst [vmem:[#allocation3 + $0x40] sm:$0xff] %v1177
        %1210 = vst [vmem:[#allocation3 + $0x48] sm:$0xff] %v1178
        %1211 = vst [vmem:[#allocation3 + $0x50] sm:$0xff] %v1179
        %1212 = vst [vmem:[#allocation3 + $0x58] sm:$0xff] %v1180
        %1213 = vst [vmem:[#allocation3 + $0x60] sm:$0xff] %v1181
        %1214 = vst [vmem:[#allocation3 + $0x68] sm:$0xff] %v1182
        %1215 = vst [vmem:[#allocation3 + $0x70] sm:$0xff] %v1183
        %1216 = vst [vmem:[#allocation3 + $0x78] sm:$0xff] %v1184
        %1217 = vst [vmem:[#allocation3 + $0x80] sm:$0xff] %v1185
        %1218 = vst [vmem:[#allocation3 + $0x88] sm:$0xff] %v1186
        %1219 = vst [vmem:[#allocation3 + $0x90] sm:$0xff] %v1187
        %1220 = vst [vmem:[#allocation3 + $0x98] sm:$0xff] %v1188
        %1221 = vst [vmem:[#allocation3 + $0xa0] sm:$0xff] %v1189
        %1222 = vst [vmem:[#allocation3 + $0xa8] sm:$0xff] %v1190
        %1223 = vst [vmem:[#allocation3 + $0xb0] sm:$0xff] %v1191
        %1224 = vst [vmem:[#allocation3 + $0xb8] sm:$0xff] %v1192
        %1225 = vst [vmem:[#allocation3 + $0xc0] sm:$0xff] %v1193
        %1226 = vst [vmem:[#allocation3 + $0xc8] sm:$0xff] %v1194
        %1227 = vst [vmem:[#allocation3 + $0xd0] sm:$0xff] %v1195
        %1228 = vst [vmem:[#allocation3 + $0xd8] sm:$0xff] %v1196
        %1229 = vst [vmem:[#allocation3 + $0xe0] sm:$0xff] %v1197
        %1230 = vst [vmem:[#allocation3 + $0xe8] sm:$0xff] %v1198
        %1231 = vst [vmem:[#allocation3 + $0xf0] sm:$0xff] %v1199
        %1232 = vst [vmem:[#allocation3 + $0xf8] sm:$0xff] %v1200
        %v1233 = vld [vmem:[%s3] sm:$0xff]
        %v1234 = vld [vmem:[%s3 + $0x8] sm:$0xff]
        %v1235 = vld [vmem:[%s3 + $0x10] sm:$0xff]
        %v1236 = vld [vmem:[%s3 + $0x18] sm:$0xff]
        %v1237 = vld [vmem:[%s3 + $0x20] sm:$0xff]
        %v1238 = vld [vmem:[%s3 + $0x28] sm:$0xff]
        %v1239 = vld [vmem:[%s3 + $0x30] sm:$0xff]
        %v1240 = vld [vmem:[%s3 + $0x38] sm:$0xff]
        %v1241 = vld [vmem:[%s3 + $0x40] sm:$0xff]
        %v1242 = vld [vmem:[%s3 + $0x48] sm:$0xff]
        %v1243 = vld [vmem:[%s3 + $0x50] sm:$0xff]
        %v1244 = vld [vmem:[%s3 + $0x58] sm:$0xff]
        %v1245 = vld [vmem:[%s3 + $0x60] sm:$0xff]
        %v1246 = vld [vmem:[%s3 + $0x68] sm:$0xff]
        %v1247 = vld [vmem:[%s3 + $0x70] sm:$0xff]
        %v1248 = vld [vmem:[%s3 + $0x78] sm:$0xff]
        %v1249 = vld [vmem:[#allocation3] sm:$0xff]
        %v1250 = vld [vmem:[#allocation3 + $0x8] sm:$0xff]
        %v1251 = vld [vmem:[#allocation3 + $0x10] sm:$0xff]
        %v1252 = vld [vmem:[#allocation3 + $0x18] sm:$0xff]
        %v1253 = vld [vmem:[#allocation3 + $0x20] sm:$0xff]
        %v1254 = vld [vmem:[#allocation3 + $0x28] sm:$0xff]
        %v1255 = vld [vmem:[#allocation3 + $0x30] sm:$0xff]
        %v1256 = vld [vmem:[#allocation3 + $0x38] sm:$0xff]
        %v1257 = vld [vmem:[#allocation3 + $0x40] sm:$0xff]
        %v1258 = vld [vmem:[#allocation3 + $0x48] sm:$0xff]
        %v1259 = vld [vmem:[#allocation3 + $0x50] sm:$0xff]
        %v1260 = vld [vmem:[#allocation3 + $0x58] sm:$0xff]
        %v1261 = vld [vmem:[#allocation3 + $0x60] sm:$0xff]
        %v1262 = vld [vmem:[#allocation3 + $0x68] sm:$0xff]
        %v1263 = vld [vmem:[#allocation3 + $0x70] sm:$0xff]
        %v1264 = vld [vmem:[#allocation3 + $0x78] sm:$0xff]
        %v1265 = vld [vmem:[#allocation3 + $0x80] sm:$0xff]
        %v1266 = vld [vmem:[#allocation3 + $0x88] sm:$0xff]
        %v1267 = vld [vmem:[#allocation3 + $0x90] sm:$0xff]
        %v1268 = vld [vmem:[#allocation3 + $0x98] sm:$0xff]
        %v1269 = vld [vmem:[#allocation3 + $0xa0] sm:$0xff]
        %v1270 = vld [vmem:[#allocation3 + $0xa8] sm:$0xff]
        %v1271 = vld [vmem:[#allocation3 + $0xb0] sm:$0xff]
        %v1272 = vld [vmem:[#allocation3 + $0xb8] sm:$0xff]
        %v1273 = vld [vmem:[#allocation3 + $0xc0] sm:$0xff]
        %v1274 = vld [vmem:[#allocation3 + $0xc8] sm:$0xff]
        %v1275 = vld [vmem:[#allocation3 + $0xd0] sm:$0xff]
        %v1276 = vld [vmem:[#allocation3 + $0xd8] sm:$0xff]
        %v1277 = vld [vmem:[#allocation3 + $0xe0] sm:$0xff]
        %v1278 = vld [vmem:[#allocation3 + $0xe8] sm:$0xff]
        %v1279 = vld [vmem:[#allocation3 + $0xf0] sm:$0xff]
        %v1280 = vld [vmem:[#allocation3 + $0xf8] sm:$0xff]
        %v1281 = vld [vmem:[#allocation2] sm:$0xff]
        %v1282 = vld [vmem:[#allocation2 + $0x8] sm:$0xff]
        %v1283 = vld [vmem:[#allocation2 + $0x10] sm:$0xff]
        %v1284 = vld [vmem:[#allocation2 + $0x18] sm:$0xff]
        %v1285 = vld [vmem:[#allocation2 + $0x20] sm:$0xff]
        %v1286 = vld [vmem:[#allocation2 + $0x28] sm:$0xff]
        %v1287 = vld [vmem:[#allocation2 + $0x30] sm:$0xff]
        %v1288 = vld [vmem:[#allocation2 + $0x38] sm:$0xff]
        %v1289 = vld [vmem:[#allocation2 + $0x40] sm:$0xff]
        %v1290 = vld [vmem:[#allocation2 + $0x48] sm:$0xff]
        %v1291 = vld [vmem:[#allocation2 + $0x50] sm:$0xff]
        %v1292 = vld [vmem:[#allocation2 + $0x58] sm:$0xff]
        %v1293 = vld [vmem:[#allocation2 + $0x60] sm:$0xff]
        %v1294 = vld [vmem:[#allocation2 + $0x68] sm:$0xff]
        %v1295 = vld [vmem:[#allocation2 + $0x70] sm:$0xff]
        %v1296 = vld [vmem:[#allocation2 + $0x78] sm:$0xff]
        %v1297 = vld [vmem:[#allocation2 + $0x80] sm:$0xff]
        %v1298 = vld [vmem:[#allocation2 + $0x88] sm:$0xff]
        %v1299 = vld [vmem:[#allocation2 + $0x90] sm:$0xff]
        %v1300 = vld [vmem:[#allocation2 + $0x98] sm:$0xff]
        %v1301 = vld [vmem:[#allocation2 + $0xa0] sm:$0xff]
        %v1302 = vld [vmem:[#allocation2 + $0xa8] sm:$0xff]
        %v1303 = vld [vmem:[#allocation2 + $0xb0] sm:$0xff]
        %v1304 = vld [vmem:[#allocation2 + $0xb8] sm:$0xff]
        %v1305 = vld [vmem:[#allocation2 + $0xc0] sm:$0xff]
        %v1306 = vld [vmem:[#allocation2 + $0xc8] sm:$0xff]
        %v1307 = vld [vmem:[#allocation2 + $0xd0] sm:$0xff]
        %v1308 = vld [vmem:[#allocation2 + $0xd8] sm:$0xff]
        %v1309 = vld [vmem:[#allocation2 + $0xe0] sm:$0xff]
        %v1310 = vld [vmem:[#allocation2 + $0xe8] sm:$0xff]
        %v1311 = vld [vmem:[#allocation2 + $0xf0] sm:$0xff]
        %v1312 = vld [vmem:[#allocation2 + $0xf8] sm:$0xff]
        %1313 = vmatpush.msra.mxu0 %v1279
        %1314 = vmatpush.msra.mxu0 %v1277
        %1315 = vmatpush.msra.mxu0 %v1275
        %1316 = vmatpush.msra.mxu0 %v1273
        %1317 = vmatpush.msra.mxu0 %v1271
        %1318 = vmatpush.msra.mxu0 %v1269
        %1319 = vmatpush.msra.mxu0 %v1267
        %1320 = vmatpush.msra.mxu0 %v1265
        %1321 = vmatpush.msra.mxu0 %v1263
        %1322 = vmatpush.msra.mxu0 %v1261
        %1323 = vmatpush.msra.mxu0 %v1259
        %1324 = vmatpush.msra.mxu0 %v1257
        %1325 = vmatpush.msra.mxu0 %v1255
        %1326 = vmatpush.msra.mxu0 %v1253
        %1327 = vmatpush.msra.mxu0 %v1251
        %1328 = vmatpush.msra.mxu0 %v1249
        %1329 = vmatmul.f32.gmra.mxu0 %v1233
        %v1330 = vpop.f32.mrf.mxu0
        %v1331 = vadd.f32 %v1281, %v1330
        %1332 = vmatmul.f32.gmra.mxu0 %v1234
        %v1333 = vpop.f32.mrf.mxu0
        %v1334 = vadd.f32 %v1283, %v1333
        %1335 = vmatmul.f32.gmra.mxu0 %v1235
        %v1336 = vpop.f32.mrf.mxu0
        %v1337 = vadd.f32 %v1285, %v1336
        %1338 = vmatmul.f32.gmra.mxu0 %v1236
        %v1339 = vpop.f32.mrf.mxu0
        %v1340 = vadd.f32 %v1287, %v1339
        %1341 = vmatmul.f32.gmra.mxu0 %v1237
        %v1342 = vpop.f32.mrf.mxu0
        %v1343 = vadd.f32 %v1289, %v1342
        %1344 = vmatmul.f32.gmra.mxu0 %v1238
        %v1345 = vpop.f32.mrf.mxu0
        %v1346 = vadd.f32 %v1291, %v1345
        %1347 = vmatmul.f32.gmra.mxu0 %v1239
        %v1348 = vpop.f32.mrf.mxu0
        %v1349 = vadd.f32 %v1293, %v1348
        %1350 = vmatmul.f32.gmra.mxu0 %v1240
        %v1351 = vpop.f32.mrf.mxu0
        %v1352 = vadd.f32 %v1295, %v1351
        %1353 = vmatmul.f32.gmra.mxu0 %v1241
        %v1354 = vpop.f32.mrf.mxu0
        %v1355 = vadd.f32 %v1297, %v1354
        %1356 = vmatmul.f32.gmra.mxu0 %v1242
        %v1357 = vpop.f32.mrf.mxu0
        %v1358 = vadd.f32 %v1299, %v1357
        %1359 = vmatmul.f32.gmra.mxu0 %v1243
        %v1360 = vpop.f32.mrf.mxu0
        %v1361 = vadd.f32 %v1301, %v1360
        %1362 = vmatmul.f32.gmra.mxu0 %v1244
        %v1363 = vpop.f32.mrf.mxu0
        %v1364 = vadd.f32 %v1303, %v1363
        %1365 = vmatmul.f32.gmra.mxu0 %v1245
        %v1366 = vpop.f32.mrf.mxu0
        %v1367 = vadd.f32 %v1305, %v1366
        %1368 = vmatmul.f32.gmra.mxu0 %v1246
        %v1369 = vpop.f32.mrf.mxu0
        %v1370 = vadd.f32 %v1307, %v1369
        %1371 = vmatmul.f32.gmra.mxu0 %v1247
        %v1372 = vpop.f32.mrf.mxu0
        %v1373 = vadd.f32 %v1309, %v1372
        %1374 = vmatmul.f32.gmra.mxu0 %v1248
        %v1375 = vpop.f32.mrf.mxu0
        %v1376 = vadd.f32 %v1311, %v1375
        %1377 = vdwg.mxu0
        %1378 = vmatpush.msra.mxu0 %v1280
        %1379 = vmatpush.msra.mxu0 %v1278
        %1380 = vmatpush.msra.mxu0 %v1276
        %1381 = vmatpush.msra.mxu0 %v1274
        %1382 = vmatpush.msra.mxu0 %v1272
        %1383 = vmatpush.msra.mxu0 %v1270
        %1384 = vmatpush.msra.mxu0 %v1268
        %1385 = vmatpush.msra.mxu0 %v1266
        %1386 = vmatpush.msra.mxu0 %v1264
        %1387 = vmatpush.msra.mxu0 %v1262
        %1388 = vmatpush.msra.mxu0 %v1260
        %1389 = vmatpush.msra.mxu0 %v1258
        %1390 = vmatpush.msra.mxu0 %v1256
        %1391 = vmatpush.msra.mxu0 %v1254
        %1392 = vmatpush.msra.mxu0 %v1252
        %1393 = vmatpush.msra.mxu0 %v1250
        %1394 = vmatmul.f32.gmra.mxu0 %v1233
        %v1395 = vpop.f32.mrf.mxu0
        %v1396 = vadd.f32 %v1282, %v1395
        %1397 = vmatmul.f32.gmra.mxu0 %v1234
        %v1398 = vpop.f32.mrf.mxu0
        %v1399 = vadd.f32 %v1284, %v1398
        %1400 = vmatmul.f32.gmra.mxu0 %v1235
        %v1401 = vpop.f32.mrf.mxu0
        %v1402 = vadd.f32 %v1286, %v1401
        %1403 = vmatmul.f32.gmra.mxu0 %v1236
        %v1404 = vpop.f32.mrf.mxu0
        %v1405 = vadd.f32 %v1288, %v1404
        %1406 = vmatmul.f32.gmra.mxu0 %v1237
        %v1407 = vpop.f32.mrf.mxu0
        %v1408 = vadd.f32 %v1290, %v1407
        %1409 = vmatmul.f32.gmra.mxu0 %v1238
        %v1410 = vpop.f32.mrf.mxu0
        %v1411 = vadd.f32 %v1292, %v1410
        %1412 = vmatmul.f32.gmra.mxu0 %v1239
        %v1413 = vpop.f32.mrf.mxu0
        %v1414 = vadd.f32 %v1294, %v1413
        %1415 = vmatmul.f32.gmra.mxu0 %v1240
        %v1416 = vpop.f32.mrf.mxu0
        %v1417 = vadd.f32 %v1296, %v1416
        %1418 = vmatmul.f32.gmra.mxu0 %v1241
        %v1419 = vpop.f32.mrf.mxu0
        %v1420 = vadd.f32 %v1298, %v1419
        %1421 = vmatmul.f32.gmra.mxu0 %v1242
        %v1422 = vpop.f32.mrf.mxu0
        %v1423 = vadd.f32 %v1300, %v1422
        %1424 = vmatmul.f32.gmra.mxu0 %v1243
        %v1425 = vpop.f32.mrf.mxu0
        %v1426 = vadd.f32 %v1302, %v1425
        %1427 = vmatmul.f32.gmra.mxu0 %v1244
        %v1428 = vpop.f32.mrf.mxu0
        %v1429 = vadd.f32 %v1304, %v1428
        %1430 = vmatmul.f32.gmra.mxu0 %v1245
        %v1431 = vpop.f32.mrf.mxu0
        %v1432 = vadd.f32 %v1306, %v1431
        %1433 = vmatmul.f32.gmra.mxu0 %v1246
        %v1434 = vpop.f32.mrf.mxu0
        %v1435 = vadd.f32 %v1308, %v1434
        %1436 = vmatmul.f32.gmra.mxu0 %v1247
        %v1437 = vpop.f32.mrf.mxu0
        %v1438 = vadd.f32 %v1310, %v1437
        %1439 = vmatmul.f32.gmra.mxu0 %v1248
        %v1440 = vpop.f32.mrf.mxu0
        %v1441 = vadd.f32 %v1312, %v1440
        %1442 = vdwg.mxu0
        %s1443 = sld [smem:[#allocation4 + $0x3]]
        %v1444 = vstv %s1443
        %v1445 = vsub.f32 %v1331, %v1444
        %v1446 = vsub.f32 %v1396, %v1444
        %v1447 = vsub.f32 %v1334, %v1444
        %v1448 = vsub.f32 %v1399, %v1444
        %v1449 = vsub.f32 %v1337, %v1444
        %v1450 = vsub.f32 %v1402, %v1444
        %v1451 = vsub.f32 %v1340, %v1444
        %v1452 = vsub.f32 %v1405, %v1444
        %v1453 = vsub.f32 %v1343, %v1444
        %v1454 = vsub.f32 %v1408, %v1444
        %v1455 = vsub.f32 %v1346, %v1444
        %v1456 = vsub.f32 %v1411, %v1444
        %v1457 = vsub.f32 %v1349, %v1444
        %v1458 = vsub.f32 %v1414, %v1444
        %v1459 = vsub.f32 %v1352, %v1444
        %v1460 = vsub.f32 %v1417, %v1444
        %v1461 = vsub.f32 %v1355, %v1444
        %v1462 = vsub.f32 %v1420, %v1444
        %v1463 = vsub.f32 %v1358, %v1444
        %v1464 = vsub.f32 %v1423, %v1444
        %v1465 = vsub.f32 %v1361, %v1444
        %v1466 = vsub.f32 %v1426, %v1444
        %v1467 = vsub.f32 %v1364, %v1444
        %v1468 = vsub.f32 %v1429, %v1444
        %v1469 = vsub.f32 %v1367, %v1444
        %v1470 = vsub.f32 %v1432, %v1444
        %v1471 = vsub.f32 %v1370, %v1444
        %v1472 = vsub.f32 %v1435, %v1444
        %v1473 = vsub.f32 %v1373, %v1444
        %v1474 = vsub.f32 %v1438, %v1444
        %v1475 = vsub.f32 %v1376, %v1444
        %v1476 = vsub.f32 %v1441, %v1444
        %v1477 = vmax.f32 %v1445, 0.0
        %v1478 = vmax.f32 %v1446, 0.0
        %v1479 = vmax.f32 %v1447, 0.0
        %v1480 = vmax.f32 %v1448, 0.0
        %v1481 = vmax.f32 %v1449, 0.0
        %v1482 = vmax.f32 %v1450, 0.0
        %v1483 = vmax.f32 %v1451, 0.0
        %v1484 = vmax.f32 %v1452, 0.0
        %v1485 = vmax.f32 %v1453, 0.0
        %v1486 = vmax.f32 %v1454, 0.0
        %v1487 = vmax.f32 %v1455, 0.0
        %v1488 = vmax.f32 %v1456, 0.0
        %v1489 = vmax.f32 %v1457, 0.0
        %v1490 = vmax.f32 %v1458, 0.0
        %v1491 = vmax.f32 %v1459, 0.0
        %v1492 = vmax.f32 %v1460, 0.0
        %v1493 = vmax.f32 %v1461, 0.0
        %v1494 = vmax.f32 %v1462, 0.0
        %v1495 = vmax.f32 %v1463, 0.0
        %v1496 = vmax.f32 %v1464, 0.0
        %v1497 = vmax.f32 %v1465, 0.0
        %v1498 = vmax.f32 %v1466, 0.0
        %v1499 = vmax.f32 %v1467, 0.0
        %v1500 = vmax.f32 %v1468, 0.0
        %v1501 = vmax.f32 %v1469, 0.0
        %v1502 = vmax.f32 %v1470, 0.0
        %v1503 = vmax.f32 %v1471, 0.0
        %v1504 = vmax.f32 %v1472, 0.0
        %v1505 = vmax.f32 %v1473, 0.0
        %v1506 = vmax.f32 %v1474, 0.0
        %v1507 = vmax.f32 %v1475, 0.0
        %v1508 = vmax.f32 %v1476, 0.0
        %1509 = vst [vmem:[%s247] sm:$0xff] %v1477
        %1510 = vst [vmem:[%s247 + $0x8] sm:$0xff] %v1478
        %1511 = vst [vmem:[%s247 + $0x10] sm:$0xff] %v1479
        %1512 = vst [vmem:[%s247 + $0x18] sm:$0xff] %v1480
        %1513 = vst [vmem:[%s247 + $0x20] sm:$0xff] %v1481
        %1514 = vst [vmem:[%s247 + $0x28] sm:$0xff] %v1482
        %1515 = vst [vmem:[%s247 + $0x30] sm:$0xff] %v1483
        %1516 = vst [vmem:[%s247 + $0x38] sm:$0xff] %v1484
        %1517 = vst [vmem:[%s247 + $0x40] sm:$0xff] %v1485
        %1518 = vst [vmem:[%s247 + $0x48] sm:$0xff] %v1486
        %1519 = vst [vmem:[%s247 + $0x50] sm:$0xff] %v1487
        %1520 = vst [vmem:[%s247 + $0x58] sm:$0xff] %v1488
        %1521 = vst [vmem:[%s247 + $0x60] sm:$0xff] %v1489
        %1522 = vst [vmem:[%s247 + $0x68] sm:$0xff] %v1490
        %1523 = vst [vmem:[%s247 + $0x70] sm:$0xff] %v1491
        %1524 = vst [vmem:[%s247 + $0x78] sm:$0xff] %v1492
        %1525 = vst [vmem:[%s247 + $0x80] sm:$0xff] %v1493
        %1526 = vst [vmem:[%s247 + $0x88] sm:$0xff] %v1494
        %1527 = vst [vmem:[%s247 + $0x90] sm:$0xff] %v1495
        %1528 = vst [vmem:[%s247 + $0x98] sm:$0xff] %v1496
        %1529 = vst [vmem:[%s247 + $0xa0] sm:$0xff] %v1497
        %1530 = vst [vmem:[%s247 + $0xa8] sm:$0xff] %v1498
        %1531 = vst [vmem:[%s247 + $0xb0] sm:$0xff] %v1499
        %1532 = vst [vmem:[%s247 + $0xb8] sm:$0xff] %v1500
        %1533 = vst [vmem:[%s247 + $0xc0] sm:$0xff] %v1501
        %1534 = vst [vmem:[%s247 + $0xc8] sm:$0xff] %v1502
        %1535 = vst [vmem:[%s247 + $0xd0] sm:$0xff] %v1503
        %1536 = vst [vmem:[%s247 + $0xd8] sm:$0xff] %v1504
        %1537 = vst [vmem:[%s247 + $0xe0] sm:$0xff] %v1505
        %1538 = vst [vmem:[%s247 + $0xe8] sm:$0xff] %v1506
        %1539 = vst [vmem:[%s247 + $0xf0] sm:$0xff] %v1507
        %1540 = vst [vmem:[%s247 + $0xf8] sm:$0xff] %v1508
        %v1541 = vld [vmem:[%s3] sm:$0xff]
        %v1542 = vld [vmem:[%s3 + $0x8] sm:$0xff]
        %v1543 = vld [vmem:[%s3 + $0x10] sm:$0xff]
        %v1544 = vld [vmem:[%s3 + $0x18] sm:$0xff]
        %v1545 = vld [vmem:[%s3 + $0x20] sm:$0xff]
        %v1546 = vld [vmem:[%s3 + $0x28] sm:$0xff]
        %v1547 = vld [vmem:[%s3 + $0x30] sm:$0xff]
        %v1548 = vld [vmem:[%s3 + $0x38] sm:$0xff]
        %v1549 = vld [vmem:[%s3 + $0x40] sm:$0xff]
        %v1550 = vld [vmem:[%s3 + $0x48] sm:$0xff]
        %v1551 = vld [vmem:[%s3 + $0x50] sm:$0xff]
        %v1552 = vld [vmem:[%s3 + $0x58] sm:$0xff]
        %v1553 = vld [vmem:[%s3 + $0x60] sm:$0xff]
        %v1554 = vld [vmem:[%s3 + $0x68] sm:$0xff]
        %v1555 = vld [vmem:[%s3 + $0x70] sm:$0xff]
        %v1556 = vld [vmem:[%s3 + $0x78] sm:$0xff]
        %v1557 = vld [vmem:[%s247] sm:$0xff]
        %v1558 = vld [vmem:[%s247 + $0x8] sm:$0xff]
        %v1559 = vld [vmem:[%s247 + $0x10] sm:$0xff]
        %v1560 = vld [vmem:[%s247 + $0x18] sm:$0xff]
        %v1561 = vld [vmem:[%s247 + $0x20] sm:$0xff]
        %v1562 = vld [vmem:[%s247 + $0x28] sm:$0xff]
        %v1563 = vld [vmem:[%s247 + $0x30] sm:$0xff]
        %v1564 = vld [vmem:[%s247 + $0x38] sm:$0xff]
        %v1565 = vld [vmem:[%s247 + $0x40] sm:$0xff]
        %v1566 = vld [vmem:[%s247 + $0x48] sm:$0xff]
        %v1567 = vld [vmem:[%s247 + $0x50] sm:$0xff]
        %v1568 = vld [vmem:[%s247 + $0x58] sm:$0xff]
        %v1569 = vld [vmem:[%s247 + $0x60] sm:$0xff]
        %v1570 = vld [vmem:[%s247 + $0x68] sm:$0xff]
        %v1571 = vld [vmem:[%s247 + $0x70] sm:$0xff]
        %v1572 = vld [vmem:[%s247 + $0x78] sm:$0xff]
        %v1573 = vld [vmem:[%s247 + $0x80] sm:$0xff]
        %v1574 = vld [vmem:[%s247 + $0x88] sm:$0xff]
        %v1575 = vld [vmem:[%s247 + $0x90] sm:$0xff]
        %v1576 = vld [vmem:[%s247 + $0x98] sm:$0xff]
        %v1577 = vld [vmem:[%s247 + $0xa0] sm:$0xff]
        %v1578 = vld [vmem:[%s247 + $0xa8] sm:$0xff]
        %v1579 = vld [vmem:[%s247 + $0xb0] sm:$0xff]
        %v1580 = vld [vmem:[%s247 + $0xb8] sm:$0xff]
        %v1581 = vld [vmem:[%s247 + $0xc0] sm:$0xff]
        %v1582 = vld [vmem:[%s247 + $0xc8] sm:$0xff]
        %v1583 = vld [vmem:[%s247 + $0xd0] sm:$0xff]
        %v1584 = vld [vmem:[%s247 + $0xd8] sm:$0xff]
        %v1585 = vld [vmem:[%s247 + $0xe0] sm:$0xff]
        %v1586 = vld [vmem:[%s247 + $0xe8] sm:$0xff]
        %v1587 = vld [vmem:[%s247 + $0xf0] sm:$0xff]
        %v1588 = vld [vmem:[%s247 + $0xf8] sm:$0xff]
        %v1589 = vld [vmem:[#allocation2] sm:$0xff]
        %v1590 = vld [vmem:[#allocation2 + $0x8] sm:$0xff]
        %v1591 = vld [vmem:[#allocation2 + $0x10] sm:$0xff]
        %v1592 = vld [vmem:[#allocation2 + $0x18] sm:$0xff]
        %v1593 = vld [vmem:[#allocation2 + $0x20] sm:$0xff]
        %v1594 = vld [vmem:[#allocation2 + $0x28] sm:$0xff]
        %v1595 = vld [vmem:[#allocation2 + $0x30] sm:$0xff]
        %v1596 = vld [vmem:[#allocation2 + $0x38] sm:$0xff]
        %v1597 = vld [vmem:[#allocation2 + $0x40] sm:$0xff]
        %v1598 = vld [vmem:[#allocation2 + $0x48] sm:$0xff]
        %v1599 = vld [vmem:[#allocation2 + $0x50] sm:$0xff]
        %v1600 = vld [vmem:[#allocation2 + $0x58] sm:$0xff]
        %v1601 = vld [vmem:[#allocation2 + $0x60] sm:$0xff]
        %v1602 = vld [vmem:[#allocation2 + $0x68] sm:$0xff]
        %v1603 = vld [vmem:[#allocation2 + $0x70] sm:$0xff]
        %v1604 = vld [vmem:[#allocation2 + $0x78] sm:$0xff]
        %v1605 = vld [vmem:[#allocation2 + $0x80] sm:$0xff]
        %v1606 = vld [vmem:[#allocation2 + $0x88] sm:$0xff]
        %v1607 = vld [vmem:[#allocation2 + $0x90] sm:$0xff]
        %v1608 = vld [vmem:[#allocation2 + $0x98] sm:$0xff]
        %v1609 = vld [vmem:[#allocation2 + $0xa0] sm:$0xff]
        %v1610 = vld [vmem:[#allocation2 + $0xa8] sm:$0xff]
        %v1611 = vld [vmem:[#allocation2 + $0xb0] sm:$0xff]
        %v1612 = vld [vmem:[#allocation2 + $0xb8] sm:$0xff]
        %v1613 = vld [vmem:[#allocation2 + $0xc0] sm:$0xff]
        %v1614 = vld [vmem:[#allocation2 + $0xc8] sm:$0xff]
        %v1615 = vld [vmem:[#allocation2 + $0xd0] sm:$0xff]
        %v1616 = vld [vmem:[#allocation2 + $0xd8] sm:$0xff]
        %v1617 = vld [vmem:[#allocation2 + $0xe0] sm:$0xff]
        %v1618 = vld [vmem:[#allocation2 + $0xe8] sm:$0xff]
        %v1619 = vld [vmem:[#allocation2 + $0xf0] sm:$0xff]
        %v1620 = vld [vmem:[#allocation2 + $0xf8] sm:$0xff]
        %1621 = vmatpush.msra.mxu0 %v1587
        %1622 = vmatpush.msra.mxu0 %v1585
        %1623 = vmatpush.msra.mxu0 %v1583
        %1624 = vmatpush.msra.mxu0 %v1581
        %1625 = vmatpush.msra.mxu0 %v1579
        %1626 = vmatpush.msra.mxu0 %v1577
        %1627 = vmatpush.msra.mxu0 %v1575
        %1628 = vmatpush.msra.mxu0 %v1573
        %1629 = vmatpush.msra.mxu0 %v1571
        %1630 = vmatpush.msra.mxu0 %v1569
        %1631 = vmatpush.msra.mxu0 %v1567
        %1632 = vmatpush.msra.mxu0 %v1565
        %1633 = vmatpush.msra.mxu0 %v1563
        %1634 = vmatpush.msra.mxu0 %v1561
        %1635 = vmatpush.msra.mxu0 %v1559
        %1636 = vmatpush.msra.mxu0 %v1557
        %1637 = vmatmul.f32.gmra.mxu0 %v1541
        %v1638 = vpop.f32.mrf.mxu0
        %v1639 = vadd.f32 %v1589, %v1638
        %1640 = vmatmul.f32.gmra.mxu0 %v1542
        %v1641 = vpop.f32.mrf.mxu0
        %v1642 = vadd.f32 %v1591, %v1641
        %1643 = vmatmul.f32.gmra.mxu0 %v1543
        %v1644 = vpop.f32.mrf.mxu0
        %v1645 = vadd.f32 %v1593, %v1644
        %1646 = vmatmul.f32.gmra.mxu0 %v1544
        %v1647 = vpop.f32.mrf.mxu0
        %v1648 = vadd.f32 %v1595, %v1647
        %1649 = vmatmul.f32.gmra.mxu0 %v1545
        %v1650 = vpop.f32.mrf.mxu0
        %v1651 = vadd.f32 %v1597, %v1650
        %1652 = vmatmul.f32.gmra.mxu0 %v1546
        %v1653 = vpop.f32.mrf.mxu0
        %v1654 = vadd.f32 %v1599, %v1653
        %1655 = vmatmul.f32.gmra.mxu0 %v1547
        %v1656 = vpop.f32.mrf.mxu0
        %v1657 = vadd.f32 %v1601, %v1656
        %1658 = vmatmul.f32.gmra.mxu0 %v1548
        %v1659 = vpop.f32.mrf.mxu0
        %v1660 = vadd.f32 %v1603, %v1659
        %1661 = vmatmul.f32.gmra.mxu0 %v1549
        %v1662 = vpop.f32.mrf.mxu0
        %v1663 = vadd.f32 %v1605, %v1662
        %1664 = vmatmul.f32.gmra.mxu0 %v1550
        %v1665 = vpop.f32.mrf.mxu0
        %v1666 = vadd.f32 %v1607, %v1665
        %1667 = vmatmul.f32.gmra.mxu0 %v1551
        %v1668 = vpop.f32.mrf.mxu0
        %v1669 = vadd.f32 %v1609, %v1668
        %1670 = vmatmul.f32.gmra.mxu0 %v1552
        %v1671 = vpop.f32.mrf.mxu0
        %v1672 = vadd.f32 %v1611, %v1671
        %1673 = vmatmul.f32.gmra.mxu0 %v1553
        %v1674 = vpop.f32.mrf.mxu0
        %v1675 = vadd.f32 %v1613, %v1674
        %1676 = vmatmul.f32.gmra.mxu0 %v1554
        %v1677 = vpop.f32.mrf.mxu0
        %v1678 = vadd.f32 %v1615, %v1677
        %1679 = vmatmul.f32.gmra.mxu0 %v1555
        %v1680 = vpop.f32.mrf.mxu0
        %v1681 = vadd.f32 %v1617, %v1680
        %1682 = vmatmul.f32.gmra.mxu0 %v1556
        %v1683 = vpop.f32.mrf.mxu0
        %v1684 = vadd.f32 %v1619, %v1683
        %1685 = vdwg.mxu0
        %1686 = vmatpush.msra.mxu0 %v1588
        %1687 = vmatpush.msra.mxu0 %v1586
        %1688 = vmatpush.msra.mxu0 %v1584
        %1689 = vmatpush.msra.mxu0 %v1582
        %1690 = vmatpush.msra.mxu0 %v1580
        %1691 = vmatpush.msra.mxu0 %v1578
        %1692 = vmatpush.msra.mxu0 %v1576
        %1693 = vmatpush.msra.mxu0 %v1574
        %1694 = vmatpush.msra.mxu0 %v1572
        %1695 = vmatpush.msra.mxu0 %v1570
        %1696 = vmatpush.msra.mxu0 %v1568
        %1697 = vmatpush.msra.mxu0 %v1566
        %1698 = vmatpush.msra.mxu0 %v1564
        %1699 = vmatpush.msra.mxu0 %v1562
        %1700 = vmatpush.msra.mxu0 %v1560
        %1701 = vmatpush.msra.mxu0 %v1558
        %1702 = vmatmul.f32.gmra.mxu0 %v1541
        %v1703 = vpop.f32.mrf.mxu0
        %v1704 = vadd.f32 %v1590, %v1703
        %1705 = vmatmul.f32.gmra.mxu0 %v1542
        %v1706 = vpop.f32.mrf.mxu0
        %v1707 = vadd.f32 %v1592, %v1706
        %1708 = vmatmul.f32.gmra.mxu0 %v1543
        %v1709 = vpop.f32.mrf.mxu0
        %v1710 = vadd.f32 %v1594, %v1709
        %1711 = vmatmul.f32.gmra.mxu0 %v1544
        %v1712 = vpop.f32.mrf.mxu0
        %v1713 = vadd.f32 %v1596, %v1712
        %1714 = vmatmul.f32.gmra.mxu0 %v1545
        %v1715 = vpop.f32.mrf.mxu0
        %v1716 = vadd.f32 %v1598, %v1715
        %1717 = vmatmul.f32.gmra.mxu0 %v1546
        %v1718 = vpop.f32.mrf.mxu0
        %v1719 = vadd.f32 %v1600, %v1718
        %1720 = vmatmul.f32.gmra.mxu0 %v1547
        %v1721 = vpop.f32.mrf.mxu0
        %v1722 = vadd.f32 %v1602, %v1721
        %1723 = vmatmul.f32.gmra.mxu0 %v1548
        %v1724 = vpop.f32.mrf.mxu0
        %v1725 = vadd.f32 %v1604, %v1724
        %1726 = vmatmul.f32.gmra.mxu0 %v1549
        %v1727 = vpop.f32.mrf.mxu0
        %v1728 = vadd.f32 %v1606, %v1727
        %1729 = vmatmul.f32.gmra.mxu0 %v1550
        %v1730 = vpop.f32.mrf.mxu0
        %v1731 = vadd.f32 %v1608, %v1730
        %1732 = vmatmul.f32.gmra.mxu0 %v1551
        %v1733 = vpop.f32.mrf.mxu0
        %v1734 = vadd.f32 %v1610, %v1733
        %1735 = vmatmul.f32.gmra.mxu0 %v1552
        %v1736 = vpop.f32.mrf.mxu0
        %v1737 = vadd.f32 %v1612, %v1736
        %1738 = vmatmul.f32.gmra.mxu0 %v1553
        %v1739 = vpop.f32.mrf.mxu0
        %v1740 = vadd.f32 %v1614, %v1739
        %1741 = vmatmul.f32.gmra.mxu0 %v1554
        %v1742 = vpop.f32.mrf.mxu0
        %v1743 = vadd.f32 %v1616, %v1742
        %1744 = vmatmul.f32.gmra.mxu0 %v1555
        %v1745 = vpop.f32.mrf.mxu0
        %v1746 = vadd.f32 %v1618, %v1745
        %1747 = vmatmul.f32.gmra.mxu0 %v1556
        %v1748 = vpop.f32.mrf.mxu0
        %v1749 = vadd.f32 %v1620, %v1748
        %1750 = vdwg.mxu0
        %s1751 = sld [smem:[#allocation4 + $0x4]]
        %v1752 = vstv %s1751
        %v1753 = vsub.f32 %v1639, %v1752
        %v1754 = vsub.f32 %v1704, %v1752
        %v1755 = vsub.f32 %v1642, %v1752
        %v1756 = vsub.f32 %v1707, %v1752
        %v1757 = vsub.f32 %v1645, %v1752
        %v1758 = vsub.f32 %v1710, %v1752
        %v1759 = vsub.f32 %v1648, %v1752
        %v1760 = vsub.f32 %v1713, %v1752
        %v1761 = vsub.f32 %v1651, %v1752
        %v1762 = vsub.f32 %v1716, %v1752
        %v1763 = vsub.f32 %v1654, %v1752
        %v1764 = vsub.f32 %v1719, %v1752
        %v1765 = vsub.f32 %v1657, %v1752
        %v1766 = vsub.f32 %v1722, %v1752
        %v1767 = vsub.f32 %v1660, %v1752
        %v1768 = vsub.f32 %v1725, %v1752
        %v1769 = vsub.f32 %v1663, %v1752
        %v1770 = vsub.f32 %v1728, %v1752
        %v1771 = vsub.f32 %v1666, %v1752
        %v1772 = vsub.f32 %v1731, %v1752
        %v1773 = vsub.f32 %v1669, %v1752
        %v1774 = vsub.f32 %v1734, %v1752
        %v1775 = vsub.f32 %v1672, %v1752
        %v1776 = vsub.f32 %v1737, %v1752
        %v1777 = vsub.f32 %v1675, %v1752
        %v1778 = vsub.f32 %v1740, %v1752
        %v1779 = vsub.f32 %v1678, %v1752
        %v1780 = vsub.f32 %v1743, %v1752
        %v1781 = vsub.f32 %v1681, %v1752
        %v1782 = vsub.f32 %v1746, %v1752
        %v1783 = vsub.f32 %v1684, %v1752
        %v1784 = vsub.f32 %v1749, %v1752
        %v1785 = vmax.f32 %v1753, 0.0
        %v1786 = vmax.f32 %v1754, 0.0
        %v1787 = vmax.f32 %v1755, 0.0
        %v1788 = vmax.f32 %v1756, 0.0
        %v1789 = vmax.f32 %v1757, 0.0
        %v1790 = vmax.f32 %v1758, 0.0
        %v1791 = vmax.f32 %v1759, 0.0
        %v1792 = vmax.f32 %v1760, 0.0
        %v1793 = vmax.f32 %v1761, 0.0
        %v1794 = vmax.f32 %v1762, 0.0
        %v1795 = vmax.f32 %v1763, 0.0
        %v1796 = vmax.f32 %v1764, 0.0
        %v1797 = vmax.f32 %v1765, 0.0
        %v1798 = vmax.f32 %v1766, 0.0
        %v1799 = vmax.f32 %v1767, 0.0
        %v1800 = vmax.f32 %v1768, 0.0
        %v1801 = vmax.f32 %v1769, 0.0
        %v1802 = vmax.f32 %v1770, 0.0
        %v1803 = vmax.f32 %v1771, 0.0
        %v1804 = vmax.f32 %v1772, 0.0
        %v1805 = vmax.f32 %v1773, 0.0
        %v1806 = vmax.f32 %v1774, 0.0
        %v1807 = vmax.f32 %v1775, 0.0
        %v1808 = vmax.f32 %v1776, 0.0
        %v1809 = vmax.f32 %v1777, 0.0
        %v1810 = vmax.f32 %v1778, 0.0
        %v1811 = vmax.f32 %v1779, 0.0
        %v1812 = vmax.f32 %v1780, 0.0
        %v1813 = vmax.f32 %v1781, 0.0
        %v1814 = vmax.f32 %v1782, 0.0
        %v1815 = vmax.f32 %v1783, 0.0
        %v1816 = vmax.f32 %v1784, 0.0
        %1817 = vst [vmem:[#allocation3] sm:$0xff] %v1785
        %1818 = vst [vmem:[#allocation3 + $0x8] sm:$0xff] %v1786
        %1819 = vst [vmem:[#allocation3 + $0x10] sm:$0xff] %v1787
        %1820 = vst [vmem:[#allocation3 + $0x18] sm:$0xff] %v1788
        %1821 = vst [vmem:[#allocation3 + $0x20] sm:$0xff] %v1789
        %1822 = vst [vmem:[#allocation3 + $0x28] sm:$0xff] %v1790
        %1823 = vst [vmem:[#allocation3 + $0x30] sm:$0xff] %v1791
        %1824 = vst [vmem:[#allocation3 + $0x38] sm:$0xff] %v1792
        %1825 = vst [vmem:[#allocation3 + $0x40] sm:$0xff] %v1793
        %1826 = vst [vmem:[#allocation3 + $0x48] sm:$0xff] %v1794
        %1827 = vst [vmem:[#allocation3 + $0x50] sm:$0xff] %v1795
        %1828 = vst [vmem:[#allocation3 + $0x58] sm:$0xff] %v1796
        %1829 = vst [vmem:[#allocation3 + $0x60] sm:$0xff] %v1797
        %1830 = vst [vmem:[#allocation3 + $0x68] sm:$0xff] %v1798
        %1831 = vst [vmem:[#allocation3 + $0x70] sm:$0xff] %v1799
        %1832 = vst [vmem:[#allocation3 + $0x78] sm:$0xff] %v1800
        %1833 = vst [vmem:[#allocation3 + $0x80] sm:$0xff] %v1801
        %1834 = vst [vmem:[#allocation3 + $0x88] sm:$0xff] %v1802
        %1835 = vst [vmem:[#allocation3 + $0x90] sm:$0xff] %v1803
        %1836 = vst [vmem:[#allocation3 + $0x98] sm:$0xff] %v1804
        %1837 = vst [vmem:[#allocation3 + $0xa0] sm:$0xff] %v1805
        %1838 = vst [vmem:[#allocation3 + $0xa8] sm:$0xff] %v1806
        %1839 = vst [vmem:[#allocation3 + $0xb0] sm:$0xff] %v1807
        %1840 = vst [vmem:[#allocation3 + $0xb8] sm:$0xff] %v1808
        %1841 = vst [vmem:[#allocation3 + $0xc0] sm:$0xff] %v1809
        %1842 = vst [vmem:[#allocation3 + $0xc8] sm:$0xff] %v1810
        %1843 = vst [vmem:[#allocation3 + $0xd0] sm:$0xff] %v1811
        %1844 = vst [vmem:[#allocation3 + $0xd8] sm:$0xff] %v1812
        %1845 = vst [vmem:[#allocation3 + $0xe0] sm:$0xff] %v1813
        %1846 = vst [vmem:[#allocation3 + $0xe8] sm:$0xff] %v1814
        %1847 = vst [vmem:[#allocation3 + $0xf0] sm:$0xff] %v1815
        %1848 = vst [vmem:[#allocation3 + $0xf8] sm:$0xff] %v1816
        %v1849 = vld [vmem:[%s3] sm:$0xff]
        %v1850 = vld [vmem:[%s3 + $0x8] sm:$0xff]
        %v1851 = vld [vmem:[%s3 + $0x10] sm:$0xff]
        %v1852 = vld [vmem:[%s3 + $0x18] sm:$0xff]
        %v1853 = vld [vmem:[%s3 + $0x20] sm:$0xff]
        %v1854 = vld [vmem:[%s3 + $0x28] sm:$0xff]
        %v1855 = vld [vmem:[%s3 + $0x30] sm:$0xff]
        %v1856 = vld [vmem:[%s3 + $0x38] sm:$0xff]
        %v1857 = vld [vmem:[%s3 + $0x40] sm:$0xff]
        %v1858 = vld [vmem:[%s3 + $0x48] sm:$0xff]
        %v1859 = vld [vmem:[%s3 + $0x50] sm:$0xff]
        %v1860 = vld [vmem:[%s3 + $0x58] sm:$0xff]
        %v1861 = vld [vmem:[%s3 + $0x60] sm:$0xff]
        %v1862 = vld [vmem:[%s3 + $0x68] sm:$0xff]
        %v1863 = vld [vmem:[%s3 + $0x70] sm:$0xff]
        %v1864 = vld [vmem:[%s3 + $0x78] sm:$0xff]
        %v1865 = vld [vmem:[#allocation3] sm:$0xff]
        %v1866 = vld [vmem:[#allocation3 + $0x8] sm:$0xff]
        %v1867 = vld [vmem:[#allocation3 + $0x10] sm:$0xff]
        %v1868 = vld [vmem:[#allocation3 + $0x18] sm:$0xff]
        %v1869 = vld [vmem:[#allocation3 + $0x20] sm:$0xff]
        %v1870 = vld [vmem:[#allocation3 + $0x28] sm:$0xff]
        %v1871 = vld [vmem:[#allocation3 + $0x30] sm:$0xff]
        %v1872 = vld [vmem:[#allocation3 + $0x38] sm:$0xff]
        %v1873 = vld [vmem:[#allocation3 + $0x40] sm:$0xff]
        %v1874 = vld [vmem:[#allocation3 + $0x48] sm:$0xff]
        %v1875 = vld [vmem:[#allocation3 + $0x50] sm:$0xff]
        %v1876 = vld [vmem:[#allocation3 + $0x58] sm:$0xff]
        %v1877 = vld [vmem:[#allocation3 + $0x60] sm:$0xff]
        %v1878 = vld [vmem:[#allocation3 + $0x68] sm:$0xff]
        %v1879 = vld [vmem:[#allocation3 + $0x70] sm:$0xff]
        %v1880 = vld [vmem:[#allocation3 + $0x78] sm:$0xff]
        %v1881 = vld [vmem:[#allocation3 + $0x80] sm:$0xff]
        %v1882 = vld [vmem:[#allocation3 + $0x88] sm:$0xff]
        %v1883 = vld [vmem:[#allocation3 + $0x90] sm:$0xff]
        %v1884 = vld [vmem:[#allocation3 + $0x98] sm:$0xff]
        %v1885 = vld [vmem:[#allocation3 + $0xa0] sm:$0xff]
        %v1886 = vld [vmem:[#allocation3 + $0xa8] sm:$0xff]
        %v1887 = vld [vmem:[#allocation3 + $0xb0] sm:$0xff]
        %v1888 = vld [vmem:[#allocation3 + $0xb8] sm:$0xff]
        %v1889 = vld [vmem:[#allocation3 + $0xc0] sm:$0xff]
        %v1890 = vld [vmem:[#allocation3 + $0xc8] sm:$0xff]
        %v1891 = vld [vmem:[#allocation3 + $0xd0] sm:$0xff]
        %v1892 = vld [vmem:[#allocation3 + $0xd8] sm:$0xff]
        %v1893 = vld [vmem:[#allocation3 + $0xe0] sm:$0xff]
        %v1894 = vld [vmem:[#allocation3 + $0xe8] sm:$0xff]
        %v1895 = vld [vmem:[#allocation3 + $0xf0] sm:$0xff]
        %v1896 = vld [vmem:[#allocation3 + $0xf8] sm:$0xff]
        %v1897 = vld [vmem:[#allocation2] sm:$0xff]
        %v1898 = vld [vmem:[#allocation2 + $0x8] sm:$0xff]
        %v1899 = vld [vmem:[#allocation2 + $0x10] sm:$0xff]
        %v1900 = vld [vmem:[#allocation2 + $0x18] sm:$0xff]
        %v1901 = vld [vmem:[#allocation2 + $0x20] sm:$0xff]
        %v1902 = vld [vmem:[#allocation2 + $0x28] sm:$0xff]
        %v1903 = vld [vmem:[#allocation2 + $0x30] sm:$0xff]
        %v1904 = vld [vmem:[#allocation2 + $0x38] sm:$0xff]
        %v1905 = vld [vmem:[#allocation2 + $0x40] sm:$0xff]
        %v1906 = vld [vmem:[#allocation2 + $0x48] sm:$0xff]
        %v1907 = vld [vmem:[#allocation2 + $0x50] sm:$0xff]
        %v1908 = vld [vmem:[#allocation2 + $0x58] sm:$0xff]
        %v1909 = vld [vmem:[#allocation2 + $0x60] sm:$0xff]
        %v1910 = vld [vmem:[#allocation2 + $0x68] sm:$0xff]
        %v1911 = vld [vmem:[#allocation2 + $0x70] sm:$0xff]
        %v1912 = vld [vmem:[#allocation2 + $0x78] sm:$0xff]
        %v1913 = vld [vmem:[#allocation2 + $0x80] sm:$0xff]
        %v1914 = vld [vmem:[#allocation2 + $0x88] sm:$0xff]
        %v1915 = vld [vmem:[#allocation2 + $0x90] sm:$0xff]
        %v1916 = vld [vmem:[#allocation2 + $0x98] sm:$0xff]
        %v1917 = vld [vmem:[#allocation2 + $0xa0] sm:$0xff]
        %v1918 = vld [vmem:[#allocation2 + $0xa8] sm:$0xff]
        %v1919 = vld [vmem:[#allocation2 + $0xb0] sm:$0xff]
        %v1920 = vld [vmem:[#allocation2 + $0xb8] sm:$0xff]
        %v1921 = vld [vmem:[#allocation2 + $0xc0] sm:$0xff]
        %v1922 = vld [vmem:[#allocation2 + $0xc8] sm:$0xff]
        %v1923 = vld [vmem:[#allocation2 + $0xd0] sm:$0xff]
        %v1924 = vld [vmem:[#allocation2 + $0xd8] sm:$0xff]
        %v1925 = vld [vmem:[#allocation2 + $0xe0] sm:$0xff]
        %v1926 = vld [vmem:[#allocation2 + $0xe8] sm:$0xff]
        %v1927 = vld [vmem:[#allocation2 + $0xf0] sm:$0xff]
        %v1928 = vld [vmem:[#allocation2 + $0xf8] sm:$0xff]
        %1929 = vmatpush.msra.mxu0 %v1895
        %1930 = vmatpush.msra.mxu0 %v1893
        %1931 = vmatpush.msra.mxu0 %v1891
        %1932 = vmatpush.msra.mxu0 %v1889
        %1933 = vmatpush.msra.mxu0 %v1887
        %1934 = vmatpush.msra.mxu0 %v1885
        %1935 = vmatpush.msra.mxu0 %v1883
        %1936 = vmatpush.msra.mxu0 %v1881
        %1937 = vmatpush.msra.mxu0 %v1879
        %1938 = vmatpush.msra.mxu0 %v1877
        %1939 = vmatpush.msra.mxu0 %v1875
        %1940 = vmatpush.msra.mxu0 %v1873
        %1941 = vmatpush.msra.mxu0 %v1871
        %1942 = vmatpush.msra.mxu0 %v1869
        %1943 = vmatpush.msra.mxu0 %v1867
        %1944 = vmatpush.msra.mxu0 %v1865
        %1945 = vmatmul.f32.gmra.mxu0 %v1849
        %v1946 = vpop.f32.mrf.mxu0
        %v1947 = vadd.f32 %v1897, %v1946
        %1948 = vmatmul.f32.gmra.mxu0 %v1850
        %v1949 = vpop.f32.mrf.mxu0
        %v1950 = vadd.f32 %v1899, %v1949
        %1951 = vmatmul.f32.gmra.mxu0 %v1851
        %v1952 = vpop.f32.mrf.mxu0
        %v1953 = vadd.f32 %v1901, %v1952
        %1954 = vmatmul.f32.gmra.mxu0 %v1852
        %v1955 = vpop.f32.mrf.mxu0
        %v1956 = vadd.f32 %v1903, %v1955
        %1957 = vmatmul.f32.gmra.mxu0 %v1853
        %v1958 = vpop.f32.mrf.mxu0
        %v1959 = vadd.f32 %v1905, %v1958
        %1960 = vmatmul.f32.gmra.mxu0 %v1854
        %v1961 = vpop.f32.mrf.mxu0
        %v1962 = vadd.f32 %v1907, %v1961
        %1963 = vmatmul.f32.gmra.mxu0 %v1855
        %v1964 = vpop.f32.mrf.mxu0
        %v1965 = vadd.f32 %v1909, %v1964
        %1966 = vmatmul.f32.gmra.mxu0 %v1856
        %v1967 = vpop.f32.mrf.mxu0
        %v1968 = vadd.f32 %v1911, %v1967
        %1969 = vmatmul.f32.gmra.mxu0 %v1857
        %v1970 = vpop.f32.mrf.mxu0
        %v1971 = vadd.f32 %v1913, %v1970
        %1972 = vmatmul.f32.gmra.mxu0 %v1858
        %v1973 = vpop.f32.mrf.mxu0
        %v1974 = vadd.f32 %v1915, %v1973
        %1975 = vmatmul.f32.gmra.mxu0 %v1859
        %v1976 = vpop.f32.mrf.mxu0
        %v1977 = vadd.f32 %v1917, %v1976
        %1978 = vmatmul.f32.gmra.mxu0 %v1860
        %v1979 = vpop.f32.mrf.mxu0
        %v1980 = vadd.f32 %v1919, %v1979
        %1981 = vmatmul.f32.gmra.mxu0 %v1861
        %v1982 = vpop.f32.mrf.mxu0
        %v1983 = vadd.f32 %v1921, %v1982
        %1984 = vmatmul.f32.gmra.mxu0 %v1862
        %v1985 = vpop.f32.mrf.mxu0
        %v1986 = vadd.f32 %v1923, %v1985
        %1987 = vmatmul.f32.gmra.mxu0 %v1863
        %v1988 = vpop.f32.mrf.mxu0
        %v1989 = vadd.f32 %v1925, %v1988
        %1990 = vmatmul.f32.gmra.mxu0 %v1864
        %v1991 = vpop.f32.mrf.mxu0
        %v1992 = vadd.f32 %v1927, %v1991
        %1993 = vdwg.mxu0
        %1994 = vmatpush.msra.mxu0 %v1896
        %1995 = vmatpush.msra.mxu0 %v1894
        %1996 = vmatpush.msra.mxu0 %v1892
        %1997 = vmatpush.msra.mxu0 %v1890
        %1998 = vmatpush.msra.mxu0 %v1888
        %1999 = vmatpush.msra.mxu0 %v1886
        %2000 = vmatpush.msra.mxu0 %v1884
        %2001 = vmatpush.msra.mxu0 %v1882
        %2002 = vmatpush.msra.mxu0 %v1880
        %2003 = vmatpush.msra.mxu0 %v1878
        %2004 = vmatpush.msra.mxu0 %v1876
        %2005 = vmatpush.msra.mxu0 %v1874
        %2006 = vmatpush.msra.mxu0 %v1872
        %2007 = vmatpush.msra.mxu0 %v1870
        %2008 = vmatpush.msra.mxu0 %v1868
        %2009 = vmatpush.msra.mxu0 %v1866
        %2010 = vmatmul.f32.gmra.mxu0 %v1849
        %v2011 = vpop.f32.mrf.mxu0
        %v2012 = vadd.f32 %v1898, %v2011
        %2013 = vmatmul.f32.gmra.mxu0 %v1850
        %v2014 = vpop.f32.mrf.mxu0
        %v2015 = vadd.f32 %v1900, %v2014
        %2016 = vmatmul.f32.gmra.mxu0 %v1851
        %v2017 = vpop.f32.mrf.mxu0
        %v2018 = vadd.f32 %v1902, %v2017
        %2019 = vmatmul.f32.gmra.mxu0 %v1852
        %v2020 = vpop.f32.mrf.mxu0
        %v2021 = vadd.f32 %v1904, %v2020
        %2022 = vmatmul.f32.gmra.mxu0 %v1853
        %v2023 = vpop.f32.mrf.mxu0
        %v2024 = vadd.f32 %v1906, %v2023
        %2025 = vmatmul.f32.gmra.mxu0 %v1854
        %v2026 = vpop.f32.mrf.mxu0
        %v2027 = vadd.f32 %v1908, %v2026
        %2028 = vmatmul.f32.gmra.mxu0 %v1855
        %v2029 = vpop.f32.mrf.mxu0
        %v2030 = vadd.f32 %v1910, %v2029
        %2031 = vmatmul.f32.gmra.mxu0 %v1856
        %v2032 = vpop.f32.mrf.mxu0
        %v2033 = vadd.f32 %v1912, %v2032
        %2034 = vmatmul.f32.gmra.mxu0 %v1857
        %v2035 = vpop.f32.mrf.mxu0
        %v2036 = vadd.f32 %v1914, %v2035
        %2037 = vmatmul.f32.gmra.mxu0 %v1858
        %v2038 = vpop.f32.mrf.mxu0
        %v2039 = vadd.f32 %v1916, %v2038
        %2040 = vmatmul.f32.gmra.mxu0 %v1859
        %v2041 = vpop.f32.mrf.mxu0
        %v2042 = vadd.f32 %v1918, %v2041
        %2043 = vmatmul.f32.gmra.mxu0 %v1860
        %v2044 = vpop.f32.mrf.mxu0
        %v2045 = vadd.f32 %v1920, %v2044
        %2046 = vmatmul.f32.gmra.mxu0 %v1861
        %v2047 = vpop.f32.mrf.mxu0
        %v2048 = vadd.f32 %v1922, %v2047
        %2049 = vmatmul.f32.gmra.mxu0 %v1862
        %v2050 = vpop.f32.mrf.mxu0
        %v2051 = vadd.f32 %v1924, %v2050
        %2052 = vmatmul.f32.gmra.mxu0 %v1863
        %v2053 = vpop.f32.mrf.mxu0
        %v2054 = vadd.f32 %v1926, %v2053
        %2055 = vmatmul.f32.gmra.mxu0 %v1864
        %v2056 = vpop.f32.mrf.mxu0
        %v2057 = vadd.f32 %v1928, %v2056
        %2058 = vdwg.mxu0
        %s2059 = sld [smem:[#allocation4 + $0x5]]
        %v2060 = vstv %s2059
        %v2061 = vsub.f32 %v1947, %v2060
        %v2062 = vsub.f32 %v2012, %v2060
        %v2063 = vsub.f32 %v1950, %v2060
        %v2064 = vsub.f32 %v2015, %v2060
        %v2065 = vsub.f32 %v1953, %v2060
        %v2066 = vsub.f32 %v2018, %v2060
        %v2067 = vsub.f32 %v1956, %v2060
        %v2068 = vsub.f32 %v2021, %v2060
        %v2069 = vsub.f32 %v1959, %v2060
        %v2070 = vsub.f32 %v2024, %v2060
        %v2071 = vsub.f32 %v1962, %v2060
        %v2072 = vsub.f32 %v2027, %v2060
        %v2073 = vsub.f32 %v1965, %v2060
        %v2074 = vsub.f32 %v2030, %v2060
        %v2075 = vsub.f32 %v1968, %v2060
        %v2076 = vsub.f32 %v2033, %v2060
        %v2077 = vsub.f32 %v1971, %v2060
        %v2078 = vsub.f32 %v2036, %v2060
        %v2079 = vsub.f32 %v1974, %v2060
        %v2080 = vsub.f32 %v2039, %v2060
        %v2081 = vsub.f32 %v1977, %v2060
        %v2082 = vsub.f32 %v2042, %v2060
        %v2083 = vsub.f32 %v1980, %v2060
        %v2084 = vsub.f32 %v2045, %v2060
        %v2085 = vsub.f32 %v1983, %v2060
        %v2086 = vsub.f32 %v2048, %v2060
        %v2087 = vsub.f32 %v1986, %v2060
        %v2088 = vsub.f32 %v2051, %v2060
        %v2089 = vsub.f32 %v1989, %v2060
        %v2090 = vsub.f32 %v2054, %v2060
        %v2091 = vsub.f32 %v1992, %v2060
        %v2092 = vsub.f32 %v2057, %v2060
        %v2093 = vmax.f32 %v2061, 0.0
        %v2094 = vmax.f32 %v2062, 0.0
        %v2095 = vmax.f32 %v2063, 0.0
        %v2096 = vmax.f32 %v2064, 0.0
        %v2097 = vmax.f32 %v2065, 0.0
        %v2098 = vmax.f32 %v2066, 0.0
        %v2099 = vmax.f32 %v2067, 0.0
        %v2100 = vmax.f32 %v2068, 0.0
        %v2101 = vmax.f32 %v2069, 0.0
        %v2102 = vmax.f32 %v2070, 0.0
        %v2103 = vmax.f32 %v2071, 0.0
        %v2104 = vmax.f32 %v2072, 0.0
        %v2105 = vmax.f32 %v2073, 0.0
        %v2106 = vmax.f32 %v2074, 0.0
        %v2107 = vmax.f32 %v2075, 0.0
        %v2108 = vmax.f32 %v2076, 0.0
        %v2109 = vmax.f32 %v2077, 0.0
        %v2110 = vmax.f32 %v2078, 0.0
        %v2111 = vmax.f32 %v2079, 0.0
        %v2112 = vmax.f32 %v2080, 0.0
        %v2113 = vmax.f32 %v2081, 0.0
        %v2114 = vmax.f32 %v2082, 0.0
        %v2115 = vmax.f32 %v2083, 0.0
        %v2116 = vmax.f32 %v2084, 0.0
        %v2117 = vmax.f32 %v2085, 0.0
        %v2118 = vmax.f32 %v2086, 0.0
        %v2119 = vmax.f32 %v2087, 0.0
        %v2120 = vmax.f32 %v2088, 0.0
        %v2121 = vmax.f32 %v2089, 0.0
        %v2122 = vmax.f32 %v2090, 0.0
        %v2123 = vmax.f32 %v2091, 0.0
        %v2124 = vmax.f32 %v2092, 0.0
        %2125 = vst [vmem:[%s247] sm:$0xff] %v2093
        %2126 = vst [vmem:[%s247 + $0x8] sm:$0xff] %v2094
        %2127 = vst [vmem:[%s247 + $0x10] sm:$0xff] %v2095
        %2128 = vst [vmem:[%s247 + $0x18] sm:$0xff] %v2096
        %2129 = vst [vmem:[%s247 + $0x20] sm:$0xff] %v2097
        %2130 = vst [vmem:[%s247 + $0x28] sm:$0xff] %v2098
        %2131 = vst [vmem:[%s247 + $0x30] sm:$0xff] %v2099
        %2132 = vst [vmem:[%s247 + $0x38] sm:$0xff] %v2100
        %2133 = vst [vmem:[%s247 + $0x40] sm:$0xff] %v2101
        %2134 = vst [vmem:[%s247 + $0x48] sm:$0xff] %v2102
        %2135 = vst [vmem:[%s247 + $0x50] sm:$0xff] %v2103
        %2136 = vst [vmem:[%s247 + $0x58] sm:$0xff] %v2104
        %2137 = vst [vmem:[%s247 + $0x60] sm:$0xff] %v2105
        %2138 = vst [vmem:[%s247 + $0x68] sm:$0xff] %v2106
        %2139 = vst [vmem:[%s247 + $0x70] sm:$0xff] %v2107
        %2140 = vst [vmem:[%s247 + $0x78] sm:$0xff] %v2108
        %2141 = vst [vmem:[%s247 + $0x80] sm:$0xff] %v2109
        %2142 = vst [vmem:[%s247 + $0x88] sm:$0xff] %v2110
        %2143 = vst [vmem:[%s247 + $0x90] sm:$0xff] %v2111
        %2144 = vst [vmem:[%s247 + $0x98] sm:$0xff] %v2112
        %2145 = vst [vmem:[%s247 + $0xa0] sm:$0xff] %v2113
        %2146 = vst [vmem:[%s247 + $0xa8] sm:$0xff] %v2114
        %2147 = vst [vmem:[%s247 + $0xb0] sm:$0xff] %v2115
        %2148 = vst [vmem:[%s247 + $0xb8] sm:$0xff] %v2116
        %2149 = vst [vmem:[%s247 + $0xc0] sm:$0xff] %v2117
        %2150 = vst [vmem:[%s247 + $0xc8] sm:$0xff] %v2118
        %2151 = vst [vmem:[%s247 + $0xd0] sm:$0xff] %v2119
        %2152 = vst [vmem:[%s247 + $0xd8] sm:$0xff] %v2120
        %2153 = vst [vmem:[%s247 + $0xe0] sm:$0xff] %v2121
        %2154 = vst [vmem:[%s247 + $0xe8] sm:$0xff] %v2122
        %2155 = vst [vmem:[%s247 + $0xf0] sm:$0xff] %v2123
        %2156 = vst [vmem:[%s247 + $0xf8] sm:$0xff] %v2124
        %v2157 = vld [vmem:[%s3] sm:$0xff]
        %v2158 = vld [vmem:[%s3 + $0x8] sm:$0xff]
        %v2159 = vld [vmem:[%s3 + $0x10] sm:$0xff]
        %v2160 = vld [vmem:[%s3 + $0x18] sm:$0xff]
        %v2161 = vld [vmem:[%s3 + $0x20] sm:$0xff]
        %v2162 = vld [vmem:[%s3 + $0x28] sm:$0xff]
        %v2163 = vld [vmem:[%s3 + $0x30] sm:$0xff]
        %v2164 = vld [vmem:[%s3 + $0x38] sm:$0xff]
        %v2165 = vld [vmem:[%s3 + $0x40] sm:$0xff]
        %v2166 = vld [vmem:[%s3 + $0x48] sm:$0xff]
        %v2167 = vld [vmem:[%s3 + $0x50] sm:$0xff]
        %v2168 = vld [vmem:[%s3 + $0x58] sm:$0xff]
        %v2169 = vld [vmem:[%s3 + $0x60] sm:$0xff]
        %v2170 = vld [vmem:[%s3 + $0x68] sm:$0xff]
        %v2171 = vld [vmem:[%s3 + $0x70] sm:$0xff]
        %v2172 = vld [vmem:[%s3 + $0x78] sm:$0xff]
        %v2173 = vld [vmem:[%s247] sm:$0xff]
        %v2174 = vld [vmem:[%s247 + $0x8] sm:$0xff]
        %v2175 = vld [vmem:[%s247 + $0x10] sm:$0xff]
        %v2176 = vld [vmem:[%s247 + $0x18] sm:$0xff]
        %v2177 = vld [vmem:[%s247 + $0x20] sm:$0xff]
        %v2178 = vld [vmem:[%s247 + $0x28] sm:$0xff]
        %v2179 = vld [vmem:[%s247 + $0x30] sm:$0xff]
        %v2180 = vld [vmem:[%s247 + $0x38] sm:$0xff]
        %v2181 = vld [vmem:[%s247 + $0x40] sm:$0xff]
        %v2182 = vld [vmem:[%s247 + $0x48] sm:$0xff]
        %v2183 = vld [vmem:[%s247 + $0x50] sm:$0xff]
        %v2184 = vld [vmem:[%s247 + $0x58] sm:$0xff]
        %v2185 = vld [vmem:[%s247 + $0x60] sm:$0xff]
        %v2186 = vld [vmem:[%s247 + $0x68] sm:$0xff]
        %v2187 = vld [vmem:[%s247 + $0x70] sm:$0xff]
        %v2188 = vld [vmem:[%s247 + $0x78] sm:$0xff]
        %v2189 = vld [vmem:[%s247 + $0x80] sm:$0xff]
        %v2190 = vld [vmem:[%s247 + $0x88] sm:$0xff]
        %v2191 = vld [vmem:[%s247 + $0x90] sm:$0xff]
        %v2192 = vld [vmem:[%s247 + $0x98] sm:$0xff]
        %v2193 = vld [vmem:[%s247 + $0xa0] sm:$0xff]
        %v2194 = vld [vmem:[%s247 + $0xa8] sm:$0xff]
        %v2195 = vld [vmem:[%s247 + $0xb0] sm:$0xff]
        %v2196 = vld [vmem:[%s247 + $0xb8] sm:$0xff]
        %v2197 = vld [vmem:[%s247 + $0xc0] sm:$0xff]
        %v2198 = vld [vmem:[%s247 + $0xc8] sm:$0xff]
        %v2199 = vld [vmem:[%s247 + $0xd0] sm:$0xff]
        %v2200 = vld [vmem:[%s247 + $0xd8] sm:$0xff]
        %v2201 = vld [vmem:[%s247 + $0xe0] sm:$0xff]
        %v2202 = vld [vmem:[%s247 + $0xe8] sm:$0xff]
        %v2203 = vld [vmem:[%s247 + $0xf0] sm:$0xff]
        %v2204 = vld [vmem:[%s247 + $0xf8] sm:$0xff]
        %v2205 = vld [vmem:[#allocation2] sm:$0xff]
        %v2206 = vld [vmem:[#allocation2 + $0x8] sm:$0xff]
        %v2207 = vld [vmem:[#allocation2 + $0x10] sm:$0xff]
        %v2208 = vld [vmem:[#allocation2 + $0x18] sm:$0xff]
        %v2209 = vld [vmem:[#allocation2 + $0x20] sm:$0xff]
        %v2210 = vld [vmem:[#allocation2 + $0x28] sm:$0xff]
        %v2211 = vld [vmem:[#allocation2 + $0x30] sm:$0xff]
        %v2212 = vld [vmem:[#allocation2 + $0x38] sm:$0xff]
        %v2213 = vld [vmem:[#allocation2 + $0x40] sm:$0xff]
        %v2214 = vld [vmem:[#allocation2 + $0x48] sm:$0xff]
        %v2215 = vld [vmem:[#allocation2 + $0x50] sm:$0xff]
        %v2216 = vld [vmem:[#allocation2 + $0x58] sm:$0xff]
        %v2217 = vld [vmem:[#allocation2 + $0x60] sm:$0xff]
        %v2218 = vld [vmem:[#allocation2 + $0x68] sm:$0xff]
        %v2219 = vld [vmem:[#allocation2 + $0x70] sm:$0xff]
        %v2220 = vld [vmem:[#allocation2 + $0x78] sm:$0xff]
        %v2221 = vld [vmem:[#allocation2 + $0x80] sm:$0xff]
        %v2222 = vld [vmem:[#allocation2 + $0x88] sm:$0xff]
        %v2223 = vld [vmem:[#allocation2 + $0x90] sm:$0xff]
        %v2224 = vld [vmem:[#allocation2 + $0x98] sm:$0xff]
        %v2225 = vld [vmem:[#allocation2 + $0xa0] sm:$0xff]
        %v2226 = vld [vmem:[#allocation2 + $0xa8] sm:$0xff]
        %v2227 = vld [vmem:[#allocation2 + $0xb0] sm:$0xff]
        %v2228 = vld [vmem:[#allocation2 + $0xb8] sm:$0xff]
        %v2229 = vld [vmem:[#allocation2 + $0xc0] sm:$0xff]
        %v2230 = vld [vmem:[#allocation2 + $0xc8] sm:$0xff]
        %v2231 = vld [vmem:[#allocation2 + $0xd0] sm:$0xff]
        %v2232 = vld [vmem:[#allocation2 + $0xd8] sm:$0xff]
        %v2233 = vld [vmem:[#allocation2 + $0xe0] sm:$0xff]
        %v2234 = vld [vmem:[#allocation2 + $0xe8] sm:$0xff]
        %v2235 = vld [vmem:[#allocation2 + $0xf0] sm:$0xff]
        %v2236 = vld [vmem:[#allocation2 + $0xf8] sm:$0xff]
        %2237 = vmatpush.msra.mxu0 %v2203
        %2238 = vmatpush.msra.mxu0 %v2201
        %2239 = vmatpush.msra.mxu0 %v2199
        %2240 = vmatpush.msra.mxu0 %v2197
        %2241 = vmatpush.msra.mxu0 %v2195
        %2242 = vmatpush.msra.mxu0 %v2193
        %2243 = vmatpush.msra.mxu0 %v2191
        %2244 = vmatpush.msra.mxu0 %v2189
        %2245 = vmatpush.msra.mxu0 %v2187
        %2246 = vmatpush.msra.mxu0 %v2185
        %2247 = vmatpush.msra.mxu0 %v2183
        %2248 = vmatpush.msra.mxu0 %v2181
        %2249 = vmatpush.msra.mxu0 %v2179
        %2250 = vmatpush.msra.mxu0 %v2177
        %2251 = vmatpush.msra.mxu0 %v2175
        %2252 = vmatpush.msra.mxu0 %v2173
        %2253 = vmatmul.f32.gmra.mxu0 %v2157
        %v2254 = vpop.f32.mrf.mxu0
        %v2255 = vadd.f32 %v2205, %v2254
        %2256 = vmatmul.f32.gmra.mxu0 %v2158
        %v2257 = vpop.f32.mrf.mxu0
        %v2258 = vadd.f32 %v2207, %v2257
        %2259 = vmatmul.f32.gmra.mxu0 %v2159
        %v2260 = vpop.f32.mrf.mxu0
        %v2261 = vadd.f32 %v2209, %v2260
        %2262 = vmatmul.f32.gmra.mxu0 %v2160
        %v2263 = vpop.f32.mrf.mxu0
        %v2264 = vadd.f32 %v2211, %v2263
        %2265 = vmatmul.f32.gmra.mxu0 %v2161
        %v2266 = vpop.f32.mrf.mxu0
        %v2267 = vadd.f32 %v2213, %v2266
        %2268 = vmatmul.f32.gmra.mxu0 %v2162
        %v2269 = vpop.f32.mrf.mxu0
        %v2270 = vadd.f32 %v2215, %v2269
        %2271 = vmatmul.f32.gmra.mxu0 %v2163
        %v2272 = vpop.f32.mrf.mxu0
        %v2273 = vadd.f32 %v2217, %v2272
        %2274 = vmatmul.f32.gmra.mxu0 %v2164
        %v2275 = vpop.f32.mrf.mxu0
        %v2276 = vadd.f32 %v2219, %v2275
        %2277 = vmatmul.f32.gmra.mxu0 %v2165
        %v2278 = vpop.f32.mrf.mxu0
        %v2279 = vadd.f32 %v2221, %v2278
        %2280 = vmatmul.f32.gmra.mxu0 %v2166
        %v2281 = vpop.f32.mrf.mxu0
        %v2282 = vadd.f32 %v2223, %v2281
        %2283 = vmatmul.f32.gmra.mxu0 %v2167
        %v2284 = vpop.f32.mrf.mxu0
        %v2285 = vadd.f32 %v2225, %v2284
        %2286 = vmatmul.f32.gmra.mxu0 %v2168
        %v2287 = vpop.f32.mrf.mxu0
        %v2288 = vadd.f32 %v2227, %v2287
        %2289 = vmatmul.f32.gmra.mxu0 %v2169
        %v2290 = vpop.f32.mrf.mxu0
        %v2291 = vadd.f32 %v2229, %v2290
        %2292 = vmatmul.f32.gmra.mxu0 %v2170
        %v2293 = vpop.f32.mrf.mxu0
        %v2294 = vadd.f32 %v2231, %v2293
        %2295 = vmatmul.f32.gmra.mxu0 %v2171
        %v2296 = vpop.f32.mrf.mxu0
        %v2297 = vadd.f32 %v2233, %v2296
        %2298 = vmatmul.f32.gmra.mxu0 %v2172
        %v2299 = vpop.f32.mrf.mxu0
        %v2300 = vadd.f32 %v2235, %v2299
        %2301 = vdwg.mxu0
        %2302 = vmatpush.msra.mxu0 %v2204
        %2303 = vmatpush.msra.mxu0 %v2202
        %2304 = vmatpush.msra.mxu0 %v2200
        %2305 = vmatpush.msra.mxu0 %v2198
        %2306 = vmatpush.msra.mxu0 %v2196
        %2307 = vmatpush.msra.mxu0 %v2194
        %2308 = vmatpush.msra.mxu0 %v2192
        %2309 = vmatpush.msra.mxu0 %v2190
        %2310 = vmatpush.msra.mxu0 %v2188
        %2311 = vmatpush.msra.mxu0 %v2186
        %2312 = vmatpush.msra.mxu0 %v2184
        %2313 = vmatpush.msra.mxu0 %v2182
        %2314 = vmatpush.msra.mxu0 %v2180
        %2315 = vmatpush.msra.mxu0 %v2178
        %2316 = vmatpush.msra.mxu0 %v2176
        %2317 = vmatpush.msra.mxu0 %v2174
        %2318 = vmatmul.f32.gmra.mxu0 %v2157
        %v2319 = vpop.f32.mrf.mxu0
        %v2320 = vadd.f32 %v2206, %v2319
        %2321 = vmatmul.f32.gmra.mxu0 %v2158
        %v2322 = vpop.f32.mrf.mxu0
        %v2323 = vadd.f32 %v2208, %v2322
        %2324 = vmatmul.f32.gmra.mxu0 %v2159
        %v2325 = vpop.f32.mrf.mxu0
        %v2326 = vadd.f32 %v2210, %v2325
        %2327 = vmatmul.f32.gmra.mxu0 %v2160
        %v2328 = vpop.f32.mrf.mxu0
        %v2329 = vadd.f32 %v2212, %v2328
        %2330 = vmatmul.f32.gmra.mxu0 %v2161
        %v2331 = vpop.f32.mrf.mxu0
        %v2332 = vadd.f32 %v2214, %v2331
        %2333 = vmatmul.f32.gmra.mxu0 %v2162
        %v2334 = vpop.f32.mrf.mxu0
        %v2335 = vadd.f32 %v2216, %v2334
        %2336 = vmatmul.f32.gmra.mxu0 %v2163
        %v2337 = vpop.f32.mrf.mxu0
        %v2338 = vadd.f32 %v2218, %v2337
        %2339 = vmatmul.f32.gmra.mxu0 %v2164
        %v2340 = vpop.f32.mrf.mxu0
        %v2341 = vadd.f32 %v2220, %v2340
        %2342 = vmatmul.f32.gmra.mxu0 %v2165
        %v2343 = vpop.f32.mrf.mxu0
        %v2344 = vadd.f32 %v2222, %v2343
        %2345 = vmatmul.f32.gmra.mxu0 %v2166
        %v2346 = vpop.f32.mrf.mxu0
        %v2347 = vadd.f32 %v2224, %v2346
        %2348 = vmatmul.f32.gmra.mxu0 %v2167
        %v2349 = vpop.f32.mrf.mxu0
        %v2350 = vadd.f32 %v2226, %v2349
        %2351 = vmatmul.f32.gmra.mxu0 %v2168
        %v2352 = vpop.f32.mrf.mxu0
        %v2353 = vadd.f32 %v2228, %v2352
        %2354 = vmatmul.f32.gmra.mxu0 %v2169
        %v2355 = vpop.f32.mrf.mxu0
        %v2356 = vadd.f32 %v2230, %v2355
        %2357 = vmatmul.f32.gmra.mxu0 %v2170
        %v2358 = vpop.f32.mrf.mxu0
        %v2359 = vadd.f32 %v2232, %v2358
        %2360 = vmatmul.f32.gmra.mxu0 %v2171
        %v2361 = vpop.f32.mrf.mxu0
        %v2362 = vadd.f32 %v2234, %v2361
        %2363 = vmatmul.f32.gmra.mxu0 %v2172
        %v2364 = vpop.f32.mrf.mxu0
        %v2365 = vadd.f32 %v2236, %v2364
        %2366 = vdwg.mxu0
        %s2367 = sld [smem:[#allocation4 + $0x6]]
        %v2368 = vstv %s2367
        %v2369 = vsub.f32 %v2255, %v2368
        %v2370 = vsub.f32 %v2320, %v2368
        %v2371 = vsub.f32 %v2258, %v2368
        %v2372 = vsub.f32 %v2323, %v2368
        %v2373 = vsub.f32 %v2261, %v2368
        %v2374 = vsub.f32 %v2326, %v2368
        %v2375 = vsub.f32 %v2264, %v2368
        %v2376 = vsub.f32 %v2329, %v2368
        %v2377 = vsub.f32 %v2267, %v2368
        %v2378 = vsub.f32 %v2332, %v2368
        %v2379 = vsub.f32 %v2270, %v2368
        %v2380 = vsub.f32 %v2335, %v2368
        %v2381 = vsub.f32 %v2273, %v2368
        %v2382 = vsub.f32 %v2338, %v2368
        %v2383 = vsub.f32 %v2276, %v2368
        %v2384 = vsub.f32 %v2341, %v2368
        %v2385 = vsub.f32 %v2279, %v2368
        %v2386 = vsub.f32 %v2344, %v2368
        %v2387 = vsub.f32 %v2282, %v2368
        %v2388 = vsub.f32 %v2347, %v2368
        %v2389 = vsub.f32 %v2285, %v2368
        %v2390 = vsub.f32 %v2350, %v2368
        %v2391 = vsub.f32 %v2288, %v2368
        %v2392 = vsub.f32 %v2353, %v2368
        %v2393 = vsub.f32 %v2291, %v2368
        %v2394 = vsub.f32 %v2356, %v2368
        %v2395 = vsub.f32 %v2294, %v2368
        %v2396 = vsub.f32 %v2359, %v2368
        %v2397 = vsub.f32 %v2297, %v2368
        %v2398 = vsub.f32 %v2362, %v2368
        %v2399 = vsub.f32 %v2300, %v2368
        %v2400 = vsub.f32 %v2365, %v2368
        %v2401 = vmax.f32 %v2369, 0.0
        %v2402 = vmax.f32 %v2370, 0.0
        %v2403 = vmax.f32 %v2371, 0.0
        %v2404 = vmax.f32 %v2372, 0.0
        %v2405 = vmax.f32 %v2373, 0.0
        %v2406 = vmax.f32 %v2374, 0.0
        %v2407 = vmax.f32 %v2375, 0.0
        %v2408 = vmax.f32 %v2376, 0.0
        %v2409 = vmax.f32 %v2377, 0.0
        %v2410 = vmax.f32 %v2378, 0.0
        %v2411 = vmax.f32 %v2379, 0.0
        %v2412 = vmax.f32 %v2380, 0.0
        %v2413 = vmax.f32 %v2381, 0.0
        %v2414 = vmax.f32 %v2382, 0.0
        %v2415 = vmax.f32 %v2383, 0.0
        %v2416 = vmax.f32 %v2384, 0.0
        %v2417 = vmax.f32 %v2385, 0.0
        %v2418 = vmax.f32 %v2386, 0.0
        %v2419 = vmax.f32 %v2387, 0.0
        %v2420 = vmax.f32 %v2388, 0.0
        %v2421 = vmax.f32 %v2389, 0.0
        %v2422 = vmax.f32 %v2390, 0.0
        %v2423 = vmax.f32 %v2391, 0.0
        %v2424 = vmax.f32 %v2392, 0.0
        %v2425 = vmax.f32 %v2393, 0.0
        %v2426 = vmax.f32 %v2394, 0.0
        %v2427 = vmax.f32 %v2395, 0.0
        %v2428 = vmax.f32 %v2396, 0.0
        %v2429 = vmax.f32 %v2397, 0.0
        %v2430 = vmax.f32 %v2398, 0.0
        %v2431 = vmax.f32 %v2399, 0.0
        %v2432 = vmax.f32 %v2400, 0.0
        %2433 = vst [vmem:[#allocation3] sm:$0xff] %v2401
        %2434 = vst [vmem:[#allocation3 + $0x8] sm:$0xff] %v2402
        %2435 = vst [vmem:[#allocation3 + $0x10] sm:$0xff] %v2403
        %2436 = vst [vmem:[#allocation3 + $0x18] sm:$0xff] %v2404
        %2437 = vst [vmem:[#allocation3 + $0x20] sm:$0xff] %v2405
        %2438 = vst [vmem:[#allocation3 + $0x28] sm:$0xff] %v2406
        %2439 = vst [vmem:[#allocation3 + $0x30] sm:$0xff] %v2407
        %2440 = vst [vmem:[#allocation3 + $0x38] sm:$0xff] %v2408
        %2441 = vst [vmem:[#allocation3 + $0x40] sm:$0xff] %v2409
        %2442 = vst [vmem:[#allocation3 + $0x48] sm:$0xff] %v2410
        %2443 = vst [vmem:[#allocation3 + $0x50] sm:$0xff] %v2411
        %2444 = vst [vmem:[#allocation3 + $0x58] sm:$0xff] %v2412
        %2445 = vst [vmem:[#allocation3 + $0x60] sm:$0xff] %v2413
        %2446 = vst [vmem:[#allocation3 + $0x68] sm:$0xff] %v2414
        %2447 = vst [vmem:[#allocation3 + $0x70] sm:$0xff] %v2415
        %2448 = vst [vmem:[#allocation3 + $0x78] sm:$0xff] %v2416
        %2449 = vst [vmem:[#allocation3 + $0x80] sm:$0xff] %v2417
        %2450 = vst [vmem:[#allocation3 + $0x88] sm:$0xff] %v2418
        %2451 = vst [vmem:[#allocation3 + $0x90] sm:$0xff] %v2419
        %2452 = vst [vmem:[#allocation3 + $0x98] sm:$0xff] %v2420
        %2453 = vst [vmem:[#allocation3 + $0xa0] sm:$0xff] %v2421
        %2454 = vst [vmem:[#allocation3 + $0xa8] sm:$0xff] %v2422
        %2455 = vst [vmem:[#allocation3 + $0xb0] sm:$0xff] %v2423
        %2456 = vst [vmem:[#allocation3 + $0xb8] sm:$0xff] %v2424
        %2457 = vst [vmem:[#allocation3 + $0xc0] sm:$0xff] %v2425
        %2458 = vst [vmem:[#allocation3 + $0xc8] sm:$0xff] %v2426
        %2459 = vst [vmem:[#allocation3 + $0xd0] sm:$0xff] %v2427
        %2460 = vst [vmem:[#allocation3 + $0xd8] sm:$0xff] %v2428
        %2461 = vst [vmem:[#allocation3 + $0xe0] sm:$0xff] %v2429
        %2462 = vst [vmem:[#allocation3 + $0xe8] sm:$0xff] %v2430
        %2463 = vst [vmem:[#allocation3 + $0xf0] sm:$0xff] %v2431
        %2464 = vst [vmem:[#allocation3 + $0xf8] sm:$0xff] %v2432
        %v2465 = vld [vmem:[%s3] sm:$0xff]
        %v2466 = vld [vmem:[%s3 + $0x8] sm:$0xff]
        %v2467 = vld [vmem:[%s3 + $0x10] sm:$0xff]
        %v2468 = vld [vmem:[%s3 + $0x18] sm:$0xff]
        %v2469 = vld [vmem:[%s3 + $0x20] sm:$0xff]
        %v2470 = vld [vmem:[%s3 + $0x28] sm:$0xff]
        %v2471 = vld [vmem:[%s3 + $0x30] sm:$0xff]
        %v2472 = vld [vmem:[%s3 + $0x38] sm:$0xff]
        %v2473 = vld [vmem:[%s3 + $0x40] sm:$0xff]
        %v2474 = vld [vmem:[%s3 + $0x48] sm:$0xff]
        %v2475 = vld [vmem:[%s3 + $0x50] sm:$0xff]
        %v2476 = vld [vmem:[%s3 + $0x58] sm:$0xff]
        %v2477 = vld [vmem:[%s3 + $0x60] sm:$0xff]
        %v2478 = vld [vmem:[%s3 + $0x68] sm:$0xff]
        %v2479 = vld [vmem:[%s3 + $0x70] sm:$0xff]
        %v2480 = vld [vmem:[%s3 + $0x78] sm:$0xff]
        %v2481 = vld [vmem:[#allocation3] sm:$0xff]
        %v2482 = vld [vmem:[#allocation3 + $0x8] sm:$0xff]
        %v2483 = vld [vmem:[#allocation3 + $0x10] sm:$0xff]
        %v2484 = vld [vmem:[#allocation3 + $0x18] sm:$0xff]
        %v2485 = vld [vmem:[#allocation3 + $0x20] sm:$0xff]
        %v2486 = vld [vmem:[#allocation3 + $0x28] sm:$0xff]
        %v2487 = vld [vmem:[#allocation3 + $0x30] sm:$0xff]
        %v2488 = vld [vmem:[#allocation3 + $0x38] sm:$0xff]
        %v2489 = vld [vmem:[#allocation3 + $0x40] sm:$0xff]
        %v2490 = vld [vmem:[#allocation3 + $0x48] sm:$0xff]
        %v2491 = vld [vmem:[#allocation3 + $0x50] sm:$0xff]
        %v2492 = vld [vmem:[#allocation3 + $0x58] sm:$0xff]
        %v2493 = vld [vmem:[#allocation3 + $0x60] sm:$0xff]
        %v2494 = vld [vmem:[#allocation3 + $0x68] sm:$0xff]
        %v2495 = vld [vmem:[#allocation3 + $0x70] sm:$0xff]
        %v2496 = vld [vmem:[#allocation3 + $0x78] sm:$0xff]
        %v2497 = vld [vmem:[#allocation3 + $0x80] sm:$0xff]
        %v2498 = vld [vmem:[#allocation3 + $0x88] sm:$0xff]
        %v2499 = vld [vmem:[#allocation3 + $0x90] sm:$0xff]
        %v2500 = vld [vmem:[#allocation3 + $0x98] sm:$0xff]
        %v2501 = vld [vmem:[#allocation3 + $0xa0] sm:$0xff]
        %v2502 = vld [vmem:[#allocation3 + $0xa8] sm:$0xff]
        %v2503 = vld [vmem:[#allocation3 + $0xb0] sm:$0xff]
        %v2504 = vld [vmem:[#allocation3 + $0xb8] sm:$0xff]
        %v2505 = vld [vmem:[#allocation3 + $0xc0] sm:$0xff]
        %v2506 = vld [vmem:[#allocation3 + $0xc8] sm:$0xff]
        %v2507 = vld [vmem:[#allocation3 + $0xd0] sm:$0xff]
        %v2508 = vld [vmem:[#allocation3 + $0xd8] sm:$0xff]
        %v2509 = vld [vmem:[#allocation3 + $0xe0] sm:$0xff]
        %v2510 = vld [vmem:[#allocation3 + $0xe8] sm:$0xff]
        %v2511 = vld [vmem:[#allocation3 + $0xf0] sm:$0xff]
        %v2512 = vld [vmem:[#allocation3 + $0xf8] sm:$0xff]
        %v2513 = vld [vmem:[#allocation2] sm:$0xff]
        %v2514 = vld [vmem:[#allocation2 + $0x8] sm:$0xff]
        %v2515 = vld [vmem:[#allocation2 + $0x10] sm:$0xff]
        %v2516 = vld [vmem:[#allocation2 + $0x18] sm:$0xff]
        %v2517 = vld [vmem:[#allocation2 + $0x20] sm:$0xff]
        %v2518 = vld [vmem:[#allocation2 + $0x28] sm:$0xff]
        %v2519 = vld [vmem:[#allocation2 + $0x30] sm:$0xff]
        %v2520 = vld [vmem:[#allocation2 + $0x38] sm:$0xff]
        %v2521 = vld [vmem:[#allocation2 + $0x40] sm:$0xff]
        %v2522 = vld [vmem:[#allocation2 + $0x48] sm:$0xff]
        %v2523 = vld [vmem:[#allocation2 + $0x50] sm:$0xff]
        %v2524 = vld [vmem:[#allocation2 + $0x58] sm:$0xff]
        %v2525 = vld [vmem:[#allocation2 + $0x60] sm:$0xff]
        %v2526 = vld [vmem:[#allocation2 + $0x68] sm:$0xff]
        %v2527 = vld [vmem:[#allocation2 + $0x70] sm:$0xff]
        %v2528 = vld [vmem:[#allocation2 + $0x78] sm:$0xff]
        %v2529 = vld [vmem:[#allocation2 + $0x80] sm:$0xff]
        %v2530 = vld [vmem:[#allocation2 + $0x88] sm:$0xff]
        %v2531 = vld [vmem:[#allocation2 + $0x90] sm:$0xff]
        %v2532 = vld [vmem:[#allocation2 + $0x98] sm:$0xff]
        %v2533 = vld [vmem:[#allocation2 + $0xa0] sm:$0xff]
        %v2534 = vld [vmem:[#allocation2 + $0xa8] sm:$0xff]
        %v2535 = vld [vmem:[#allocation2 + $0xb0] sm:$0xff]
        %v2536 = vld [vmem:[#allocation2 + $0xb8] sm:$0xff]
        %v2537 = vld [vmem:[#allocation2 + $0xc0] sm:$0xff]
        %v2538 = vld [vmem:[#allocation2 + $0xc8] sm:$0xff]
        %v2539 = vld [vmem:[#allocation2 + $0xd0] sm:$0xff]
        %v2540 = vld [vmem:[#allocation2 + $0xd8] sm:$0xff]
        %v2541 = vld [vmem:[#allocation2 + $0xe0] sm:$0xff]
        %v2542 = vld [vmem:[#allocation2 + $0xe8] sm:$0xff]
        %v2543 = vld [vmem:[#allocation2 + $0xf0] sm:$0xff]
        %v2544 = vld [vmem:[#allocation2 + $0xf8] sm:$0xff]
        %2545 = vmatpush.msra.mxu0 %v2511
        %2546 = vmatpush.msra.mxu0 %v2509
        %2547 = vmatpush.msra.mxu0 %v2507
        %2548 = vmatpush.msra.mxu0 %v2505
        %2549 = vmatpush.msra.mxu0 %v2503
        %2550 = vmatpush.msra.mxu0 %v2501
        %2551 = vmatpush.msra.mxu0 %v2499
        %2552 = vmatpush.msra.mxu0 %v2497
        %2553 = vmatpush.msra.mxu0 %v2495
        %2554 = vmatpush.msra.mxu0 %v2493
        %2555 = vmatpush.msra.mxu0 %v2491
        %2556 = vmatpush.msra.mxu0 %v2489
        %2557 = vmatpush.msra.mxu0 %v2487
        %2558 = vmatpush.msra.mxu0 %v2485
        %2559 = vmatpush.msra.mxu0 %v2483
        %2560 = vmatpush.msra.mxu0 %v2481
        %2561 = vmatmul.f32.gmra.mxu0 %v2465
        %v2562 = vpop.f32.mrf.mxu0
        %v2563 = vadd.f32 %v2513, %v2562
        %2564 = vmatmul.f32.gmra.mxu0 %v2466
        %v2565 = vpop.f32.mrf.mxu0
        %v2566 = vadd.f32 %v2515, %v2565
        %2567 = vmatmul.f32.gmra.mxu0 %v2467
        %v2568 = vpop.f32.mrf.mxu0
        %v2569 = vadd.f32 %v2517, %v2568
        %2570 = vmatmul.f32.gmra.mxu0 %v2468
        %v2571 = vpop.f32.mrf.mxu0
        %v2572 = vadd.f32 %v2519, %v2571
        %2573 = vmatmul.f32.gmra.mxu0 %v2469
        %v2574 = vpop.f32.mrf.mxu0
        %v2575 = vadd.f32 %v2521, %v2574
        %2576 = vmatmul.f32.gmra.mxu0 %v2470
        %v2577 = vpop.f32.mrf.mxu0
        %v2578 = vadd.f32 %v2523, %v2577
        %2579 = vmatmul.f32.gmra.mxu0 %v2471
        %v2580 = vpop.f32.mrf.mxu0
        %v2581 = vadd.f32 %v2525, %v2580
        %2582 = vmatmul.f32.gmra.mxu0 %v2472
        %v2583 = vpop.f32.mrf.mxu0
        %v2584 = vadd.f32 %v2527, %v2583
        %2585 = vmatmul.f32.gmra.mxu0 %v2473
        %v2586 = vpop.f32.mrf.mxu0
        %v2587 = vadd.f32 %v2529, %v2586
        %2588 = vmatmul.f32.gmra.mxu0 %v2474
        %v2589 = vpop.f32.mrf.mxu0
        %v2590 = vadd.f32 %v2531, %v2589
        %2591 = vmatmul.f32.gmra.mxu0 %v2475
        %v2592 = vpop.f32.mrf.mxu0
        %v2593 = vadd.f32 %v2533, %v2592
        %2594 = vmatmul.f32.gmra.mxu0 %v2476
        %v2595 = vpop.f32.mrf.mxu0
        %v2596 = vadd.f32 %v2535, %v2595
        %2597 = vmatmul.f32.gmra.mxu0 %v2477
        %v2598 = vpop.f32.mrf.mxu0
        %v2599 = vadd.f32 %v2537, %v2598
        %2600 = vmatmul.f32.gmra.mxu0 %v2478
        %v2601 = vpop.f32.mrf.mxu0
        %v2602 = vadd.f32 %v2539, %v2601
        %2603 = vmatmul.f32.gmra.mxu0 %v2479
        %v2604 = vpop.f32.mrf.mxu0
        %v2605 = vadd.f32 %v2541, %v2604
        %2606 = vmatmul.f32.gmra.mxu0 %v2480
        %v2607 = vpop.f32.mrf.mxu0
        %v2608 = vadd.f32 %v2543, %v2607
        %2609 = vdwg.mxu0
        %2610 = vmatpush.msra.mxu0 %v2512
        %2611 = vmatpush.msra.mxu0 %v2510
        %2612 = vmatpush.msra.mxu0 %v2508
        %2613 = vmatpush.msra.mxu0 %v2506
        %2614 = vmatpush.msra.mxu0 %v2504
        %2615 = vmatpush.msra.mxu0 %v2502
        %2616 = vmatpush.msra.mxu0 %v2500
        %2617 = vmatpush.msra.mxu0 %v2498
        %2618 = vmatpush.msra.mxu0 %v2496
        %2619 = vmatpush.msra.mxu0 %v2494
        %2620 = vmatpush.msra.mxu0 %v2492
        %2621 = vmatpush.msra.mxu0 %v2490
        %2622 = vmatpush.msra.mxu0 %v2488
        %2623 = vmatpush.msra.mxu0 %v2486
        %2624 = vmatpush.msra.mxu0 %v2484
        %2625 = vmatpush.msra.mxu0 %v2482
        %2626 = vmatmul.f32.gmra.mxu0 %v2465
        %v2627 = vpop.f32.mrf.mxu0
        %v2628 = vadd.f32 %v2514, %v2627
        %2629 = vmatmul.f32.gmra.mxu0 %v2466
        %v2630 = vpop.f32.mrf.mxu0
        %v2631 = vadd.f32 %v2516, %v2630
        %2632 = vmatmul.f32.gmra.mxu0 %v2467
        %v2633 = vpop.f32.mrf.mxu0
        %v2634 = vadd.f32 %v2518, %v2633
        %2635 = vmatmul.f32.gmra.mxu0 %v2468
        %v2636 = vpop.f32.mrf.mxu0
        %v2637 = vadd.f32 %v2520, %v2636
        %2638 = vmatmul.f32.gmra.mxu0 %v2469
        %v2639 = vpop.f32.mrf.mxu0
        %v2640 = vadd.f32 %v2522, %v2639
        %2641 = vmatmul.f32.gmra.mxu0 %v2470
        %v2642 = vpop.f32.mrf.mxu0
        %v2643 = vadd.f32 %v2524, %v2642
        %2644 = vmatmul.f32.gmra.mxu0 %v2471
        %v2645 = vpop.f32.mrf.mxu0
        %v2646 = vadd.f32 %v2526, %v2645
        %2647 = vmatmul.f32.gmra.mxu0 %v2472
        %v2648 = vpop.f32.mrf.mxu0
        %v2649 = vadd.f32 %v2528, %v2648
        %2650 = vmatmul.f32.gmra.mxu0 %v2473
        %v2651 = vpop.f32.mrf.mxu0
        %v2652 = vadd.f32 %v2530, %v2651
        %2653 = vmatmul.f32.gmra.mxu0 %v2474
        %v2654 = vpop.f32.mrf.mxu0
        %v2655 = vadd.f32 %v2532, %v2654
        %2656 = vmatmul.f32.gmra.mxu0 %v2475
        %v2657 = vpop.f32.mrf.mxu0
        %v2658 = vadd.f32 %v2534, %v2657
        %2659 = vmatmul.f32.gmra.mxu0 %v2476
        %v2660 = vpop.f32.mrf.mxu0
        %v2661 = vadd.f32 %v2536, %v2660
        %2662 = vmatmul.f32.gmra.mxu0 %v2477
        %v2663 = vpop.f32.mrf.mxu0
        %v2664 = vadd.f32 %v2538, %v2663
        %2665 = vmatmul.f32.gmra.mxu0 %v2478
        %v2666 = vpop.f32.mrf.mxu0
        %v2667 = vadd.f32 %v2540, %v2666
        %2668 = vmatmul.f32.gmra.mxu0 %v2479
        %v2669 = vpop.f32.mrf.mxu0
        %v2670 = vadd.f32 %v2542, %v2669
        %2671 = vmatmul.f32.gmra.mxu0 %v2480
        %v2672 = vpop.f32.mrf.mxu0
        %v2673 = vadd.f32 %v2544, %v2672
        %2674 = vdwg.mxu0
        %s2675 = sld [smem:[#allocation4 + $0x7]]
        %v2676 = vstv %s2675
        %v2677 = vsub.f32 %v2563, %v2676
        %v2678 = vsub.f32 %v2628, %v2676
        %v2679 = vsub.f32 %v2566, %v2676
        %v2680 = vsub.f32 %v2631, %v2676
        %v2681 = vsub.f32 %v2569, %v2676
        %v2682 = vsub.f32 %v2634, %v2676
        %v2683 = vsub.f32 %v2572, %v2676
        %v2684 = vsub.f32 %v2637, %v2676
        %v2685 = vsub.f32 %v2575, %v2676
        %v2686 = vsub.f32 %v2640, %v2676
        %v2687 = vsub.f32 %v2578, %v2676
        %v2688 = vsub.f32 %v2643, %v2676
        %v2689 = vsub.f32 %v2581, %v2676
        %v2690 = vsub.f32 %v2646, %v2676
        %v2691 = vsub.f32 %v2584, %v2676
        %v2692 = vsub.f32 %v2649, %v2676
        %v2693 = vsub.f32 %v2587, %v2676
        %v2694 = vsub.f32 %v2652, %v2676
        %v2695 = vsub.f32 %v2590, %v2676
        %v2696 = vsub.f32 %v2655, %v2676
        %v2697 = vsub.f32 %v2593, %v2676
        %v2698 = vsub.f32 %v2658, %v2676
        %v2699 = vsub.f32 %v2596, %v2676
        %v2700 = vsub.f32 %v2661, %v2676
        %v2701 = vsub.f32 %v2599, %v2676
        %v2702 = vsub.f32 %v2664, %v2676
        %v2703 = vsub.f32 %v2602, %v2676
        %v2704 = vsub.f32 %v2667, %v2676
        %v2705 = vsub.f32 %v2605, %v2676
        %v2706 = vsub.f32 %v2670, %v2676
        %v2707 = vsub.f32 %v2608, %v2676
        %v2708 = vsub.f32 %v2673, %v2676
        %v2709 = vmax.f32 %v2677, 0.0
        %v2710 = vmax.f32 %v2678, 0.0
        %v2711 = vmax.f32 %v2679, 0.0
        %v2712 = vmax.f32 %v2680, 0.0
        %v2713 = vmax.f32 %v2681, 0.0
        %v2714 = vmax.f32 %v2682, 0.0
        %v2715 = vmax.f32 %v2683, 0.0
        %v2716 = vmax.f32 %v2684, 0.0
        %v2717 = vmax.f32 %v2685, 0.0
        %v2718 = vmax.f32 %v2686, 0.0
        %v2719 = vmax.f32 %v2687, 0.0
        %v2720 = vmax.f32 %v2688, 0.0
        %v2721 = vmax.f32 %v2689, 0.0
        %v2722 = vmax.f32 %v2690, 0.0
        %v2723 = vmax.f32 %v2691, 0.0
        %v2724 = vmax.f32 %v2692, 0.0
        %v2725 = vmax.f32 %v2693, 0.0
        %v2726 = vmax.f32 %v2694, 0.0
        %v2727 = vmax.f32 %v2695, 0.0
        %v2728 = vmax.f32 %v2696, 0.0
        %v2729 = vmax.f32 %v2697, 0.0
        %v2730 = vmax.f32 %v2698, 0.0
        %v2731 = vmax.f32 %v2699, 0.0
        %v2732 = vmax.f32 %v2700, 0.0
        %v2733 = vmax.f32 %v2701, 0.0
        %v2734 = vmax.f32 %v2702, 0.0
        %v2735 = vmax.f32 %v2703, 0.0
        %v2736 = vmax.f32 %v2704, 0.0
        %v2737 = vmax.f32 %v2705, 0.0
        %v2738 = vmax.f32 %v2706, 0.0
        %v2739 = vmax.f32 %v2707, 0.0
        %v2740 = vmax.f32 %v2708, 0.0
        %2741 = vst [vmem:[%s247] sm:$0xff] %v2709
        %2742 = vst [vmem:[%s247 + $0x8] sm:$0xff] %v2710
        %2743 = vst [vmem:[%s247 + $0x10] sm:$0xff] %v2711
        %2744 = vst [vmem:[%s247 + $0x18] sm:$0xff] %v2712
        %2745 = vst [vmem:[%s247 + $0x20] sm:$0xff] %v2713
        %2746 = vst [vmem:[%s247 + $0x28] sm:$0xff] %v2714
        %2747 = vst [vmem:[%s247 + $0x30] sm:$0xff] %v2715
        %2748 = vst [vmem:[%s247 + $0x38] sm:$0xff] %v2716
        %2749 = vst [vmem:[%s247 + $0x40] sm:$0xff] %v2717
        %2750 = vst [vmem:[%s247 + $0x48] sm:$0xff] %v2718
        %2751 = vst [vmem:[%s247 + $0x50] sm:$0xff] %v2719
        %2752 = vst [vmem:[%s247 + $0x58] sm:$0xff] %v2720
        %2753 = vst [vmem:[%s247 + $0x60] sm:$0xff] %v2721
        %2754 = vst [vmem:[%s247 + $0x68] sm:$0xff] %v2722
        %2755 = vst [vmem:[%s247 + $0x70] sm:$0xff] %v2723
        %2756 = vst [vmem:[%s247 + $0x78] sm:$0xff] %v2724
        %2757 = vst [vmem:[%s247 + $0x80] sm:$0xff] %v2725
        %2758 = vst [vmem:[%s247 + $0x88] sm:$0xff] %v2726
        %2759 = vst [vmem:[%s247 + $0x90] sm:$0xff] %v2727
        %2760 = vst [vmem:[%s247 + $0x98] sm:$0xff] %v2728
        %2761 = vst [vmem:[%s247 + $0xa0] sm:$0xff] %v2729
        %2762 = vst [vmem:[%s247 + $0xa8] sm:$0xff] %v2730
        %2763 = vst [vmem:[%s247 + $0xb0] sm:$0xff] %v2731
        %2764 = vst [vmem:[%s247 + $0xb8] sm:$0xff] %v2732
        %2765 = vst [vmem:[%s247 + $0xc0] sm:$0xff] %v2733
        %2766 = vst [vmem:[%s247 + $0xc8] sm:$0xff] %v2734
        %2767 = vst [vmem:[%s247 + $0xd0] sm:$0xff] %v2735
        %2768 = vst [vmem:[%s247 + $0xd8] sm:$0xff] %v2736
        %2769 = vst [vmem:[%s247 + $0xe0] sm:$0xff] %v2737
        %2770 = vst [vmem:[%s247 + $0xe8] sm:$0xff] %v2738
        %2771 = vst [vmem:[%s247 + $0xf0] sm:$0xff] %v2739
        %2772 = vst [vmem:[%s247 + $0xf8] sm:$0xff] %v2740
        %v2773 = vld [vmem:[%s3] sm:$0xff]
        %v2774 = vld [vmem:[%s3 + $0x8] sm:$0xff]
        %v2775 = vld [vmem:[%s3 + $0x10] sm:$0xff]
        %v2776 = vld [vmem:[%s3 + $0x18] sm:$0xff]
        %v2777 = vld [vmem:[%s3 + $0x20] sm:$0xff]
        %v2778 = vld [vmem:[%s3 + $0x28] sm:$0xff]
        %v2779 = vld [vmem:[%s3 + $0x30] sm:$0xff]
        %v2780 = vld [vmem:[%s3 + $0x38] sm:$0xff]
        %v2781 = vld [vmem:[%s3 + $0x40] sm:$0xff]
        %v2782 = vld [vmem:[%s3 + $0x48] sm:$0xff]
        %v2783 = vld [vmem:[%s3 + $0x50] sm:$0xff]
        %v2784 = vld [vmem:[%s3 + $0x58] sm:$0xff]
        %v2785 = vld [vmem:[%s3 + $0x60] sm:$0xff]
        %v2786 = vld [vmem:[%s3 + $0x68] sm:$0xff]
        %v2787 = vld [vmem:[%s3 + $0x70] sm:$0xff]
        %v2788 = vld [vmem:[%s3 + $0x78] sm:$0xff]
        %v2789 = vld [vmem:[%s247] sm:$0xff]
        %v2790 = vld [vmem:[%s247 + $0x8] sm:$0xff]
        %v2791 = vld [vmem:[%s247 + $0x10] sm:$0xff]
        %v2792 = vld [vmem:[%s247 + $0x18] sm:$0xff]
        %v2793 = vld [vmem:[%s247 + $0x20] sm:$0xff]
        %v2794 = vld [vmem:[%s247 + $0x28] sm:$0xff]
        %v2795 = vld [vmem:[%s247 + $0x30] sm:$0xff]
        %v2796 = vld [vmem:[%s247 + $0x38] sm:$0xff]
        %v2797 = vld [vmem:[%s247 + $0x40] sm:$0xff]
        %v2798 = vld [vmem:[%s247 + $0x48] sm:$0xff]
        %v2799 = vld [vmem:[%s247 + $0x50] sm:$0xff]
        %v2800 = vld [vmem:[%s247 + $0x58] sm:$0xff]
        %v2801 = vld [vmem:[%s247 + $0x60] sm:$0xff]
        %v2802 = vld [vmem:[%s247 + $0x68] sm:$0xff]
        %v2803 = vld [vmem:[%s247 + $0x70] sm:$0xff]
        %v2804 = vld [vmem:[%s247 + $0x78] sm:$0xff]
        %v2805 = vld [vmem:[%s247 + $0x80] sm:$0xff]
        %v2806 = vld [vmem:[%s247 + $0x88] sm:$0xff]
        %v2807 = vld [vmem:[%s247 + $0x90] sm:$0xff]
        %v2808 = vld [vmem:[%s247 + $0x98] sm:$0xff]
        %v2809 = vld [vmem:[%s247 + $0xa0] sm:$0xff]
        %v2810 = vld [vmem:[%s247 + $0xa8] sm:$0xff]
        %v2811 = vld [vmem:[%s247 + $0xb0] sm:$0xff]
        %v2812 = vld [vmem:[%s247 + $0xb8] sm:$0xff]
        %v2813 = vld [vmem:[%s247 + $0xc0] sm:$0xff]
        %v2814 = vld [vmem:[%s247 + $0xc8] sm:$0xff]
        %v2815 = vld [vmem:[%s247 + $0xd0] sm:$0xff]
        %v2816 = vld [vmem:[%s247 + $0xd8] sm:$0xff]
        %v2817 = vld [vmem:[%s247 + $0xe0] sm:$0xff]
        %v2818 = vld [vmem:[%s247 + $0xe8] sm:$0xff]
        %v2819 = vld [vmem:[%s247 + $0xf0] sm:$0xff]
        %v2820 = vld [vmem:[%s247 + $0xf8] sm:$0xff]
        %v2821 = vld [vmem:[#allocation2] sm:$0xff]
        %v2822 = vld [vmem:[#allocation2 + $0x8] sm:$0xff]
        %v2823 = vld [vmem:[#allocation2 + $0x10] sm:$0xff]
        %v2824 = vld [vmem:[#allocation2 + $0x18] sm:$0xff]
        %v2825 = vld [vmem:[#allocation2 + $0x20] sm:$0xff]
        %v2826 = vld [vmem:[#allocation2 + $0x28] sm:$0xff]
        %v2827 = vld [vmem:[#allocation2 + $0x30] sm:$0xff]
        %v2828 = vld [vmem:[#allocation2 + $0x38] sm:$0xff]
        %v2829 = vld [vmem:[#allocation2 + $0x40] sm:$0xff]
        %v2830 = vld [vmem:[#allocation2 + $0x48] sm:$0xff]
        %v2831 = vld [vmem:[#allocation2 + $0x50] sm:$0xff]
        %v2832 = vld [vmem:[#allocation2 + $0x58] sm:$0xff]
        %v2833 = vld [vmem:[#allocation2 + $0x60] sm:$0xff]
        %v2834 = vld [vmem:[#allocation2 + $0x68] sm:$0xff]
        %v2835 = vld [vmem:[#allocation2 + $0x70] sm:$0xff]
        %v2836 = vld [vmem:[#allocation2 + $0x78] sm:$0xff]
        %v2837 = vld [vmem:[#allocation2 + $0x80] sm:$0xff]
        %v2838 = vld [vmem:[#allocation2 + $0x88] sm:$0xff]
        %v2839 = vld [vmem:[#allocation2 + $0x90] sm:$0xff]
        %v2840 = vld [vmem:[#allocation2 + $0x98] sm:$0xff]
        %v2841 = vld [vmem:[#allocation2 + $0xa0] sm:$0xff]
        %v2842 = vld [vmem:[#allocation2 + $0xa8] sm:$0xff]
        %v2843 = vld [vmem:[#allocation2 + $0xb0] sm:$0xff]
        %v2844 = vld [vmem:[#allocation2 + $0xb8] sm:$0xff]
        %v2845 = vld [vmem:[#allocation2 + $0xc0] sm:$0xff]
        %v2846 = vld [vmem:[#allocation2 + $0xc8] sm:$0xff]
        %v2847 = vld [vmem:[#allocation2 + $0xd0] sm:$0xff]
        %v2848 = vld [vmem:[#allocation2 + $0xd8] sm:$0xff]
        %v2849 = vld [vmem:[#allocation2 + $0xe0] sm:$0xff]
        %v2850 = vld [vmem:[#allocation2 + $0xe8] sm:$0xff]
        %v2851 = vld [vmem:[#allocation2 + $0xf0] sm:$0xff]
        %v2852 = vld [vmem:[#allocation2 + $0xf8] sm:$0xff]
        %2853 = vmatpush.msra.mxu0 %v2819
        %2854 = vmatpush.msra.mxu0 %v2817
        %2855 = vmatpush.msra.mxu0 %v2815
        %2856 = vmatpush.msra.mxu0 %v2813
        %2857 = vmatpush.msra.mxu0 %v2811
        %2858 = vmatpush.msra.mxu0 %v2809
        %2859 = vmatpush.msra.mxu0 %v2807
        %2860 = vmatpush.msra.mxu0 %v2805
        %2861 = vmatpush.msra.mxu0 %v2803
        %2862 = vmatpush.msra.mxu0 %v2801
        %2863 = vmatpush.msra.mxu0 %v2799
        %2864 = vmatpush.msra.mxu0 %v2797
        %2865 = vmatpush.msra.mxu0 %v2795
        %2866 = vmatpush.msra.mxu0 %v2793
        %2867 = vmatpush.msra.mxu0 %v2791
        %2868 = vmatpush.msra.mxu0 %v2789
        %2869 = vmatmul.f32.gmra.mxu0 %v2773
        %v2870 = vpop.f32.mrf.mxu0
        %v2871 = vadd.f32 %v2821, %v2870
        %2872 = vmatmul.f32.gmra.mxu0 %v2774
        %v2873 = vpop.f32.mrf.mxu0
        %v2874 = vadd.f32 %v2823, %v2873
        %2875 = vmatmul.f32.gmra.mxu0 %v2775
        %v2876 = vpop.f32.mrf.mxu0
        %v2877 = vadd.f32 %v2825, %v2876
        %2878 = vmatmul.f32.gmra.mxu0 %v2776
        %v2879 = vpop.f32.mrf.mxu0
        %v2880 = vadd.f32 %v2827, %v2879
        %2881 = vmatmul.f32.gmra.mxu0 %v2777
        %v2882 = vpop.f32.mrf.mxu0
        %v2883 = vadd.f32 %v2829, %v2882
        %2884 = vmatmul.f32.gmra.mxu0 %v2778
        %v2885 = vpop.f32.mrf.mxu0
        %v2886 = vadd.f32 %v2831, %v2885
        %2887 = vmatmul.f32.gmra.mxu0 %v2779
        %v2888 = vpop.f32.mrf.mxu0
        %v2889 = vadd.f32 %v2833, %v2888
        %2890 = vmatmul.f32.gmra.mxu0 %v2780
        %v2891 = vpop.f32.mrf.mxu0
        %v2892 = vadd.f32 %v2835, %v2891
        %2893 = vmatmul.f32.gmra.mxu0 %v2781
        %v2894 = vpop.f32.mrf.mxu0
        %v2895 = vadd.f32 %v2837, %v2894
        %2896 = vmatmul.f32.gmra.mxu0 %v2782
        %v2897 = vpop.f32.mrf.mxu0
        %v2898 = vadd.f32 %v2839, %v2897
        %2899 = vmatmul.f32.gmra.mxu0 %v2783
        %v2900 = vpop.f32.mrf.mxu0
        %v2901 = vadd.f32 %v2841, %v2900
        %2902 = vmatmul.f32.gmra.mxu0 %v2784
        %v2903 = vpop.f32.mrf.mxu0
        %v2904 = vadd.f32 %v2843, %v2903
        %2905 = vmatmul.f32.gmra.mxu0 %v2785
        %v2906 = vpop.f32.mrf.mxu0
        %v2907 = vadd.f32 %v2845, %v2906
        %2908 = vmatmul.f32.gmra.mxu0 %v2786
        %v2909 = vpop.f32.mrf.mxu0
        %v2910 = vadd.f32 %v2847, %v2909
        %2911 = vmatmul.f32.gmra.mxu0 %v2787
        %v2912 = vpop.f32.mrf.mxu0
        %v2913 = vadd.f32 %v2849, %v2912
        %2914 = vmatmul.f32.gmra.mxu0 %v2788
        %v2915 = vpop.f32.mrf.mxu0
        %v2916 = vadd.f32 %v2851, %v2915
        %2917 = vdwg.mxu0
        %2918 = vmatpush.msra.mxu0 %v2820
        %2919 = vmatpush.msra.mxu0 %v2818
        %2920 = vmatpush.msra.mxu0 %v2816
        %2921 = vmatpush.msra.mxu0 %v2814
        %2922 = vmatpush.msra.mxu0 %v2812
        %2923 = vmatpush.msra.mxu0 %v2810
        %2924 = vmatpush.msra.mxu0 %v2808
        %2925 = vmatpush.msra.mxu0 %v2806
        %2926 = vmatpush.msra.mxu0 %v2804
        %2927 = vmatpush.msra.mxu0 %v2802
        %2928 = vmatpush.msra.mxu0 %v2800
        %2929 = vmatpush.msra.mxu0 %v2798
        %2930 = vmatpush.msra.mxu0 %v2796
        %2931 = vmatpush.msra.mxu0 %v2794
        %2932 = vmatpush.msra.mxu0 %v2792
        %2933 = vmatpush.msra.mxu0 %v2790
        %2934 = vmatmul.f32.gmra.mxu0 %v2773
        %v2935 = vpop.f32.mrf.mxu0
        %v2936 = vadd.f32 %v2822, %v2935
        %2937 = vmatmul.f32.gmra.mxu0 %v2774
        %v2938 = vpop.f32.mrf.mxu0
        %v2939 = vadd.f32 %v2824, %v2938
        %2940 = vmatmul.f32.gmra.mxu0 %v2775
        %v2941 = vpop.f32.mrf.mxu0
        %v2942 = vadd.f32 %v2826, %v2941
        %2943 = vmatmul.f32.gmra.mxu0 %v2776
        %v2944 = vpop.f32.mrf.mxu0
        %v2945 = vadd.f32 %v2828, %v2944
        %2946 = vmatmul.f32.gmra.mxu0 %v2777
        %v2947 = vpop.f32.mrf.mxu0
        %v2948 = vadd.f32 %v2830, %v2947
        %2949 = vmatmul.f32.gmra.mxu0 %v2778
        %v2950 = vpop.f32.mrf.mxu0
        %v2951 = vadd.f32 %v2832, %v2950
        %2952 = vmatmul.f32.gmra.mxu0 %v2779
        %v2953 = vpop.f32.mrf.mxu0
        %v2954 = vadd.f32 %v2834, %v2953
        %2955 = vmatmul.f32.gmra.mxu0 %v2780
        %v2956 = vpop.f32.mrf.mxu0
        %v2957 = vadd.f32 %v2836, %v2956
        %2958 = vmatmul.f32.gmra.mxu0 %v2781
        %v2959 = vpop.f32.mrf.mxu0
        %v2960 = vadd.f32 %v2838, %v2959
        %2961 = vmatmul.f32.gmra.mxu0 %v2782
        %v2962 = vpop.f32.mrf.mxu0
        %v2963 = vadd.f32 %v2840, %v2962
        %2964 = vmatmul.f32.gmra.mxu0 %v2783
        %v2965 = vpop.f32.mrf.mxu0
        %v2966 = vadd.f32 %v2842, %v2965
        %2967 = vmatmul.f32.gmra.mxu0 %v2784
        %v2968 = vpop.f32.mrf.mxu0
        %v2969 = vadd.f32 %v2844, %v2968
        %2970 = vmatmul.f32.gmra.mxu0 %v2785
        %v2971 = vpop.f32.mrf.mxu0
        %v2972 = vadd.f32 %v2846, %v2971
        %2973 = vmatmul.f32.gmra.mxu0 %v2786
        %v2974 = vpop.f32.mrf.mxu0
        %v2975 = vadd.f32 %v2848, %v2974
        %2976 = vmatmul.f32.gmra.mxu0 %v2787
        %v2977 = vpop.f32.mrf.mxu0
        %v2978 = vadd.f32 %v2850, %v2977
        %2979 = vmatmul.f32.gmra.mxu0 %v2788
        %v2980 = vpop.f32.mrf.mxu0
        %v2981 = vadd.f32 %v2852, %v2980
        %2982 = vdwg.mxu0
        %s2983 = sld [smem:[#allocation4 + $0x8]]
        %v2984 = vstv %s2983
        %v2985 = vsub.f32 %v2871, %v2984
        %v2986 = vsub.f32 %v2936, %v2984
        %v2987 = vsub.f32 %v2874, %v2984
        %v2988 = vsub.f32 %v2939, %v2984
        %v2989 = vsub.f32 %v2877, %v2984
        %v2990 = vsub.f32 %v2942, %v2984
        %v2991 = vsub.f32 %v2880, %v2984
        %v2992 = vsub.f32 %v2945, %v2984
        %v2993 = vsub.f32 %v2883, %v2984
        %v2994 = vsub.f32 %v2948, %v2984
        %v2995 = vsub.f32 %v2886, %v2984
        %v2996 = vsub.f32 %v2951, %v2984
        %v2997 = vsub.f32 %v2889, %v2984
        %v2998 = vsub.f32 %v2954, %v2984
        %v2999 = vsub.f32 %v2892, %v2984
        %v3000 = vsub.f32 %v2957, %v2984
        %v3001 = vsub.f32 %v2895, %v2984
        %v3002 = vsub.f32 %v2960, %v2984
        %v3003 = vsub.f32 %v2898, %v2984
        %v3004 = vsub.f32 %v2963, %v2984
        %v3005 = vsub.f32 %v2901, %v2984
        %v3006 = vsub.f32 %v2966, %v2984
        %v3007 = vsub.f32 %v2904, %v2984
        %v3008 = vsub.f32 %v2969, %v2984
        %v3009 = vsub.f32 %v2907, %v2984
        %v3010 = vsub.f32 %v2972, %v2984
        %v3011 = vsub.f32 %v2910, %v2984
        %v3012 = vsub.f32 %v2975, %v2984
        %v3013 = vsub.f32 %v2913, %v2984
        %v3014 = vsub.f32 %v2978, %v2984
        %v3015 = vsub.f32 %v2916, %v2984
        %v3016 = vsub.f32 %v2981, %v2984
        %v3017 = vmax.f32 %v2985, 0.0
        %v3018 = vmax.f32 %v2986, 0.0
        %v3019 = vmax.f32 %v2987, 0.0
        %v3020 = vmax.f32 %v2988, 0.0
        %v3021 = vmax.f32 %v2989, 0.0
        %v3022 = vmax.f32 %v2990, 0.0
        %v3023 = vmax.f32 %v2991, 0.0
        %v3024 = vmax.f32 %v2992, 0.0
        %v3025 = vmax.f32 %v2993, 0.0
        %v3026 = vmax.f32 %v2994, 0.0
        %v3027 = vmax.f32 %v2995, 0.0
        %v3028 = vmax.f32 %v2996, 0.0
        %v3029 = vmax.f32 %v2997, 0.0
        %v3030 = vmax.f32 %v2998, 0.0
        %v3031 = vmax.f32 %v2999, 0.0
        %v3032 = vmax.f32 %v3000, 0.0
        %v3033 = vmax.f32 %v3001, 0.0
        %v3034 = vmax.f32 %v3002, 0.0
        %v3035 = vmax.f32 %v3003, 0.0
        %v3036 = vmax.f32 %v3004, 0.0
        %v3037 = vmax.f32 %v3005, 0.0
        %v3038 = vmax.f32 %v3006, 0.0
        %v3039 = vmax.f32 %v3007, 0.0
        %v3040 = vmax.f32 %v3008, 0.0
        %v3041 = vmax.f32 %v3009, 0.0
        %v3042 = vmax.f32 %v3010, 0.0
        %v3043 = vmax.f32 %v3011, 0.0
        %v3044 = vmax.f32 %v3012, 0.0
        %v3045 = vmax.f32 %v3013, 0.0
        %v3046 = vmax.f32 %v3014, 0.0
        %v3047 = vmax.f32 %v3015, 0.0
        %v3048 = vmax.f32 %v3016, 0.0
        %3049 = vst [vmem:[#allocation3] sm:$0xff] %v3017
        %3050 = vst [vmem:[#allocation3 + $0x8] sm:$0xff] %v3018
        %3051 = vst [vmem:[#allocation3 + $0x10] sm:$0xff] %v3019
        %3052 = vst [vmem:[#allocation3 + $0x18] sm:$0xff] %v3020
        %3053 = vst [vmem:[#allocation3 + $0x20] sm:$0xff] %v3021
        %3054 = vst [vmem:[#allocation3 + $0x28] sm:$0xff] %v3022
        %3055 = vst [vmem:[#allocation3 + $0x30] sm:$0xff] %v3023
        %3056 = vst [vmem:[#allocation3 + $0x38] sm:$0xff] %v3024
        %3057 = vst [vmem:[#allocation3 + $0x40] sm:$0xff] %v3025
        %3058 = vst [vmem:[#allocation3 + $0x48] sm:$0xff] %v3026
        %3059 = vst [vmem:[#allocation3 + $0x50] sm:$0xff] %v3027
        %3060 = vst [vmem:[#allocation3 + $0x58] sm:$0xff] %v3028
        %3061 = vst [vmem:[#allocation3 + $0x60] sm:$0xff] %v3029
        %3062 = vst [vmem:[#allocation3 + $0x68] sm:$0xff] %v3030
        %3063 = vst [vmem:[#allocation3 + $0x70] sm:$0xff] %v3031
        %3064 = vst [vmem:[#allocation3 + $0x78] sm:$0xff] %v3032
        %3065 = vst [vmem:[#allocation3 + $0x80] sm:$0xff] %v3033
        %3066 = vst [vmem:[#allocation3 + $0x88] sm:$0xff] %v3034
        %3067 = vst [vmem:[#allocation3 + $0x90] sm:$0xff] %v3035
        %3068 = vst [vmem:[#allocation3 + $0x98] sm:$0xff] %v3036
        %3069 = vst [vmem:[#allocation3 + $0xa0] sm:$0xff] %v3037
        %3070 = vst [vmem:[#allocation3 + $0xa8] sm:$0xff] %v3038
        %3071 = vst [vmem:[#allocation3 + $0xb0] sm:$0xff] %v3039
        %3072 = vst [vmem:[#allocation3 + $0xb8] sm:$0xff] %v3040
        %3073 = vst [vmem:[#allocation3 + $0xc0] sm:$0xff] %v3041
        %3074 = vst [vmem:[#allocation3 + $0xc8] sm:$0xff] %v3042
        %3075 = vst [vmem:[#allocation3 + $0xd0] sm:$0xff] %v3043
        %3076 = vst [vmem:[#allocation3 + $0xd8] sm:$0xff] %v3044
        %3077 = vst [vmem:[#allocation3 + $0xe0] sm:$0xff] %v3045
        %3078 = vst [vmem:[#allocation3 + $0xe8] sm:$0xff] %v3046
        %3079 = vst [vmem:[#allocation3 + $0xf0] sm:$0xff] %v3047
        %3080 = vst [vmem:[#allocation3 + $0xf8] sm:$0xff] %v3048
        %v3081 = vld [vmem:[%s3] sm:$0xff]
        %v3082 = vld [vmem:[%s3 + $0x8] sm:$0xff]
        %v3083 = vld [vmem:[%s3 + $0x10] sm:$0xff]
        %v3084 = vld [vmem:[%s3 + $0x18] sm:$0xff]
        %v3085 = vld [vmem:[%s3 + $0x20] sm:$0xff]
        %v3086 = vld [vmem:[%s3 + $0x28] sm:$0xff]
        %v3087 = vld [vmem:[%s3 + $0x30] sm:$0xff]
        %v3088 = vld [vmem:[%s3 + $0x38] sm:$0xff]
        %v3089 = vld [vmem:[%s3 + $0x40] sm:$0xff]
        %v3090 = vld [vmem:[%s3 + $0x48] sm:$0xff]
        %v3091 = vld [vmem:[%s3 + $0x50] sm:$0xff]
        %v3092 = vld [vmem:[%s3 + $0x58] sm:$0xff]
        %v3093 = vld [vmem:[%s3 + $0x60] sm:$0xff]
        %v3094 = vld [vmem:[%s3 + $0x68] sm:$0xff]
        %v3095 = vld [vmem:[%s3 + $0x70] sm:$0xff]
        %v3096 = vld [vmem:[%s3 + $0x78] sm:$0xff]
        %v3097 = vld [vmem:[#allocation3] sm:$0xff]
        %v3098 = vld [vmem:[#allocation3 + $0x8] sm:$0xff]
        %v3099 = vld [vmem:[#allocation3 + $0x10] sm:$0xff]
        %v3100 = vld [vmem:[#allocation3 + $0x18] sm:$0xff]
        %v3101 = vld [vmem:[#allocation3 + $0x20] sm:$0xff]
        %v3102 = vld [vmem:[#allocation3 + $0x28] sm:$0xff]
        %v3103 = vld [vmem:[#allocation3 + $0x30] sm:$0xff]
        %v3104 = vld [vmem:[#allocation3 + $0x38] sm:$0xff]
        %v3105 = vld [vmem:[#allocation3 + $0x40] sm:$0xff]
        %v3106 = vld [vmem:[#allocation3 + $0x48] sm:$0xff]
        %v3107 = vld [vmem:[#allocation3 + $0x50] sm:$0xff]
        %v3108 = vld [vmem:[#allocation3 + $0x58] sm:$0xff]
        %v3109 = vld [vmem:[#allocation3 + $0x60] sm:$0xff]
        %v3110 = vld [vmem:[#allocation3 + $0x68] sm:$0xff]
        %v3111 = vld [vmem:[#allocation3 + $0x70] sm:$0xff]
        %v3112 = vld [vmem:[#allocation3 + $0x78] sm:$0xff]
        %v3113 = vld [vmem:[#allocation3 + $0x80] sm:$0xff]
        %v3114 = vld [vmem:[#allocation3 + $0x88] sm:$0xff]
        %v3115 = vld [vmem:[#allocation3 + $0x90] sm:$0xff]
        %v3116 = vld [vmem:[#allocation3 + $0x98] sm:$0xff]
        %v3117 = vld [vmem:[#allocation3 + $0xa0] sm:$0xff]
        %v3118 = vld [vmem:[#allocation3 + $0xa8] sm:$0xff]
        %v3119 = vld [vmem:[#allocation3 + $0xb0] sm:$0xff]
        %v3120 = vld [vmem:[#allocation3 + $0xb8] sm:$0xff]
        %v3121 = vld [vmem:[#allocation3 + $0xc0] sm:$0xff]
        %v3122 = vld [vmem:[#allocation3 + $0xc8] sm:$0xff]
        %v3123 = vld [vmem:[#allocation3 + $0xd0] sm:$0xff]
        %v3124 = vld [vmem:[#allocation3 + $0xd8] sm:$0xff]
        %v3125 = vld [vmem:[#allocation3 + $0xe0] sm:$0xff]
        %v3126 = vld [vmem:[#allocation3 + $0xe8] sm:$0xff]
        %v3127 = vld [vmem:[#allocation3 + $0xf0] sm:$0xff]
        %v3128 = vld [vmem:[#allocation3 + $0xf8] sm:$0xff]
        %v3129 = vld [vmem:[#allocation2] sm:$0xff]
        %v3130 = vld [vmem:[#allocation2 + $0x8] sm:$0xff]
        %v3131 = vld [vmem:[#allocation2 + $0x10] sm:$0xff]
        %v3132 = vld [vmem:[#allocation2 + $0x18] sm:$0xff]
        %v3133 = vld [vmem:[#allocation2 + $0x20] sm:$0xff]
        %v3134 = vld [vmem:[#allocation2 + $0x28] sm:$0xff]
        %v3135 = vld [vmem:[#allocation2 + $0x30] sm:$0xff]
        %v3136 = vld [vmem:[#allocation2 + $0x38] sm:$0xff]
        %v3137 = vld [vmem:[#allocation2 + $0x40] sm:$0xff]
        %v3138 = vld [vmem:[#allocation2 + $0x48] sm:$0xff]
        %v3139 = vld [vmem:[#allocation2 + $0x50] sm:$0xff]
        %v3140 = vld [vmem:[#allocation2 + $0x58] sm:$0xff]
        %v3141 = vld [vmem:[#allocation2 + $0x60] sm:$0xff]
        %v3142 = vld [vmem:[#allocation2 + $0x68] sm:$0xff]
        %v3143 = vld [vmem:[#allocation2 + $0x70] sm:$0xff]
        %v3144 = vld [vmem:[#allocation2 + $0x78] sm:$0xff]
        %v3145 = vld [vmem:[#allocation2 + $0x80] sm:$0xff]
        %v3146 = vld [vmem:[#allocation2 + $0x88] sm:$0xff]
        %v3147 = vld [vmem:[#allocation2 + $0x90] sm:$0xff]
        %v3148 = vld [vmem:[#allocation2 + $0x98] sm:$0xff]
        %v3149 = vld [vmem:[#allocation2 + $0xa0] sm:$0xff]
        %v3150 = vld [vmem:[#allocation2 + $0xa8] sm:$0xff]
        %v3151 = vld [vmem:[#allocation2 + $0xb0] sm:$0xff]
        %v3152 = vld [vmem:[#allocation2 + $0xb8] sm:$0xff]
        %v3153 = vld [vmem:[#allocation2 + $0xc0] sm:$0xff]
        %v3154 = vld [vmem:[#allocation2 + $0xc8] sm:$0xff]
        %v3155 = vld [vmem:[#allocation2 + $0xd0] sm:$0xff]
        %v3156 = vld [vmem:[#allocation2 + $0xd8] sm:$0xff]
        %v3157 = vld [vmem:[#allocation2 + $0xe0] sm:$0xff]
        %v3158 = vld [vmem:[#allocation2 + $0xe8] sm:$0xff]
        %v3159 = vld [vmem:[#allocation2 + $0xf0] sm:$0xff]
        %v3160 = vld [vmem:[#allocation2 + $0xf8] sm:$0xff]
        %3161 = vmatpush.msra.mxu0 %v3127
        %3162 = vmatpush.msra.mxu0 %v3125
        %3163 = vmatpush.msra.mxu0 %v3123
        %3164 = vmatpush.msra.mxu0 %v3121
        %3165 = vmatpush.msra.mxu0 %v3119
        %3166 = vmatpush.msra.mxu0 %v3117
        %3167 = vmatpush.msra.mxu0 %v3115
        %3168 = vmatpush.msra.mxu0 %v3113
        %3169 = vmatpush.msra.mxu0 %v3111
        %3170 = vmatpush.msra.mxu0 %v3109
        %3171 = vmatpush.msra.mxu0 %v3107
        %3172 = vmatpush.msra.mxu0 %v3105
        %3173 = vmatpush.msra.mxu0 %v3103
        %3174 = vmatpush.msra.mxu0 %v3101
        %3175 = vmatpush.msra.mxu0 %v3099
        %3176 = vmatpush.msra.mxu0 %v3097
        %3177 = vmatmul.f32.gmra.mxu0 %v3081
        %v3178 = vpop.f32.mrf.mxu0
        %v3179 = vadd.f32 %v3129, %v3178
        %3180 = vmatmul.f32.gmra.mxu0 %v3082
        %v3181 = vpop.f32.mrf.mxu0
        %v3182 = vadd.f32 %v3131, %v3181
        %3183 = vmatmul.f32.gmra.mxu0 %v3083
        %v3184 = vpop.f32.mrf.mxu0
        %v3185 = vadd.f32 %v3133, %v3184
        %3186 = vmatmul.f32.gmra.mxu0 %v3084
        %v3187 = vpop.f32.mrf.mxu0
        %v3188 = vadd.f32 %v3135, %v3187
        %3189 = vmatmul.f32.gmra.mxu0 %v3085
        %v3190 = vpop.f32.mrf.mxu0
        %v3191 = vadd.f32 %v3137, %v3190
        %3192 = vmatmul.f32.gmra.mxu0 %v3086
        %v3193 = vpop.f32.mrf.mxu0
        %v3194 = vadd.f32 %v3139, %v3193
        %3195 = vmatmul.f32.gmra.mxu0 %v3087
        %v3196 = vpop.f32.mrf.mxu0
        %v3197 = vadd.f32 %v3141, %v3196
        %3198 = vmatmul.f32.gmra.mxu0 %v3088
        %v3199 = vpop.f32.mrf.mxu0
        %v3200 = vadd.f32 %v3143, %v3199
        %3201 = vmatmul.f32.gmra.mxu0 %v3089
        %v3202 = vpop.f32.mrf.mxu0
        %v3203 = vadd.f32 %v3145, %v3202
        %3204 = vmatmul.f32.gmra.mxu0 %v3090
        %v3205 = vpop.f32.mrf.mxu0
        %v3206 = vadd.f32 %v3147, %v3205
        %3207 = vmatmul.f32.gmra.mxu0 %v3091
        %v3208 = vpop.f32.mrf.mxu0
        %v3209 = vadd.f32 %v3149, %v3208
        %3210 = vmatmul.f32.gmra.mxu0 %v3092
        %v3211 = vpop.f32.mrf.mxu0
        %v3212 = vadd.f32 %v3151, %v3211
        %3213 = vmatmul.f32.gmra.mxu0 %v3093
        %v3214 = vpop.f32.mrf.mxu0
        %v3215 = vadd.f32 %v3153, %v3214
        %3216 = vmatmul.f32.gmra.mxu0 %v3094
        %v3217 = vpop.f32.mrf.mxu0
        %v3218 = vadd.f32 %v3155, %v3217
        %3219 = vmatmul.f32.gmra.mxu0 %v3095
        %v3220 = vpop.f32.mrf.mxu0
        %v3221 = vadd.f32 %v3157, %v3220
        %3222 = vmatmul.f32.gmra.mxu0 %v3096
        %v3223 = vpop.f32.mrf.mxu0
        %v3224 = vadd.f32 %v3159, %v3223
        %3225 = vdwg.mxu0
        %3226 = vmatpush.msra.mxu0 %v3128
        %3227 = vmatpush.msra.mxu0 %v3126
        %3228 = vmatpush.msra.mxu0 %v3124
        %3229 = vmatpush.msra.mxu0 %v3122
        %3230 = vmatpush.msra.mxu0 %v3120
        %3231 = vmatpush.msra.mxu0 %v3118
        %3232 = vmatpush.msra.mxu0 %v3116
        %3233 = vmatpush.msra.mxu0 %v3114
        %3234 = vmatpush.msra.mxu0 %v3112
        %3235 = vmatpush.msra.mxu0 %v3110
        %3236 = vmatpush.msra.mxu0 %v3108
        %3237 = vmatpush.msra.mxu0 %v3106
        %3238 = vmatpush.msra.mxu0 %v3104
        %3239 = vmatpush.msra.mxu0 %v3102
        %3240 = vmatpush.msra.mxu0 %v3100
        %3241 = vmatpush.msra.mxu0 %v3098
        %3242 = vmatmul.f32.gmra.mxu0 %v3081
        %v3243 = vpop.f32.mrf.mxu0
        %v3244 = vadd.f32 %v3130, %v3243
        %3245 = vmatmul.f32.gmra.mxu0 %v3082
        %v3246 = vpop.f32.mrf.mxu0
        %v3247 = vadd.f32 %v3132, %v3246
        %3248 = vmatmul.f32.gmra.mxu0 %v3083
        %v3249 = vpop.f32.mrf.mxu0
        %v3250 = vadd.f32 %v3134, %v3249
        %3251 = vmatmul.f32.gmra.mxu0 %v3084
        %v3252 = vpop.f32.mrf.mxu0
        %v3253 = vadd.f32 %v3136, %v3252
        %3254 = vmatmul.f32.gmra.mxu0 %v3085
        %v3255 = vpop.f32.mrf.mxu0
        %v3256 = vadd.f32 %v3138, %v3255
        %3257 = vmatmul.f32.gmra.mxu0 %v3086
        %v3258 = vpop.f32.mrf.mxu0
        %v3259 = vadd.f32 %v3140, %v3258
        %3260 = vmatmul.f32.gmra.mxu0 %v3087
        %v3261 = vpop.f32.mrf.mxu0
        %v3262 = vadd.f32 %v3142, %v3261
        %3263 = vmatmul.f32.gmra.mxu0 %v3088
        %v3264 = vpop.f32.mrf.mxu0
        %v3265 = vadd.f32 %v3144, %v3264
        %3266 = vmatmul.f32.gmra.mxu0 %v3089
        %v3267 = vpop.f32.mrf.mxu0
        %v3268 = vadd.f32 %v3146, %v3267
        %3269 = vmatmul.f32.gmra.mxu0 %v3090
        %v3270 = vpop.f32.mrf.mxu0
        %v3271 = vadd.f32 %v3148, %v3270
        %3272 = vmatmul.f32.gmra.mxu0 %v3091
        %v3273 = vpop.f32.mrf.mxu0
        %v3274 = vadd.f32 %v3150, %v3273
        %3275 = vmatmul.f32.gmra.mxu0 %v3092
        %v3276 = vpop.f32.mrf.mxu0
        %v3277 = vadd.f32 %v3152, %v3276
        %3278 = vmatmul.f32.gmra.mxu0 %v3093
        %v3279 = vpop.f32.mrf.mxu0
        %v3280 = vadd.f32 %v3154, %v3279
        %3281 = vmatmul.f32.gmra.mxu0 %v3094
        %v3282 = vpop.f32.mrf.mxu0
        %v3283 = vadd.f32 %v3156, %v3282
        %3284 = vmatmul.f32.gmra.mxu0 %v3095
        %v3285 = vpop.f32.mrf.mxu0
        %v3286 = vadd.f32 %v3158, %v3285
        %3287 = vmatmul.f32.gmra.mxu0 %v3096
        %v3288 = vpop.f32.mrf.mxu0
        %v3289 = vadd.f32 %v3160, %v3288
        %3290 = vdwg.mxu0
        %s3291 = sld [smem:[#allocation4 + $0x9]]
        %v3292 = vstv %s3291
        %v3293 = vsub.f32 %v3179, %v3292
        %v3294 = vsub.f32 %v3244, %v3292
        %v3295 = vsub.f32 %v3182, %v3292
        %v3296 = vsub.f32 %v3247, %v3292
        %v3297 = vsub.f32 %v3185, %v3292
        %v3298 = vsub.f32 %v3250, %v3292
        %v3299 = vsub.f32 %v3188, %v3292
        %v3300 = vsub.f32 %v3253, %v3292
        %v3301 = vsub.f32 %v3191, %v3292
        %v3302 = vsub.f32 %v3256, %v3292
        %v3303 = vsub.f32 %v3194, %v3292
        %v3304 = vsub.f32 %v3259, %v3292
        %v3305 = vsub.f32 %v3197, %v3292
        %v3306 = vsub.f32 %v3262, %v3292
        %v3307 = vsub.f32 %v3200, %v3292
        %v3308 = vsub.f32 %v3265, %v3292
        %v3309 = vsub.f32 %v3203, %v3292
        %v3310 = vsub.f32 %v3268, %v3292
        %v3311 = vsub.f32 %v3206, %v3292
        %v3312 = vsub.f32 %v3271, %v3292
        %v3313 = vsub.f32 %v3209, %v3292
        %v3314 = vsub.f32 %v3274, %v3292
        %v3315 = vsub.f32 %v3212, %v3292
        %v3316 = vsub.f32 %v3277, %v3292
        %v3317 = vsub.f32 %v3215, %v3292
        %v3318 = vsub.f32 %v3280, %v3292
        %v3319 = vsub.f32 %v3218, %v3292
        %v3320 = vsub.f32 %v3283, %v3292
        %v3321 = vsub.f32 %v3221, %v3292
        %v3322 = vsub.f32 %v3286, %v3292
        %v3323 = vsub.f32 %v3224, %v3292
        %v3324 = vsub.f32 %v3289, %v3292
        %v3325 = vmax.f32 %v3293, 0.0
        %v3326 = vmax.f32 %v3294, 0.0
        %v3327 = vmax.f32 %v3295, 0.0
        %v3328 = vmax.f32 %v3296, 0.0
        %v3329 = vmax.f32 %v3297, 0.0
        %v3330 = vmax.f32 %v3298, 0.0
        %v3331 = vmax.f32 %v3299, 0.0
        %v3332 = vmax.f32 %v3300, 0.0
        %v3333 = vmax.f32 %v3301, 0.0
        %v3334 = vmax.f32 %v3302, 0.0
        %v3335 = vmax.f32 %v3303, 0.0
        %v3336 = vmax.f32 %v3304, 0.0
        %v3337 = vmax.f32 %v3305, 0.0
        %v3338 = vmax.f32 %v3306, 0.0
        %v3339 = vmax.f32 %v3307, 0.0
        %v3340 = vmax.f32 %v3308, 0.0
        %v3341 = vmax.f32 %v3309, 0.0
        %v3342 = vmax.f32 %v3310, 0.0
        %v3343 = vmax.f32 %v3311, 0.0
        %v3344 = vmax.f32 %v3312, 0.0
        %v3345 = vmax.f32 %v3313, 0.0
        %v3346 = vmax.f32 %v3314, 0.0
        %v3347 = vmax.f32 %v3315, 0.0
        %v3348 = vmax.f32 %v3316, 0.0
        %v3349 = vmax.f32 %v3317, 0.0
        %v3350 = vmax.f32 %v3318, 0.0
        %v3351 = vmax.f32 %v3319, 0.0
        %v3352 = vmax.f32 %v3320, 0.0
        %v3353 = vmax.f32 %v3321, 0.0
        %v3354 = vmax.f32 %v3322, 0.0
        %v3355 = vmax.f32 %v3323, 0.0
        %v3356 = vmax.f32 %v3324, 0.0
        %3357 = vst [vmem:[%s247] sm:$0xff] %v3325
        %3358 = vst [vmem:[%s247 + $0x8] sm:$0xff] %v3326
        %3359 = vst [vmem:[%s247 + $0x10] sm:$0xff] %v3327
        %3360 = vst [vmem:[%s247 + $0x18] sm:$0xff] %v3328
        %3361 = vst [vmem:[%s247 + $0x20] sm:$0xff] %v3329
        %3362 = vst [vmem:[%s247 + $0x28] sm:$0xff] %v3330
        %3363 = vst [vmem:[%s247 + $0x30] sm:$0xff] %v3331
        %3364 = vst [vmem:[%s247 + $0x38] sm:$0xff] %v3332
        %3365 = vst [vmem:[%s247 + $0x40] sm:$0xff] %v3333
        %3366 = vst [vmem:[%s247 + $0x48] sm:$0xff] %v3334
        %3367 = vst [vmem:[%s247 + $0x50] sm:$0xff] %v3335
        %3368 = vst [vmem:[%s247 + $0x58] sm:$0xff] %v3336
        %3369 = vst [vmem:[%s247 + $0x60] sm:$0xff] %v3337
        %3370 = vst [vmem:[%s247 + $0x68] sm:$0xff] %v3338
        %3371 = vst [vmem:[%s247 + $0x70] sm:$0xff] %v3339
        %3372 = vst [vmem:[%s247 + $0x78] sm:$0xff] %v3340
        %3373 = vst [vmem:[%s247 + $0x80] sm:$0xff] %v3341
        %3374 = vst [vmem:[%s247 + $0x88] sm:$0xff] %v3342
        %3375 = vst [vmem:[%s247 + $0x90] sm:$0xff] %v3343
        %3376 = vst [vmem:[%s247 + $0x98] sm:$0xff] %v3344
        %3377 = vst [vmem:[%s247 + $0xa0] sm:$0xff] %v3345
        %3378 = vst [vmem:[%s247 + $0xa8] sm:$0xff] %v3346
        %3379 = vst [vmem:[%s247 + $0xb0] sm:$0xff] %v3347
        %3380 = vst [vmem:[%s247 + $0xb8] sm:$0xff] %v3348
        %3381 = vst [vmem:[%s247 + $0xc0] sm:$0xff] %v3349
        %3382 = vst [vmem:[%s247 + $0xc8] sm:$0xff] %v3350
        %3383 = vst [vmem:[%s247 + $0xd0] sm:$0xff] %v3351
        %3384 = vst [vmem:[%s247 + $0xd8] sm:$0xff] %v3352
        %3385 = vst [vmem:[%s247 + $0xe0] sm:$0xff] %v3353
        %3386 = vst [vmem:[%s247 + $0xe8] sm:$0xff] %v3354
        %3387 = vst [vmem:[%s247 + $0xf0] sm:$0xff] %v3355
        %3388 = vst [vmem:[%s247 + $0xf8] sm:$0xff] %v3356
        %v3389 = vld [vmem:[%s3] sm:$0xff]
        %v3390 = vld [vmem:[%s3 + $0x8] sm:$0xff]
        %v3391 = vld [vmem:[%s3 + $0x10] sm:$0xff]
        %v3392 = vld [vmem:[%s3 + $0x18] sm:$0xff]
        %v3393 = vld [vmem:[%s3 + $0x20] sm:$0xff]
        %v3394 = vld [vmem:[%s3 + $0x28] sm:$0xff]
        %v3395 = vld [vmem:[%s3 + $0x30] sm:$0xff]
        %v3396 = vld [vmem:[%s3 + $0x38] sm:$0xff]
        %v3397 = vld [vmem:[%s3 + $0x40] sm:$0xff]
        %v3398 = vld [vmem:[%s3 + $0x48] sm:$0xff]
        %v3399 = vld [vmem:[%s3 + $0x50] sm:$0xff]
        %v3400 = vld [vmem:[%s3 + $0x58] sm:$0xff]
        %v3401 = vld [vmem:[%s3 + $0x60] sm:$0xff]
        %v3402 = vld [vmem:[%s3 + $0x68] sm:$0xff]
        %v3403 = vld [vmem:[%s3 + $0x70] sm:$0xff]
        %v3404 = vld [vmem:[%s3 + $0x78] sm:$0xff]
        %v3405 = vld [vmem:[%s247] sm:$0xff]
        %v3406 = vld [vmem:[%s247 + $0x8] sm:$0xff]
        %v3407 = vld [vmem:[%s247 + $0x10] sm:$0xff]
        %v3408 = vld [vmem:[%s247 + $0x18] sm:$0xff]
        %v3409 = vld [vmem:[%s247 + $0x20] sm:$0xff]
        %v3410 = vld [vmem:[%s247 + $0x28] sm:$0xff]
        %v3411 = vld [vmem:[%s247 + $0x30] sm:$0xff]
        %v3412 = vld [vmem:[%s247 + $0x38] sm:$0xff]
        %v3413 = vld [vmem:[%s247 + $0x40] sm:$0xff]
        %v3414 = vld [vmem:[%s247 + $0x48] sm:$0xff]
        %v3415 = vld [vmem:[%s247 + $0x50] sm:$0xff]
        %v3416 = vld [vmem:[%s247 + $0x58] sm:$0xff]
        %v3417 = vld [vmem:[%s247 + $0x60] sm:$0xff]
        %v3418 = vld [vmem:[%s247 + $0x68] sm:$0xff]
        %v3419 = vld [vmem:[%s247 + $0x70] sm:$0xff]
        %v3420 = vld [vmem:[%s247 + $0x78] sm:$0xff]
        %v3421 = vld [vmem:[%s247 + $0x80] sm:$0xff]
        %v3422 = vld [vmem:[%s247 + $0x88] sm:$0xff]
        %v3423 = vld [vmem:[%s247 + $0x90] sm:$0xff]
        %v3424 = vld [vmem:[%s247 + $0x98] sm:$0xff]
        %v3425 = vld [vmem:[%s247 + $0xa0] sm:$0xff]
        %v3426 = vld [vmem:[%s247 + $0xa8] sm:$0xff]
        %v3427 = vld [vmem:[%s247 + $0xb0] sm:$0xff]
        %v3428 = vld [vmem:[%s247 + $0xb8] sm:$0xff]
        %v3429 = vld [vmem:[%s247 + $0xc0] sm:$0xff]
        %v3430 = vld [vmem:[%s247 + $0xc8] sm:$0xff]
        %v3431 = vld [vmem:[%s247 + $0xd0] sm:$0xff]
        %v3432 = vld [vmem:[%s247 + $0xd8] sm:$0xff]
        %v3433 = vld [vmem:[%s247 + $0xe0] sm:$0xff]
        %v3434 = vld [vmem:[%s247 + $0xe8] sm:$0xff]
        %v3435 = vld [vmem:[%s247 + $0xf0] sm:$0xff]
        %v3436 = vld [vmem:[%s247 + $0xf8] sm:$0xff]
        %v3437 = vld [vmem:[#allocation2] sm:$0xff]
        %v3438 = vld [vmem:[#allocation2 + $0x8] sm:$0xff]
        %v3439 = vld [vmem:[#allocation2 + $0x10] sm:$0xff]
        %v3440 = vld [vmem:[#allocation2 + $0x18] sm:$0xff]
        %v3441 = vld [vmem:[#allocation2 + $0x20] sm:$0xff]
        %v3442 = vld [vmem:[#allocation2 + $0x28] sm:$0xff]
        %v3443 = vld [vmem:[#allocation2 + $0x30] sm:$0xff]
        %v3444 = vld [vmem:[#allocation2 + $0x38] sm:$0xff]
        %v3445 = vld [vmem:[#allocation2 + $0x40] sm:$0xff]
        %v3446 = vld [vmem:[#allocation2 + $0x48] sm:$0xff]
        %v3447 = vld [vmem:[#allocation2 + $0x50] sm:$0xff]
        %v3448 = vld [vmem:[#allocation2 + $0x58] sm:$0xff]
        %v3449 = vld [vmem:[#allocation2 + $0x60] sm:$0xff]
        %v3450 = vld [vmem:[#allocation2 + $0x68] sm:$0xff]
        %v3451 = vld [vmem:[#allocation2 + $0x70] sm:$0xff]
        %v3452 = vld [vmem:[#allocation2 + $0x78] sm:$0xff]
        %v3453 = vld [vmem:[#allocation2 + $0x80] sm:$0xff]
        %v3454 = vld [vmem:[#allocation2 + $0x88] sm:$0xff]
        %v3455 = vld [vmem:[#allocation2 + $0x90] sm:$0xff]
        %v3456 = vld [vmem:[#allocation2 + $0x98] sm:$0xff]
        %v3457 = vld [vmem:[#allocation2 + $0xa0] sm:$0xff]
        %v3458 = vld [vmem:[#allocation2 + $0xa8] sm:$0xff]
        %v3459 = vld [vmem:[#allocation2 + $0xb0] sm:$0xff]
        %v3460 = vld [vmem:[#allocation2 + $0xb8] sm:$0xff]
        %v3461 = vld [vmem:[#allocation2 + $0xc0] sm:$0xff]
        %v3462 = vld [vmem:[#allocation2 + $0xc8] sm:$0xff]
        %v3463 = vld [vmem:[#allocation2 + $0xd0] sm:$0xff]
        %v3464 = vld [vmem:[#allocation2 + $0xd8] sm:$0xff]
        %v3465 = vld [vmem:[#allocation2 + $0xe0] sm:$0xff]
        %v3466 = vld [vmem:[#allocation2 + $0xe8] sm:$0xff]
        %v3467 = vld [vmem:[#allocation2 + $0xf0] sm:$0xff]
        %v3468 = vld [vmem:[#allocation2 + $0xf8] sm:$0xff]
        %3469 = vmatpush.msra.mxu0 %v3435
        %3470 = vmatpush.msra.mxu0 %v3433
        %3471 = vmatpush.msra.mxu0 %v3431
        %3472 = vmatpush.msra.mxu0 %v3429
        %3473 = vmatpush.msra.mxu0 %v3427
        %3474 = vmatpush.msra.mxu0 %v3425
        %3475 = vmatpush.msra.mxu0 %v3423
        %3476 = vmatpush.msra.mxu0 %v3421
        %3477 = vmatpush.msra.mxu0 %v3419
        %3478 = vmatpush.msra.mxu0 %v3417
        %3479 = vmatpush.msra.mxu0 %v3415
        %3480 = vmatpush.msra.mxu0 %v3413
        %3481 = vmatpush.msra.mxu0 %v3411
        %3482 = vmatpush.msra.mxu0 %v3409
        %3483 = vmatpush.msra.mxu0 %v3407
        %3484 = vmatpush.msra.mxu0 %v3405
        %3485 = vmatmul.f32.gmra.mxu0 %v3389
        %v3486 = vpop.f32.mrf.mxu0
        %v3487 = vadd.f32 %v3437, %v3486
        %3488 = vmatmul.f32.gmra.mxu0 %v3390
        %v3489 = vpop.f32.mrf.mxu0
        %v3490 = vadd.f32 %v3439, %v3489
        %3491 = vmatmul.f32.gmra.mxu0 %v3391
        %v3492 = vpop.f32.mrf.mxu0
        %v3493 = vadd.f32 %v3441, %v3492
        %3494 = vmatmul.f32.gmra.mxu0 %v3392
        %v3495 = vpop.f32.mrf.mxu0
        %v3496 = vadd.f32 %v3443, %v3495
        %3497 = vmatmul.f32.gmra.mxu0 %v3393
        %v3498 = vpop.f32.mrf.mxu0
        %v3499 = vadd.f32 %v3445, %v3498
        %3500 = vmatmul.f32.gmra.mxu0 %v3394
        %v3501 = vpop.f32.mrf.mxu0
        %v3502 = vadd.f32 %v3447, %v3501
        %3503 = vmatmul.f32.gmra.mxu0 %v3395
        %v3504 = vpop.f32.mrf.mxu0
        %v3505 = vadd.f32 %v3449, %v3504
        %3506 = vmatmul.f32.gmra.mxu0 %v3396
        %v3507 = vpop.f32.mrf.mxu0
        %v3508 = vadd.f32 %v3451, %v3507
        %3509 = vmatmul.f32.gmra.mxu0 %v3397
        %v3510 = vpop.f32.mrf.mxu0
        %v3511 = vadd.f32 %v3453, %v3510
        %3512 = vmatmul.f32.gmra.mxu0 %v3398
        %v3513 = vpop.f32.mrf.mxu0
        %v3514 = vadd.f32 %v3455, %v3513
        %3515 = vmatmul.f32.gmra.mxu0 %v3399
        %v3516 = vpop.f32.mrf.mxu0
        %v3517 = vadd.f32 %v3457, %v3516
        %3518 = vmatmul.f32.gmra.mxu0 %v3400
        %v3519 = vpop.f32.mrf.mxu0
        %v3520 = vadd.f32 %v3459, %v3519
        %3521 = vmatmul.f32.gmra.mxu0 %v3401
        %v3522 = vpop.f32.mrf.mxu0
        %v3523 = vadd.f32 %v3461, %v3522
        %3524 = vmatmul.f32.gmra.mxu0 %v3402
        %v3525 = vpop.f32.mrf.mxu0
        %v3526 = vadd.f32 %v3463, %v3525
        %3527 = vmatmul.f32.gmra.mxu0 %v3403
        %v3528 = vpop.f32.mrf.mxu0
        %v3529 = vadd.f32 %v3465, %v3528
        %3530 = vmatmul.f32.gmra.mxu0 %v3404
        %v3531 = vpop.f32.mrf.mxu0
        %v3532 = vadd.f32 %v3467, %v3531
        %3533 = vdwg.mxu0
        %3534 = vmatpush.msra.mxu0 %v3436
        %3535 = vmatpush.msra.mxu0 %v3434
        %3536 = vmatpush.msra.mxu0 %v3432
        %3537 = vmatpush.msra.mxu0 %v3430
        %3538 = vmatpush.msra.mxu0 %v3428
        %3539 = vmatpush.msra.mxu0 %v3426
        %3540 = vmatpush.msra.mxu0 %v3424
        %3541 = vmatpush.msra.mxu0 %v3422
        %3542 = vmatpush.msra.mxu0 %v3420
        %3543 = vmatpush.msra.mxu0 %v3418
        %3544 = vmatpush.msra.mxu0 %v3416
        %3545 = vmatpush.msra.mxu0 %v3414
        %3546 = vmatpush.msra.mxu0 %v3412
        %3547 = vmatpush.msra.mxu0 %v3410
        %3548 = vmatpush.msra.mxu0 %v3408
        %3549 = vmatpush.msra.mxu0 %v3406
        %3550 = vmatmul.f32.gmra.mxu0 %v3389
        %v3551 = vpop.f32.mrf.mxu0
        %v3552 = vadd.f32 %v3438, %v3551
        %3553 = vmatmul.f32.gmra.mxu0 %v3390
        %v3554 = vpop.f32.mrf.mxu0
        %v3555 = vadd.f32 %v3440, %v3554
        %3556 = vmatmul.f32.gmra.mxu0 %v3391
        %v3557 = vpop.f32.mrf.mxu0
        %v3558 = vadd.f32 %v3442, %v3557
        %3559 = vmatmul.f32.gmra.mxu0 %v3392
        %v3560 = vpop.f32.mrf.mxu0
        %v3561 = vadd.f32 %v3444, %v3560
        %3562 = vmatmul.f32.gmra.mxu0 %v3393
        %v3563 = vpop.f32.mrf.mxu0
        %v3564 = vadd.f32 %v3446, %v3563
        %3565 = vmatmul.f32.gmra.mxu0 %v3394
        %v3566 = vpop.f32.mrf.mxu0
        %v3567 = vadd.f32 %v3448, %v3566
        %3568 = vmatmul.f32.gmra.mxu0 %v3395
        %v3569 = vpop.f32.mrf.mxu0
        %v3570 = vadd.f32 %v3450, %v3569
        %3571 = vmatmul.f32.gmra.mxu0 %v3396
        %v3572 = vpop.f32.mrf.mxu0
        %v3573 = vadd.f32 %v3452, %v3572
        %3574 = vmatmul.f32.gmra.mxu0 %v3397
        %v3575 = vpop.f32.mrf.mxu0
        %v3576 = vadd.f32 %v3454, %v3575
        %3577 = vmatmul.f32.gmra.mxu0 %v3398
        %v3578 = vpop.f32.mrf.mxu0
        %v3579 = vadd.f32 %v3456, %v3578
        %3580 = vmatmul.f32.gmra.mxu0 %v3399
        %v3581 = vpop.f32.mrf.mxu0
        %v3582 = vadd.f32 %v3458, %v3581
        %3583 = vmatmul.f32.gmra.mxu0 %v3400
        %v3584 = vpop.f32.mrf.mxu0
        %v3585 = vadd.f32 %v3460, %v3584
        %3586 = vmatmul.f32.gmra.mxu0 %v3401
        %v3587 = vpop.f32.mrf.mxu0
        %v3588 = vadd.f32 %v3462, %v3587
        %3589 = vmatmul.f32.gmra.mxu0 %v3402
        %v3590 = vpop.f32.mrf.mxu0
        %v3591 = vadd.f32 %v3464, %v3590
        %3592 = vmatmul.f32.gmra.mxu0 %v3403
        %v3593 = vpop.f32.mrf.mxu0
        %v3594 = vadd.f32 %v3466, %v3593
        %3595 = vmatmul.f32.gmra.mxu0 %v3404
        %v3596 = vpop.f32.mrf.mxu0
        %v3597 = vadd.f32 %v3468, %v3596
        %3598 = vdwg.mxu0
        %s3599 = sld [smem:[#allocation4 + $0xa]]
        %v3600 = vstv %s3599
        %v3601 = vsub.f32 %v3487, %v3600
        %v3602 = vsub.f32 %v3552, %v3600
        %v3603 = vsub.f32 %v3490, %v3600
        %v3604 = vsub.f32 %v3555, %v3600
        %v3605 = vsub.f32 %v3493, %v3600
        %v3606 = vsub.f32 %v3558, %v3600
        %v3607 = vsub.f32 %v3496, %v3600
        %v3608 = vsub.f32 %v3561, %v3600
        %v3609 = vsub.f32 %v3499, %v3600
        %v3610 = vsub.f32 %v3564, %v3600
        %v3611 = vsub.f32 %v3502, %v3600
        %v3612 = vsub.f32 %v3567, %v3600
        %v3613 = vsub.f32 %v3505, %v3600
        %v3614 = vsub.f32 %v3570, %v3600
        %v3615 = vsub.f32 %v3508, %v3600
        %v3616 = vsub.f32 %v3573, %v3600
        %v3617 = vsub.f32 %v3511, %v3600
        %v3618 = vsub.f32 %v3576, %v3600
        %v3619 = vsub.f32 %v3514, %v3600
        %v3620 = vsub.f32 %v3579, %v3600
        %v3621 = vsub.f32 %v3517, %v3600
        %v3622 = vsub.f32 %v3582, %v3600
        %v3623 = vsub.f32 %v3520, %v3600
        %v3624 = vsub.f32 %v3585, %v3600
        %v3625 = vsub.f32 %v3523, %v3600
        %v3626 = vsub.f32 %v3588, %v3600
        %v3627 = vsub.f32 %v3526, %v3600
        %v3628 = vsub.f32 %v3591, %v3600
        %v3629 = vsub.f32 %v3529, %v3600
        %v3630 = vsub.f32 %v3594, %v3600
        %v3631 = vsub.f32 %v3532, %v3600
        %v3632 = vsub.f32 %v3597, %v3600
        %v3633 = vmax.f32 %v3601, 0.0
        %v3634 = vmax.f32 %v3602, 0.0
        %v3635 = vmax.f32 %v3603, 0.0
        %v3636 = vmax.f32 %v3604, 0.0
        %v3637 = vmax.f32 %v3605, 0.0
        %v3638 = vmax.f32 %v3606, 0.0
        %v3639 = vmax.f32 %v3607, 0.0
        %v3640 = vmax.f32 %v3608, 0.0
        %v3641 = vmax.f32 %v3609, 0.0
        %v3642 = vmax.f32 %v3610, 0.0
        %v3643 = vmax.f32 %v3611, 0.0
        %v3644 = vmax.f32 %v3612, 0.0
        %v3645 = vmax.f32 %v3613, 0.0
        %v3646 = vmax.f32 %v3614, 0.0
        %v3647 = vmax.f32 %v3615, 0.0
        %v3648 = vmax.f32 %v3616, 0.0
        %v3649 = vmax.f32 %v3617, 0.0
        %v3650 = vmax.f32 %v3618, 0.0
        %v3651 = vmax.f32 %v3619, 0.0
        %v3652 = vmax.f32 %v3620, 0.0
        %v3653 = vmax.f32 %v3621, 0.0
        %v3654 = vmax.f32 %v3622, 0.0
        %v3655 = vmax.f32 %v3623, 0.0
        %v3656 = vmax.f32 %v3624, 0.0
        %v3657 = vmax.f32 %v3625, 0.0
        %v3658 = vmax.f32 %v3626, 0.0
        %v3659 = vmax.f32 %v3627, 0.0
        %v3660 = vmax.f32 %v3628, 0.0
        %v3661 = vmax.f32 %v3629, 0.0
        %v3662 = vmax.f32 %v3630, 0.0
        %v3663 = vmax.f32 %v3631, 0.0
        %v3664 = vmax.f32 %v3632, 0.0
        %3665 = vst [vmem:[#allocation3] sm:$0xff] %v3633
        %3666 = vst [vmem:[#allocation3 + $0x8] sm:$0xff] %v3634
        %3667 = vst [vmem:[#allocation3 + $0x10] sm:$0xff] %v3635
        %3668 = vst [vmem:[#allocation3 + $0x18] sm:$0xff] %v3636
        %3669 = vst [vmem:[#allocation3 + $0x20] sm:$0xff] %v3637
        %3670 = vst [vmem:[#allocation3 + $0x28] sm:$0xff] %v3638
        %3671 = vst [vmem:[#allocation3 + $0x30] sm:$0xff] %v3639
        %3672 = vst [vmem:[#allocation3 + $0x38] sm:$0xff] %v3640
        %3673 = vst [vmem:[#allocation3 + $0x40] sm:$0xff] %v3641
        %3674 = vst [vmem:[#allocation3 + $0x48] sm:$0xff] %v3642
        %3675 = vst [vmem:[#allocation3 + $0x50] sm:$0xff] %v3643
        %3676 = vst [vmem:[#allocation3 + $0x58] sm:$0xff] %v3644
        %3677 = vst [vmem:[#allocation3 + $0x60] sm:$0xff] %v3645
        %3678 = vst [vmem:[#allocation3 + $0x68] sm:$0xff] %v3646
        %3679 = vst [vmem:[#allocation3 + $0x70] sm:$0xff] %v3647
        %3680 = vst [vmem:[#allocation3 + $0x78] sm:$0xff] %v3648
        %3681 = vst [vmem:[#allocation3 + $0x80] sm:$0xff] %v3649
        %3682 = vst [vmem:[#allocation3 + $0x88] sm:$0xff] %v3650
        %3683 = vst [vmem:[#allocation3 + $0x90] sm:$0xff] %v3651
        %3684 = vst [vmem:[#allocation3 + $0x98] sm:$0xff] %v3652
        %3685 = vst [vmem:[#allocation3 + $0xa0] sm:$0xff] %v3653
        %3686 = vst [vmem:[#allocation3 + $0xa8] sm:$0xff] %v3654
        %3687 = vst [vmem:[#allocation3 + $0xb0] sm:$0xff] %v3655
        %3688 = vst [vmem:[#allocation3 + $0xb8] sm:$0xff] %v3656
        %3689 = vst [vmem:[#allocation3 + $0xc0] sm:$0xff] %v3657
        %3690 = vst [vmem:[#allocation3 + $0xc8] sm:$0xff] %v3658
        %3691 = vst [vmem:[#allocation3 + $0xd0] sm:$0xff] %v3659
        %3692 = vst [vmem:[#allocation3 + $0xd8] sm:$0xff] %v3660
        %3693 = vst [vmem:[#allocation3 + $0xe0] sm:$0xff] %v3661
        %3694 = vst [vmem:[#allocation3 + $0xe8] sm:$0xff] %v3662
        %3695 = vst [vmem:[#allocation3 + $0xf0] sm:$0xff] %v3663
        %3696 = vst [vmem:[#allocation3 + $0xf8] sm:$0xff] %v3664
        %v3697 = vld [vmem:[%s3] sm:$0xff]
        %v3698 = vld [vmem:[%s3 + $0x8] sm:$0xff]
        %v3699 = vld [vmem:[%s3 + $0x10] sm:$0xff]
        %v3700 = vld [vmem:[%s3 + $0x18] sm:$0xff]
        %v3701 = vld [vmem:[%s3 + $0x20] sm:$0xff]
        %v3702 = vld [vmem:[%s3 + $0x28] sm:$0xff]
        %v3703 = vld [vmem:[%s3 + $0x30] sm:$0xff]
        %v3704 = vld [vmem:[%s3 + $0x38] sm:$0xff]
        %v3705 = vld [vmem:[%s3 + $0x40] sm:$0xff]
        %v3706 = vld [vmem:[%s3 + $0x48] sm:$0xff]
        %v3707 = vld [vmem:[%s3 + $0x50] sm:$0xff]
        %v3708 = vld [vmem:[%s3 + $0x58] sm:$0xff]
        %v3709 = vld [vmem:[%s3 + $0x60] sm:$0xff]
        %v3710 = vld [vmem:[%s3 + $0x68] sm:$0xff]
        %v3711 = vld [vmem:[%s3 + $0x70] sm:$0xff]
        %v3712 = vld [vmem:[%s3 + $0x78] sm:$0xff]
        %v3713 = vld [vmem:[#allocation3] sm:$0xff]
        %v3714 = vld [vmem:[#allocation3 + $0x8] sm:$0xff]
        %v3715 = vld [vmem:[#allocation3 + $0x10] sm:$0xff]
        %v3716 = vld [vmem:[#allocation3 + $0x18] sm:$0xff]
        %v3717 = vld [vmem:[#allocation3 + $0x20] sm:$0xff]
        %v3718 = vld [vmem:[#allocation3 + $0x28] sm:$0xff]
        %v3719 = vld [vmem:[#allocation3 + $0x30] sm:$0xff]
        %v3720 = vld [vmem:[#allocation3 + $0x38] sm:$0xff]
        %v3721 = vld [vmem:[#allocation3 + $0x40] sm:$0xff]
        %v3722 = vld [vmem:[#allocation3 + $0x48] sm:$0xff]
        %v3723 = vld [vmem:[#allocation3 + $0x50] sm:$0xff]
        %v3724 = vld [vmem:[#allocation3 + $0x58] sm:$0xff]
        %v3725 = vld [vmem:[#allocation3 + $0x60] sm:$0xff]
        %v3726 = vld [vmem:[#allocation3 + $0x68] sm:$0xff]
        %v3727 = vld [vmem:[#allocation3 + $0x70] sm:$0xff]
        %v3728 = vld [vmem:[#allocation3 + $0x78] sm:$0xff]
        %v3729 = vld [vmem:[#allocation3 + $0x80] sm:$0xff]
        %v3730 = vld [vmem:[#allocation3 + $0x88] sm:$0xff]
        %v3731 = vld [vmem:[#allocation3 + $0x90] sm:$0xff]
        %v3732 = vld [vmem:[#allocation3 + $0x98] sm:$0xff]
        %v3733 = vld [vmem:[#allocation3 + $0xa0] sm:$0xff]
        %v3734 = vld [vmem:[#allocation3 + $0xa8] sm:$0xff]
        %v3735 = vld [vmem:[#allocation3 + $0xb0] sm:$0xff]
        %v3736 = vld [vmem:[#allocation3 + $0xb8] sm:$0xff]
        %v3737 = vld [vmem:[#allocation3 + $0xc0] sm:$0xff]
        %v3738 = vld [vmem:[#allocation3 + $0xc8] sm:$0xff]
        %v3739 = vld [vmem:[#allocation3 + $0xd0] sm:$0xff]
        %v3740 = vld [vmem:[#allocation3 + $0xd8] sm:$0xff]
        %v3741 = vld [vmem:[#allocation3 + $0xe0] sm:$0xff]
        %v3742 = vld [vmem:[#allocation3 + $0xe8] sm:$0xff]
        %v3743 = vld [vmem:[#allocation3 + $0xf0] sm:$0xff]
        %v3744 = vld [vmem:[#allocation3 + $0xf8] sm:$0xff]
        %v3745 = vld [vmem:[#allocation2] sm:$0xff]
        %v3746 = vld [vmem:[#allocation2 + $0x8] sm:$0xff]
        %v3747 = vld [vmem:[#allocation2 + $0x10] sm:$0xff]
        %v3748 = vld [vmem:[#allocation2 + $0x18] sm:$0xff]
        %v3749 = vld [vmem:[#allocation2 + $0x20] sm:$0xff]
        %v3750 = vld [vmem:[#allocation2 + $0x28] sm:$0xff]
        %v3751 = vld [vmem:[#allocation2 + $0x30] sm:$0xff]
        %v3752 = vld [vmem:[#allocation2 + $0x38] sm:$0xff]
        %v3753 = vld [vmem:[#allocation2 + $0x40] sm:$0xff]
        %v3754 = vld [vmem:[#allocation2 + $0x48] sm:$0xff]
        %v3755 = vld [vmem:[#allocation2 + $0x50] sm:$0xff]
        %v3756 = vld [vmem:[#allocation2 + $0x58] sm:$0xff]
        %v3757 = vld [vmem:[#allocation2 + $0x60] sm:$0xff]
        %v3758 = vld [vmem:[#allocation2 + $0x68] sm:$0xff]
        %v3759 = vld [vmem:[#allocation2 + $0x70] sm:$0xff]
        %v3760 = vld [vmem:[#allocation2 + $0x78] sm:$0xff]
        %v3761 = vld [vmem:[#allocation2 + $0x80] sm:$0xff]
        %v3762 = vld [vmem:[#allocation2 + $0x88] sm:$0xff]
        %v3763 = vld [vmem:[#allocation2 + $0x90] sm:$0xff]
        %v3764 = vld [vmem:[#allocation2 + $0x98] sm:$0xff]
        %v3765 = vld [vmem:[#allocation2 + $0xa0] sm:$0xff]
        %v3766 = vld [vmem:[#allocation2 + $0xa8] sm:$0xff]
        %v3767 = vld [vmem:[#allocation2 + $0xb0] sm:$0xff]
        %v3768 = vld [vmem:[#allocation2 + $0xb8] sm:$0xff]
        %v3769 = vld [vmem:[#allocation2 + $0xc0] sm:$0xff]
        %v3770 = vld [vmem:[#allocation2 + $0xc8] sm:$0xff]
        %v3771 = vld [vmem:[#allocation2 + $0xd0] sm:$0xff]
        %v3772 = vld [vmem:[#allocation2 + $0xd8] sm:$0xff]
        %v3773 = vld [vmem:[#allocation2 + $0xe0] sm:$0xff]
        %v3774 = vld [vmem:[#allocation2 + $0xe8] sm:$0xff]
        %v3775 = vld [vmem:[#allocation2 + $0xf0] sm:$0xff]
        %v3776 = vld [vmem:[#allocation2 + $0xf8] sm:$0xff]
        %3777 = vmatpush.msra.mxu0 %v3743
        %3778 = vmatpush.msra.mxu0 %v3741
        %3779 = vmatpush.msra.mxu0 %v3739
        %3780 = vmatpush.msra.mxu0 %v3737
        %3781 = vmatpush.msra.mxu0 %v3735
        %3782 = vmatpush.msra.mxu0 %v3733
        %3783 = vmatpush.msra.mxu0 %v3731
        %3784 = vmatpush.msra.mxu0 %v3729
        %3785 = vmatpush.msra.mxu0 %v3727
        %3786 = vmatpush.msra.mxu0 %v3725
        %3787 = vmatpush.msra.mxu0 %v3723
        %3788 = vmatpush.msra.mxu0 %v3721
        %3789 = vmatpush.msra.mxu0 %v3719
        %3790 = vmatpush.msra.mxu0 %v3717
        %3791 = vmatpush.msra.mxu0 %v3715
        %3792 = vmatpush.msra.mxu0 %v3713
        %3793 = vmatmul.f32.gmra.mxu0 %v3697
        %v3794 = vpop.f32.mrf.mxu0
        %v3795 = vadd.f32 %v3745, %v3794
        %3796 = vmatmul.f32.gmra.mxu0 %v3698
        %v3797 = vpop.f32.mrf.mxu0
        %v3798 = vadd.f32 %v3747, %v3797
        %3799 = vmatmul.f32.gmra.mxu0 %v3699
        %v3800 = vpop.f32.mrf.mxu0
        %v3801 = vadd.f32 %v3749, %v3800
        %3802 = vmatmul.f32.gmra.mxu0 %v3700
        %v3803 = vpop.f32.mrf.mxu0
        %v3804 = vadd.f32 %v3751, %v3803
        %3805 = vmatmul.f32.gmra.mxu0 %v3701
        %v3806 = vpop.f32.mrf.mxu0
        %v3807 = vadd.f32 %v3753, %v3806
        %3808 = vmatmul.f32.gmra.mxu0 %v3702
        %v3809 = vpop.f32.mrf.mxu0
        %v3810 = vadd.f32 %v3755, %v3809
        %3811 = vmatmul.f32.gmra.mxu0 %v3703
        %v3812 = vpop.f32.mrf.mxu0
        %v3813 = vadd.f32 %v3757, %v3812
        %3814 = vmatmul.f32.gmra.mxu0 %v3704
        %v3815 = vpop.f32.mrf.mxu0
        %v3816 = vadd.f32 %v3759, %v3815
        %3817 = vmatmul.f32.gmra.mxu0 %v3705
        %v3818 = vpop.f32.mrf.mxu0
        %v3819 = vadd.f32 %v3761, %v3818
        %3820 = vmatmul.f32.gmra.mxu0 %v3706
        %v3821 = vpop.f32.mrf.mxu0
        %v3822 = vadd.f32 %v3763, %v3821
        %3823 = vmatmul.f32.gmra.mxu0 %v3707
        %v3824 = vpop.f32.mrf.mxu0
        %v3825 = vadd.f32 %v3765, %v3824
        %3826 = vmatmul.f32.gmra.mxu0 %v3708
        %v3827 = vpop.f32.mrf.mxu0
        %v3828 = vadd.f32 %v3767, %v3827
        %3829 = vmatmul.f32.gmra.mxu0 %v3709
        %v3830 = vpop.f32.mrf.mxu0
        %v3831 = vadd.f32 %v3769, %v3830
        %3832 = vmatmul.f32.gmra.mxu0 %v3710
        %v3833 = vpop.f32.mrf.mxu0
        %v3834 = vadd.f32 %v3771, %v3833
        %3835 = vmatmul.f32.gmra.mxu0 %v3711
        %v3836 = vpop.f32.mrf.mxu0
        %v3837 = vadd.f32 %v3773, %v3836
        %3838 = vmatmul.f32.gmra.mxu0 %v3712
        %v3839 = vpop.f32.mrf.mxu0
        %v3840 = vadd.f32 %v3775, %v3839
        %3841 = vdwg.mxu0
        %3842 = vmatpush.msra.mxu0 %v3744
        %3843 = vmatpush.msra.mxu0 %v3742
        %3844 = vmatpush.msra.mxu0 %v3740
        %3845 = vmatpush.msra.mxu0 %v3738
        %3846 = vmatpush.msra.mxu0 %v3736
        %3847 = vmatpush.msra.mxu0 %v3734
        %3848 = vmatpush.msra.mxu0 %v3732
        %3849 = vmatpush.msra.mxu0 %v3730
        %3850 = vmatpush.msra.mxu0 %v3728
        %3851 = vmatpush.msra.mxu0 %v3726
        %3852 = vmatpush.msra.mxu0 %v3724
        %3853 = vmatpush.msra.mxu0 %v3722
        %3854 = vmatpush.msra.mxu0 %v3720
        %3855 = vmatpush.msra.mxu0 %v3718
        %3856 = vmatpush.msra.mxu0 %v3716
        %3857 = vmatpush.msra.mxu0 %v3714
        %3858 = vmatmul.f32.gmra.mxu0 %v3697
        %v3859 = vpop.f32.mrf.mxu0
        %v3860 = vadd.f32 %v3746, %v3859
        %3861 = vmatmul.f32.gmra.mxu0 %v3698
        %v3862 = vpop.f32.mrf.mxu0
        %v3863 = vadd.f32 %v3748, %v3862
        %3864 = vmatmul.f32.gmra.mxu0 %v3699
        %v3865 = vpop.f32.mrf.mxu0
        %v3866 = vadd.f32 %v3750, %v3865
        %3867 = vmatmul.f32.gmra.mxu0 %v3700
        %v3868 = vpop.f32.mrf.mxu0
        %v3869 = vadd.f32 %v3752, %v3868
        %3870 = vmatmul.f32.gmra.mxu0 %v3701
        %v3871 = vpop.f32.mrf.mxu0
        %v3872 = vadd.f32 %v3754, %v3871
        %3873 = vmatmul.f32.gmra.mxu0 %v3702
        %v3874 = vpop.f32.mrf.mxu0
        %v3875 = vadd.f32 %v3756, %v3874
        %3876 = vmatmul.f32.gmra.mxu0 %v3703
        %v3877 = vpop.f32.mrf.mxu0
        %v3878 = vadd.f32 %v3758, %v3877
        %3879 = vmatmul.f32.gmra.mxu0 %v3704
        %v3880 = vpop.f32.mrf.mxu0
        %v3881 = vadd.f32 %v3760, %v3880
        %3882 = vmatmul.f32.gmra.mxu0 %v3705
        %v3883 = vpop.f32.mrf.mxu0
        %v3884 = vadd.f32 %v3762, %v3883
        %3885 = vmatmul.f32.gmra.mxu0 %v3706
        %v3886 = vpop.f32.mrf.mxu0
        %v3887 = vadd.f32 %v3764, %v3886
        %3888 = vmatmul.f32.gmra.mxu0 %v3707
        %v3889 = vpop.f32.mrf.mxu0
        %v3890 = vadd.f32 %v3766, %v3889
        %3891 = vmatmul.f32.gmra.mxu0 %v3708
        %v3892 = vpop.f32.mrf.mxu0
        %v3893 = vadd.f32 %v3768, %v3892
        %3894 = vmatmul.f32.gmra.mxu0 %v3709
        %v3895 = vpop.f32.mrf.mxu0
        %v3896 = vadd.f32 %v3770, %v3895
        %3897 = vmatmul.f32.gmra.mxu0 %v3710
        %v3898 = vpop.f32.mrf.mxu0
        %v3899 = vadd.f32 %v3772, %v3898
        %3900 = vmatmul.f32.gmra.mxu0 %v3711
        %v3901 = vpop.f32.mrf.mxu0
        %v3902 = vadd.f32 %v3774, %v3901
        %3903 = vmatmul.f32.gmra.mxu0 %v3712
        %v3904 = vpop.f32.mrf.mxu0
        %v3905 = vadd.f32 %v3776, %v3904
        %3906 = vdwg.mxu0
        %s3907 = sld [smem:[#allocation4 + $0xb]]
        %v3908 = vstv %s3907
        %v3909 = vsub.f32 %v3795, %v3908
        %v3910 = vsub.f32 %v3860, %v3908
        %v3911 = vsub.f32 %v3798, %v3908
        %v3912 = vsub.f32 %v3863, %v3908
        %v3913 = vsub.f32 %v3801, %v3908
        %v3914 = vsub.f32 %v3866, %v3908
        %v3915 = vsub.f32 %v3804, %v3908
        %v3916 = vsub.f32 %v3869, %v3908
        %v3917 = vsub.f32 %v3807, %v3908
        %v3918 = vsub.f32 %v3872, %v3908
        %v3919 = vsub.f32 %v3810, %v3908
        %v3920 = vsub.f32 %v3875, %v3908
        %v3921 = vsub.f32 %v3813, %v3908
        %v3922 = vsub.f32 %v3878, %v3908
        %v3923 = vsub.f32 %v3816, %v3908
        %v3924 = vsub.f32 %v3881, %v3908
        %v3925 = vsub.f32 %v3819, %v3908
        %v3926 = vsub.f32 %v3884, %v3908
        %v3927 = vsub.f32 %v3822, %v3908
        %v3928 = vsub.f32 %v3887, %v3908
        %v3929 = vsub.f32 %v3825, %v3908
        %v3930 = vsub.f32 %v3890, %v3908
        %v3931 = vsub.f32 %v3828, %v3908
        %v3932 = vsub.f32 %v3893, %v3908
        %v3933 = vsub.f32 %v3831, %v3908
        %v3934 = vsub.f32 %v3896, %v3908
        %v3935 = vsub.f32 %v3834, %v3908
        %v3936 = vsub.f32 %v3899, %v3908
        %v3937 = vsub.f32 %v3837, %v3908
        %v3938 = vsub.f32 %v3902, %v3908
        %v3939 = vsub.f32 %v3840, %v3908
        %v3940 = vsub.f32 %v3905, %v3908
        %v3941 = vmax.f32 %v3909, 0.0
        %v3942 = vmax.f32 %v3910, 0.0
        %v3943 = vmax.f32 %v3911, 0.0
        %v3944 = vmax.f32 %v3912, 0.0
        %v3945 = vmax.f32 %v3913, 0.0
        %v3946 = vmax.f32 %v3914, 0.0
        %v3947 = vmax.f32 %v3915, 0.0
        %v3948 = vmax.f32 %v3916, 0.0
        %v3949 = vmax.f32 %v3917, 0.0
        %v3950 = vmax.f32 %v3918, 0.0
        %v3951 = vmax.f32 %v3919, 0.0
        %v3952 = vmax.f32 %v3920, 0.0
        %v3953 = vmax.f32 %v3921, 0.0
        %v3954 = vmax.f32 %v3922, 0.0
        %v3955 = vmax.f32 %v3923, 0.0
        %v3956 = vmax.f32 %v3924, 0.0
        %v3957 = vmax.f32 %v3925, 0.0
        %v3958 = vmax.f32 %v3926, 0.0
        %v3959 = vmax.f32 %v3927, 0.0
        %v3960 = vmax.f32 %v3928, 0.0
        %v3961 = vmax.f32 %v3929, 0.0
        %v3962 = vmax.f32 %v3930, 0.0
        %v3963 = vmax.f32 %v3931, 0.0
        %v3964 = vmax.f32 %v3932, 0.0
        %v3965 = vmax.f32 %v3933, 0.0
        %v3966 = vmax.f32 %v3934, 0.0
        %v3967 = vmax.f32 %v3935, 0.0
        %v3968 = vmax.f32 %v3936, 0.0
        %v3969 = vmax.f32 %v3937, 0.0
        %v3970 = vmax.f32 %v3938, 0.0
        %v3971 = vmax.f32 %v3939, 0.0
        %v3972 = vmax.f32 %v3940, 0.0
        %3973 = vst [vmem:[%s247] sm:$0xff] %v3941
        %3974 = vst [vmem:[%s247 + $0x8] sm:$0xff] %v3942
        %3975 = vst [vmem:[%s247 + $0x10] sm:$0xff] %v3943
        %3976 = vst [vmem:[%s247 + $0x18] sm:$0xff] %v3944
        %3977 = vst [vmem:[%s247 + $0x20] sm:$0xff] %v3945
        %3978 = vst [vmem:[%s247 + $0x28] sm:$0xff] %v3946
        %3979 = vst [vmem:[%s247 + $0x30] sm:$0xff] %v3947
        %3980 = vst [vmem:[%s247 + $0x38] sm:$0xff] %v3948
        %3981 = vst [vmem:[%s247 + $0x40] sm:$0xff] %v3949
        %3982 = vst [vmem:[%s247 + $0x48] sm:$0xff] %v3950
        %3983 = vst [vmem:[%s247 + $0x50] sm:$0xff] %v3951
        %3984 = vst [vmem:[%s247 + $0x58] sm:$0xff] %v3952
        %3985 = vst [vmem:[%s247 + $0x60] sm:$0xff] %v3953
        %3986 = vst [vmem:[%s247 + $0x68] sm:$0xff] %v3954
        %3987 = vst [vmem:[%s247 + $0x70] sm:$0xff] %v3955
        %3988 = vst [vmem:[%s247 + $0x78] sm:$0xff] %v3956
        %3989 = vst [vmem:[%s247 + $0x80] sm:$0xff] %v3957
        %3990 = vst [vmem:[%s247 + $0x88] sm:$0xff] %v3958
        %3991 = vst [vmem:[%s247 + $0x90] sm:$0xff] %v3959
        %3992 = vst [vmem:[%s247 + $0x98] sm:$0xff] %v3960
        %3993 = vst [vmem:[%s247 + $0xa0] sm:$0xff] %v3961
        %3994 = vst [vmem:[%s247 + $0xa8] sm:$0xff] %v3962
        %3995 = vst [vmem:[%s247 + $0xb0] sm:$0xff] %v3963
        %3996 = vst [vmem:[%s247 + $0xb8] sm:$0xff] %v3964
        %3997 = vst [vmem:[%s247 + $0xc0] sm:$0xff] %v3965
        %3998 = vst [vmem:[%s247 + $0xc8] sm:$0xff] %v3966
        %3999 = vst [vmem:[%s247 + $0xd0] sm:$0xff] %v3967
        %4000 = vst [vmem:[%s247 + $0xd8] sm:$0xff] %v3968
        %4001 = vst [vmem:[%s247 + $0xe0] sm:$0xff] %v3969
        %4002 = vst [vmem:[%s247 + $0xe8] sm:$0xff] %v3970
        %4003 = vst [vmem:[%s247 + $0xf0] sm:$0xff] %v3971
        %4004 = vst [vmem:[%s247 + $0xf8] sm:$0xff] %v3972
        %s4005 = sand.u32 %s135, 1
        %s4006 = scalar_lea.sflag [#allocation6], %s4005
        %s4007 = sand.u32 %s135, 1
        %s4008 = smul.addr %s4007, 256
        %s4009 = scalar_lea.vmem [#allocation9], %s4008
        // Predicated region
        $region45: #{tpu_custom_call.1} parent=35 // pred_check
          %p4010 = pneg %p145
        $region46: #{tpu_custom_call.1} parent=35 // pred_check_branch
          %4012 = sbr.rel (%p4010) target = $region48
        $region47: #{tpu_custom_call.1} parent=35 // pred_region
          %s4013 = smul.u32 2, %s27
          %4015 = vsyncadd %s4006, 0
          %s4016 = smul.addr %s26, 32
          %s4017 = sadd.s32 %s4013, %s4016
          %s4018 = smul.addr %s4017, 8
          %s4019 = scalar_lea.hbm %s4, %s4018
          %s4020 = sshll.u32 %s4009, 4
          %s4021 = int_to_ptr.vmem [resolvable:$true] %s4020
          %s4022 = sshll.u32 %s4019, 4
          %s4023 = int_to_ptr.hbm [resolvable:$true] %s4022
          %4028 = dma.vmem_to_hbm [thread:$0]  %s4021, 4096, %s4023, %s4006, 256, 256, 16
        $region48: #{tpu_custom_call.1} parent=35 // pred_fallthru
          _
      $region36: #{tpu_custom_call.1} parent=5 // pred_fallthru
        _
      %p4029 = scmp.le.s32.totalorder 2, %s17
      // Predicated region
      $region49: #{tpu_custom_call.1} parent=5 // pred_check
        %p4030 = pneg %p4029
      $region50: #{tpu_custom_call.1} parent=5 // pred_check_branch
        %4032 = sbr.rel (%p4030) target = $region52
      $region51: #{tpu_custom_call.1} parent=5 // pred_region
        %s4033 = ssub.s32 %s17, 2
        // Predicated region
        $region53: #{tpu_custom_call.1} parent=51 // pred_check
          %p4034 = pneg %p151
        $region54: #{tpu_custom_call.1} parent=51 // pred_check_branch
          %4036 = sbr.rel (%p4034) target = $region56
        $region55: #{tpu_custom_call.1} parent=51 // pred_region
          %s4037 = sand.u32 %s136, 1
          %s4038 = scalar_lea.sflag [#allocation6], %s4037
          %s4039 = sand.u32 %s136, 1
          %s4040 = smul.addr %s4039, 256
          %s4041 = scalar_lea.vmem [#allocation9], %s4040
          %4043 = dma.done %s4038, 4096
        $region56: #{tpu_custom_call.1} parent=51 // pred_fallthru
          _
      $region52: #{tpu_custom_call.1} parent=5 // pred_fallthru
        _
    $region6: #{tpu_custom_call.1} parent=1 // loop_footer
      %s21 = sadd.s32 1, %s17
    $region7: #{tpu_custom_call.1} parent=1 // loop_footer_branch
      %16 = sbr.rel target = $region3
    $region8: #{tpu_custom_call.1} parent=1 // loop_exit
      _
    %4044 = vsyncpa [#allocation5], 1
    %s4045 = scalar_lea.sflag [#allocation5], 1
    %4046 = vsyncpa %s4045, 1
    %4047 = vsyncpa [#allocation6], 1
    %s4048 = scalar_lea.sflag [#allocation6], 1
    %4049 = vsyncpa %s4048, 1
    %4050 = vsyncpa [#allocation7], 1
    %s4051 = scalar_lea.sflag [#allocation7], 1
    %4052 = vsyncpa %s4051, 1

</llo_original>
